<compile_context>
chip_gen: v7x
topology: tpu7x:2x2x1
jax: 0.10.0
libtpu: 0.0.40
codegen_flags: <defaults>
</compile_context>

<pallas_src>
import functools

import jax
import jax.numpy as jnp
from jax.experimental import pallas as pl
from jax.experimental.pallas import tpu as pltpu


# ----------------------------------------------------------------------------
# Fused SSH kernel
# ----------------------------------------------------------------------------
def _make_ssh_kernel(H, W, Cin, Cq, Ch, Cout, slope):
    HW = H * W
    TAPS = [(ky, kx) for ky in range(3) for kx in range(3)]  # (ky, kx, c) order

    def kernel(x_ref, wa_ref, ba_ref, wb_ref, bb_ref, wc_ref, bc_ref,
               o_ref, xpad_ref, ppad_ref, pata_ref, patb_ref):
        # x_ref:   (Cin, H*W) f32        one batch element, NCHW-flat
        # wa_ref:  (9*Cin, Ch+Cq) bf16   conv3X3 || conv5X5_1 (BN scale folded)
        # wb_ref:  (9*Cq, 2*Cq)   bf16   conv5X5_2 || conv7X7_2
        # wc_ref:  (9*Cq, Cq)     bf16   conv7x7_3
        # b*_ref:  (1, ...) f32          folded BN biases
        # o_ref:   (Cout, H*W)           output, NCHW-flat (lane-dense store)
        # xpad/ppad: f32 zero-padded input / intermediate feature maps (VMEM)
        # pata/patb: bf16 im2col staging buffers (VMEM)

        def im2col(pad_ref, pat_ref, C):
            # Fold the 9 taps into the contraction dim: column band t*C:(t+1)*C
            # holds the (ky, kx)-shifted window -> single matmul with K = 9*C.
            for t, (ky, kx) in enumerate(TAPS):
                pat_ref[:, t * C:(t + 1) * C] = (
                    pad_ref[ky:ky + H, kx:kx + W, :]
                    .reshape(HW, C).astype(jnp.bfloat16))
            return pat_ref[...]

        def leaky(v):
            return jnp.where(v >= 0, v, v * slope)

        # --- stage zero-padded input in VMEM (padding + layout done in-kernel)
        xpad_ref[...] = jnp.zeros_like(xpad_ref)
        xpad_ref[1:H + 1, 1:W + 1, :] = x_ref[...].T.reshape(H, W, Cin)

        # --- conv3X3 (Cin->Ch) and conv5X5_1 (Cin->Cq): shared LHS, 1 matmul --
        pa = im2col(xpad_ref, pata_ref, Cin)                    # (HW, 9*Cin) bf16
        ya = jnp.dot(pa, wa_ref[...],
                     preferred_element_type=jnp.float32) + ba_ref[...]
        y3 = jnp.maximum(ya[:, :Ch], 0.0)        # final relu(concat) folded in
        y51 = leaky(ya[:, Ch:Ch + Cq])           # leaky relu of conv5X5_1

        # --- conv5X5_2 and conv7X7_2: share conv5X5_1's output, 1 matmul ------
        ppad_ref[...] = jnp.zeros_like(ppad_ref)
        ppad_ref[1:H + 1, 1:W + 1, :] = y51.reshape(H, W, Cq)
        pb = im2col(ppad_ref, patb_ref, Cq)                     # (HW, 9*Cq) bf16
        yb = jnp.dot(pb, wb_ref[...],
                     preferred_element_type=jnp.float32) + bb_ref[...]
        y5 = jnp.maximum(yb[:, :Cq], 0.0)
        y72 = leaky(yb[:, Cq:2 * Cq])

        # --- conv7x7_3: reuse the pad scratch (halo is still zero) ------------
        ppad_ref[1:H + 1, 1:W + 1, :] = y72.reshape(H, W, Cq)
        pc = im2col(ppad_ref, patb_ref, Cq)
        y7 = jnp.maximum(
            jnp.dot(pc, wc_ref[...],
                    preferred_element_type=jnp.float32) + bc_ref[...], 0.0)

        # --- relu(concat(...)) stored directly as (Cout, H*W): lane-dense -----
        o_ref[0:Ch, :] = y3.T.astype(o_ref.dtype)
        o_ref[Ch:Ch + Cq, :] = y5.T.astype(o_ref.dtype)
        o_ref[Ch + Cq:Cout, :] = y7.T.astype(o_ref.dtype)

    return kernel


# ----------------------------------------------------------------------------
# Parameter construction (deterministic, synthetic)
# ----------------------------------------------------------------------------
def _make_conv_bn_params(key, cin, cout, eps=1e-5):
    kw, kg, kb = jax.random.split(key, 3)
    # PyTorch conv weight is (Cout, Cin, 3, 3); store as HWIO (3, 3, Cin, Cout).
    w_torch = jax.random.normal(kw, (cout, cin, 3, 3), jnp.float32) * 0.1
    w = jnp.transpose(w_torch, (2, 3, 1, 0))
    gamma = 1.0 + 0.1 * jax.random.normal(kg, (cout,), jnp.float32)
    beta = 0.1 * jax.random.normal(kb, (cout,), jnp.float32)
    running_mean = jnp.zeros((cout,), jnp.float32)
    running_var = jnp.ones((cout,), jnp.float32)
    scale = gamma / jnp.sqrt(running_var + eps)      # eval-mode BN fold
    bias = beta - running_mean * scale
    return {"w": w, "scale": scale, "bias": bias}


def init_ssh_params(key, in_channel, out_channel):
    assert out_channel % 4 == 0
    ks = jax.random.split(key, 5)
    return {
        "conv3X3":   _make_conv_bn_params(ks[0], in_channel, out_channel // 2),
        "conv5X5_1": _make_conv_bn_params(ks[1], in_channel, out_channel // 4),
        "conv5X5_2": _make_conv_bn_params(ks[2], out_channel // 4, out_channel // 4),
        "conv7X7_2": _make_conv_bn_params(ks[3], out_channel // 4, out_channel // 4),
        "conv7x7_3": _make_conv_bn_params(ks[4], out_channel // 4, out_channel // 4),
    }


# ----------------------------------------------------------------------------
# SSH forward (single fused pallas_call)
# ----------------------------------------------------------------------------
def _fold_bn(p):
    """Fold BN scale into the conv weight; return ((9*Cin, Cout) bf16, f32 bias)."""
    w = p["w"] * p["scale"]                              # scale per out-channel
    kh, kw, cin, cout = w.shape
    return (w.reshape(kh * kw * cin, cout).astype(jnp.bfloat16),
            p["bias"].astype(jnp.float32))


def ssh_forward(params, x_nchw, out_channel):
    leaky = 0.1 if out_channel <= 64 else 0.0
    N, Cin, H, W = x_nchw.shape
    Ch, Cq = out_channel // 2, out_channel // 4
    HW = H * W

    x = x_nchw.reshape(N, Cin, HW)                       # metadata-only reshape

    w3, b3 = _fold_bn(params["conv3X3"])
    w51, b51 = _fold_bn(params["conv5X5_1"])
    w52, b52 = _fold_bn(params["conv5X5_2"])
    w72, b72 = _fold_bn(params["conv7X7_2"])
    w73, b73 = _fold_bn(params["conv7x7_3"])

    # Convs sharing the same input share one matmul (weights concat on Cout).
    wa = jnp.concatenate([w3, w51], axis=1)              # (9*Cin, Ch+Cq)
    ba = jnp.concatenate([b3, b51]).reshape(1, -1)
    wb = jnp.concatenate([w52, w72], axis=1)             # (9*Cq, 2*Cq)
    bb = jnp.concatenate([b52, b72]).reshape(1, -1)
    wc = w73                                             # (9*Cq, Cq)
    bc = b73.reshape(1, -1)

    kernel = _make_ssh_kernel(H, W, Cin, Cq, Ch, out_channel, leaky)

    out = pl.pallas_call(
        kernel,
        out_shape=jax.ShapeDtypeStruct((N, out_channel, HW), x_nchw.dtype),
        grid=(N,),
        in_specs=[
            pl.BlockSpec((pl.Squeezed(), Cin, HW), lambda n: (n, 0, 0)),
            pl.BlockSpec((9 * Cin, Ch + Cq), lambda n: (0, 0)),
            pl.BlockSpec((1, Ch + Cq), lambda n: (0, 0)),
            pl.BlockSpec((9 * Cq, 2 * Cq), lambda n: (0, 0)),
            pl.BlockSpec((1, 2 * Cq), lambda n: (0, 0)),
            pl.BlockSpec((9 * Cq, Cq), lambda n: (0, 0)),
            pl.BlockSpec((1, Cq), lambda n: (0, 0)),
        ],
        out_specs=pl.BlockSpec((pl.Squeezed(), out_channel, HW),
                               lambda n: (n, 0, 0)),
        scratch_shapes=[
            pltpu.VMEM((H + 2, W + 2, Cin), jnp.float32),   # padded input
            pltpu.VMEM((H + 2, W + 2, Cq), jnp.float32),    # padded intermediates
            pltpu.VMEM((HW, 9 * Cin), jnp.bfloat16),        # im2col (first conv pair)
            pltpu.VMEM((HW, 9 * Cq), jnp.bfloat16),         # im2col (later convs)
        ],
        compiler_params=pltpu.CompilerParams(
            dimension_semantics=("parallel",)),
    )(x, wa, ba, wb, bb, wc, bc)

    # Kernel already produced NCHW-flat output; only a metadata reshape remains.
    return out.reshape(N, out_channel, H, W)


# ----------------------------------------------------------------------------
# Pure-JAX reference (same bf16-operand / f32-accumulate numerics)
# ----------------------------------------------------------------------------
def _ref_conv_bn(x_nhwc, p, act, slope):
    w = (p["w"] * p["scale"]).astype(jnp.bfloat16)
    y = jax.lax.conv_general_dilated(
        x_nhwc.astype(jnp.bfloat16), w, window_strides=(1, 1), padding="SAME",
        dimension_numbers=("NHWC", "HWIO", "NHWC"),
        preferred_element_type=jnp.float32)
    y = y + p["bias"]
    if act == "leaky":
        y = jnp.where(y >= 0, y, y * slope)
    return y


def ssh_forward_ref(params, x_nchw, out_channel):
    leaky = 0.1 if out_channel <= 64 else 0.0
    x = jnp.transpose(x_nchw, (0, 2, 3, 1))
    c3 = _ref_conv_bn(x, params["conv3X3"], "none", leaky)
    c51 = _ref_conv_bn(x, params["conv5X5_1"], "leaky", leaky)
    c5 = _ref_conv_bn(c51, params["conv5X5_2"], "none", leaky)
    c72 = _ref_conv_bn(c51, params["conv7X7_2"], "leaky", leaky)
    c7 = _ref_conv_bn(c72, params["conv7x7_3"], "none", leaky)
    out = jnp.maximum(jnp.concatenate([c3, c5, c7], axis=-1), 0.0)
    return jnp.transpose(out, (0, 3, 1, 2))


if __name__ == "__main__":
    N, C_IN, H, W = 2, 32, 16, 16
    C_OUT = 32  # <= 64 -> leaky slope 0.1 in the 5x5_1 / 7x7_2 branches

    key = jax.random.PRNGKey(0)
    kx, kp = jax.random.split(key)
    x = jax.random.normal(kx, (N, C_IN, H, W), jnp.float32)
    params = init_ssh_params(kp, C_IN, C_OUT)

    fwd = jax.jit(functools.partial(ssh_forward, out_channel=C_OUT))
    out = jax.block_until_ready(fwd(params, x))

    ref = jax.block_until_ready(ssh_forward_ref(params, x, C_OUT))
    assert out.shape == (N, C_OUT, H, W), out.shape
    max_err = float(jnp.max(jnp.abs(out - ref)))
    assert jnp.allclose(out, ref, rtol=1e-2, atol=1e-2), max_err

    print("KERNEL_OK")
</pallas_src>

<mosaic_0001>
module attributes {stable_mosaic.version = 11 : i64} {
  func.func @kernel(%arg0: i32, %arg1: memref<1x32x256xf32, #tpu.memory_space<vmem>>, %arg2: memref<288x24xbf16, #tpu.memory_space<vmem>>, %arg3: memref<1x24xf32, #tpu.memory_space<vmem>>, %arg4: memref<72x16xbf16, #tpu.memory_space<vmem>>, %arg5: memref<1x16xf32, #tpu.memory_space<vmem>>, %arg6: memref<72x8xbf16, #tpu.memory_space<vmem>>, %arg7: memref<1x8xf32, #tpu.memory_space<vmem>>, %arg8: memref<1x32x256xf32, #tpu.memory_space<vmem>>, %arg9: memref<18x18x32xf32, #tpu.memory_space<vmem>>, %arg10: memref<18x18x8xf32, #tpu.memory_space<vmem>>, %arg11: memref<256x288xbf16, #tpu.memory_space<vmem>>, %arg12: memref<256x72xbf16, #tpu.memory_space<vmem>>) attributes {dimension_semantics = [#tpu.dimension_semantics<parallel>], iteration_bounds = array<i64: 2>, scalar_prefetch = 0 : i64, scratch_operands = 4 : i64, tpu.core_type = #tpu.core_type<tc>, window_params = [{transform_indices = @transform_0, window_bounds = array<i64: 1, 32, 256>}, {pipeline_mode = #tpu.pipeline_mode<synchronous>, transform_indices = @transform_1, window_bounds = array<i64: 288, 24>}, {pipeline_mode = #tpu.pipeline_mode<synchronous>, transform_indices = @transform_2, window_bounds = array<i64: 1, 24>}, {pipeline_mode = #tpu.pipeline_mode<synchronous>, transform_indices = @transform_3, window_bounds = array<i64: 72, 16>}, {pipeline_mode = #tpu.pipeline_mode<synchronous>, transform_indices = @transform_4, window_bounds = array<i64: 1, 16>}, {pipeline_mode = #tpu.pipeline_mode<synchronous>, transform_indices = @transform_5, window_bounds = array<i64: 72, 8>}, {pipeline_mode = #tpu.pipeline_mode<synchronous>, transform_indices = @transform_6, window_bounds = array<i64: 1, 8>}, {transform_indices = @transform_7, window_bounds = array<i64: 1, 32, 256>}]} {
    %cst = arith.constant 0.000000e+00 : f32
    %0 = vector.broadcast %cst : f32 to vector<18x18x32xf32>
    %c0 = arith.constant 0 : index
    %c0_0 = arith.constant 0 : index
    %c0_1 = arith.constant 0 : index
    %1 = vector.load %arg9[%c0, %c0_0, %c0_1] : memref<18x18x32xf32, #tpu.memory_space<vmem>>, vector<18x18x32xf32>
    tpu.vector_store %arg9[%c0, %c0_0, %c0_1], %0 {strides = array<i32>} : memref<18x18x32xf32, #tpu.memory_space<vmem>>, vector<18x18x32xf32>,
    %c0_2 = arith.constant 0 : index
    %c0_3 = arith.constant 0 : index
    %c0_4 = arith.constant 0 : index
    %2 = vector.load %arg1[%c0_2, %c0_3, %c0_4] : memref<1x32x256xf32, #tpu.memory_space<vmem>>, vector<1x32x256xf32>
    %3 = vector.shape_cast %2 : vector<1x32x256xf32> to vector<32x256xf32>
    %4 = tpu.transpose %3, [1, 0] : vector<32x256xf32> -> vector<256x32xf32>
    %5 = vector.shape_cast %4 : vector<256x32xf32> to vector<16x16x32xf32>
    %c1 = arith.constant 1 : index
    %c1_5 = arith.constant 1 : index
    %c0_6 = arith.constant 0 : index
    %6 = vector.load %arg9[%c1, %c1_5, %c0_6] : memref<18x18x32xf32, #tpu.memory_space<vmem>>, vector<16x16x32xf32>
    tpu.vector_store %arg9[%c1, %c1_5, %c0_6], %5 {strides = array<i32>} : memref<18x18x32xf32, #tpu.memory_space<vmem>>, vector<16x16x32xf32>,
    %c0_7 = arith.constant 0 : index
    %c0_8 = arith.constant 0 : index
    %c0_9 = arith.constant 0 : index
    %7 = vector.load %arg9[%c0_7, %c0_8, %c0_9] : memref<18x18x32xf32, #tpu.memory_space<vmem>>, vector<16x16x32xf32>
    %8 = vector.shape_cast %7 : vector<16x16x32xf32> to vector<256x32xf32>
    %9 = arith.truncf %8 : vector<256x32xf32> to vector<256x32xbf16>
    %c0_10 = arith.constant 0 : index
    %c0_11 = arith.constant 0 : index
    %10 = vector.load %arg11[%c0_10, %c0_11] : memref<256x288xbf16, #tpu.memory_space<vmem>>, vector<256x32xbf16>
    tpu.vector_store %arg11[%c0_10, %c0_11], %9 {strides = array<i32>} : memref<256x288xbf16, #tpu.memory_space<vmem>>, vector<256x32xbf16>,
    %c0_12 = arith.constant 0 : index
    %c1_13 = arith.constant 1 : index
    %c0_14 = arith.constant 0 : index
    %11 = vector.load %arg9[%c0_12, %c1_13, %c0_14] : memref<18x18x32xf32, #tpu.memory_space<vmem>>, vector<16x16x32xf32>
    %12 = vector.shape_cast %11 : vector<16x16x32xf32> to vector<256x32xf32>
    %13 = arith.truncf %12 : vector<256x32xf32> to vector<256x32xbf16>
    %c0_15 = arith.constant 0 : index
    %c32 = arith.constant 32 : index
    %14 = vector.load %arg11[%c0_15, %c32] : memref<256x288xbf16, #tpu.memory_space<vmem>>, vector<256x32xbf16>
    tpu.vector_store %arg11[%c0_15, %c32], %13 {strides = array<i32>} : memref<256x288xbf16, #tpu.memory_space<vmem>>, vector<256x32xbf16>,
    %c0_16 = arith.constant 0 : index
    %c2 = arith.constant 2 : index
    %c0_17 = arith.constant 0 : index
    %15 = vector.load %arg9[%c0_16, %c2, %c0_17] : memref<18x18x32xf32, #tpu.memory_space<vmem>>, vector<16x16x32xf32>
    %16 = vector.shape_cast %15 : vector<16x16x32xf32> to vector<256x32xf32>
    %17 = arith.truncf %16 : vector<256x32xf32> to vector<256x32xbf16>
    %c0_18 = arith.constant 0 : index
    %c64 = arith.constant 64 : index
    %18 = vector.load %arg11[%c0_18, %c64] : memref<256x288xbf16, #tpu.memory_space<vmem>>, vector<256x32xbf16>
    tpu.vector_store %arg11[%c0_18, %c64], %17 {strides = array<i32>} : memref<256x288xbf16, #tpu.memory_space<vmem>>, vector<256x32xbf16>,
    %c1_19 = arith.constant 1 : index
    %c0_20 = arith.constant 0 : index
    %c0_21 = arith.constant 0 : index
    %19 = vector.load %arg9[%c1_19, %c0_20, %c0_21] : memref<18x18x32xf32, #tpu.memory_space<vmem>>, vector<16x16x32xf32>
    %20 = vector.shape_cast %19 : vector<16x16x32xf32> to vector<256x32xf32>
    %21 = arith.truncf %20 : vector<256x32xf32> to vector<256x32xbf16>
    %c0_22 = arith.constant 0 : index
    %c96 = arith.constant 96 : index
    %22 = vector.load %arg11[%c0_22, %c96] : memref<256x288xbf16, #tpu.memory_space<vmem>>, vector<256x32xbf16>
    tpu.vector_store %arg11[%c0_22, %c96], %21 {strides = array<i32>} : memref<256x288xbf16, #tpu.memory_space<vmem>>, vector<256x32xbf16>,
    %c1_23 = arith.constant 1 : index
    %c1_24 = arith.constant 1 : index
    %c0_25 = arith.constant 0 : index
    %23 = vector.load %arg9[%c1_23, %c1_24, %c0_25] : memref<18x18x32xf32, #tpu.memory_space<vmem>>, vector<16x16x32xf32>
    %24 = vector.shape_cast %23 : vector<16x16x32xf32> to vector<256x32xf32>
    %25 = arith.truncf %24 : vector<256x32xf32> to vector<256x32xbf16>
    %c0_26 = arith.constant 0 : index
    %c128 = arith.constant 128 : index
    %26 = vector.load %arg11[%c0_26, %c128] : memref<256x288xbf16, #tpu.memory_space<vmem>>, vector<256x32xbf16>
    tpu.vector_store %arg11[%c0_26, %c128], %25 {strides = array<i32>} : memref<256x288xbf16, #tpu.memory_space<vmem>>, vector<256x32xbf16>,
    %c1_27 = arith.constant 1 : index
    %c2_28 = arith.constant 2 : index
    %c0_29 = arith.constant 0 : index
    %27 = vector.load %arg9[%c1_27, %c2_28, %c0_29] : memref<18x18x32xf32, #tpu.memory_space<vmem>>, vector<16x16x32xf32>
    %28 = vector.shape_cast %27 : vector<16x16x32xf32> to vector<256x32xf32>
    %29 = arith.truncf %28 : vector<256x32xf32> to vector<256x32xbf16>
    %c0_30 = arith.constant 0 : index
    %c160 = arith.constant 160 : index
    %30 = vector.load %arg11[%c0_30, %c160] : memref<256x288xbf16, #tpu.memory_space<vmem>>, vector<256x32xbf16>
    tpu.vector_store %arg11[%c0_30, %c160], %29 {strides = array<i32>} : memref<256x288xbf16, #tpu.memory_space<vmem>>, vector<256x32xbf16>,
    %c2_31 = arith.constant 2 : index
    %c0_32 = arith.constant 0 : index
    %c0_33 = arith.constant 0 : index
    %31 = vector.load %arg9[%c2_31, %c0_32, %c0_33] : memref<18x18x32xf32, #tpu.memory_space<vmem>>, vector<16x16x32xf32>
    %32 = vector.shape_cast %31 : vector<16x16x32xf32> to vector<256x32xf32>
    %33 = arith.truncf %32 : vector<256x32xf32> to vector<256x32xbf16>
    %c0_34 = arith.constant 0 : index
    %c192 = arith.constant 192 : index
    %34 = vector.load %arg11[%c0_34, %c192] : memref<256x288xbf16, #tpu.memory_space<vmem>>, vector<256x32xbf16>
    tpu.vector_store %arg11[%c0_34, %c192], %33 {strides = array<i32>} : memref<256x288xbf16, #tpu.memory_space<vmem>>, vector<256x32xbf16>,
    %c2_35 = arith.constant 2 : index
    %c1_36 = arith.constant 1 : index
    %c0_37 = arith.constant 0 : index
    %35 = vector.load %arg9[%c2_35, %c1_36, %c0_37] : memref<18x18x32xf32, #tpu.memory_space<vmem>>, vector<16x16x32xf32>
    %36 = vector.shape_cast %35 : vector<16x16x32xf32> to vector<256x32xf32>
    %37 = arith.truncf %36 : vector<256x32xf32> to vector<256x32xbf16>
    %c0_38 = arith.constant 0 : index
    %c224 = arith.constant 224 : index
    %38 = vector.load %arg11[%c0_38, %c224] : memref<256x288xbf16, #tpu.memory_space<vmem>>, vector<256x32xbf16>
    tpu.vector_store %arg11[%c0_38, %c224], %37 {strides = array<i32>} : memref<256x288xbf16, #tpu.memory_space<vmem>>, vector<256x32xbf16>,
    %c2_39 = arith.constant 2 : index
    %c2_40 = arith.constant 2 : index
    %c0_41 = arith.constant 0 : index
    %39 = vector.load %arg9[%c2_39, %c2_40, %c0_41] : memref<18x18x32xf32, #tpu.memory_space<vmem>>, vector<16x16x32xf32>
    %40 = vector.shape_cast %39 : vector<16x16x32xf32> to vector<256x32xf32>
    %41 = arith.truncf %40 : vector<256x32xf32> to vector<256x32xbf16>
    %c0_42 = arith.constant 0 : index
    %c256 = arith.constant 256 : index
    %42 = vector.load %arg11[%c0_42, %c256] : memref<256x288xbf16, #tpu.memory_space<vmem>>, vector<256x32xbf16>
    tpu.vector_store %arg11[%c0_42, %c256], %41 {strides = array<i32>} : memref<256x288xbf16, #tpu.memory_space<vmem>>, vector<256x32xbf16>,
    %c0_43 = arith.constant 0 : index
    %c0_44 = arith.constant 0 : index
    %43 = vector.load %arg11[%c0_43, %c0_44] : memref<256x288xbf16, #tpu.memory_space<vmem>>, vector<256x288xbf16>
    %c0_45 = arith.constant 0 : index
    %c0_46 = arith.constant 0 : index
    %44 = vector.load %arg2[%c0_45, %c0_46] : memref<288x24xbf16, #tpu.memory_space<vmem>>, vector<288x24xbf16>
    %cst_47 = arith.constant dense<0.000000e+00> : vector<256x24xf32>
    %45 = tpu.matmul %43, %44, %cst_47 {dimension_numbers = #tpu.dot_dimension_numbers<[1], [0], [0], [1], [0, 0, 1, 1], [], []>} : vector<256x288xbf16>, vector<288x24xbf16>, vector<256x24xf32> -> vector<256x24xf32>
    %c0_48 = arith.constant 0 : index
    %c0_49 = arith.constant 0 : index
    %46 = vector.load %arg3[%c0_48, %c0_49] : memref<1x24xf32, #tpu.memory_space<vmem>>, vector<1x24xf32>
    %47 = vector.broadcast %46 : vector<1x24xf32> to vector<256x24xf32>
    %48 = arith.addf %45, %47 : vector<256x24xf32>
    %49 = vector.extract_strided_slice %48 {offsets = [0, 0], sizes = [256, 16], strides = [1, 1]} : vector<256x24xf32> to vector<256x16xf32>
    %cst_50 = arith.constant 0.000000e+00 : f32
    %50 = vector.broadcast %cst_50 : f32 to vector<256x16xf32>
    %51 = arith.maximumf %49, %50 : vector<256x16xf32>
    %52 = vector.extract_strided_slice %48 {offsets = [0, 16], sizes = [256, 8], strides = [1, 1]} : vector<256x24xf32> to vector<256x8xf32>
    %cst_51 = arith.constant 0.000000e+00 : f32
    %53 = vector.broadcast %cst_51 : f32 to vector<256x8xf32>
    %54 = arith.cmpf oge, %52, %53 : vector<256x8xf32>
    %cst_52 = arith.constant 1.000000e-01 : f32
    %55 = vector.broadcast %cst_52 : f32 to vector<256x8xf32>
    %56 = arith.mulf %52, %55 : vector<256x8xf32>
    %57 = arith.select %54, %52, %56 : vector<256x8xi1>, vector<256x8xf32>
    %cst_53 = arith.constant 0.000000e+00 : f32
    %58 = vector.broadcast %cst_53 : f32 to vector<18x18x8xf32>
    %c0_54 = arith.constant 0 : index
    %c0_55 = arith.constant 0 : index
    %c0_56 = arith.constant 0 : index
    %59 = vector.load %arg10[%c0_54, %c0_55, %c0_56] : memref<18x18x8xf32, #tpu.memory_space<vmem>>, vector<18x18x8xf32>
    tpu.vector_store %arg10[%c0_54, %c0_55, %c0_56], %58 {strides = array<i32>} : memref<18x18x8xf32, #tpu.memory_space<vmem>>, vector<18x18x8xf32>,
    %60 = vector.shape_cast %57 : vector<256x8xf32> to vector<16x16x8xf32>
    %c1_57 = arith.constant 1 : index
    %c1_58 = arith.constant 1 : index
    %c0_59 = arith.constant 0 : index
    %61 = vector.load %arg10[%c1_57, %c1_58, %c0_59] : memref<18x18x8xf32, #tpu.memory_space<vmem>>, vector<16x16x8xf32>
    tpu.vector_store %arg10[%c1_57, %c1_58, %c0_59], %60 {strides = array<i32>} : memref<18x18x8xf32, #tpu.memory_space<vmem>>, vector<16x16x8xf32>,
    %c0_60 = arith.constant 0 : index
    %c0_61 = arith.constant 0 : index
    %c0_62 = arith.constant 0 : index
    %62 = vector.load %arg10[%c0_60, %c0_61, %c0_62] : memref<18x18x8xf32, #tpu.memory_space<vmem>>, vector<16x16x8xf32>
    %63 = vector.shape_cast %62 : vector<16x16x8xf32> to vector<256x8xf32>
    %64 = arith.truncf %63 : vector<256x8xf32> to vector<256x8xbf16>
    %c0_63 = arith.constant 0 : index
    %c0_64 = arith.constant 0 : index
    %65 = vector.load %arg12[%c0_63, %c0_64] : memref<256x72xbf16, #tpu.memory_space<vmem>>, vector<256x8xbf16>
    tpu.vector_store %arg12[%c0_63, %c0_64], %64 {strides = array<i32>} : memref<256x72xbf16, #tpu.memory_space<vmem>>, vector<256x8xbf16>,
    %c0_65 = arith.constant 0 : index
    %c1_66 = arith.constant 1 : index
    %c0_67 = arith.constant 0 : index
    %66 = vector.load %arg10[%c0_65, %c1_66, %c0_67] : memref<18x18x8xf32, #tpu.memory_space<vmem>>, vector<16x16x8xf32>
    %67 = vector.shape_cast %66 : vector<16x16x8xf32> to vector<256x8xf32>
    %68 = arith.truncf %67 : vector<256x8xf32> to vector<256x8xbf16>
    %c0_68 = arith.constant 0 : index
    %c8 = arith.constant 8 : index
    %69 = vector.load %arg12[%c0_68, %c8] : memref<256x72xbf16, #tpu.memory_space<vmem>>, vector<256x8xbf16>
    tpu.vector_store %arg12[%c0_68, %c8], %68 {strides = array<i32>} : memref<256x72xbf16, #tpu.memory_space<vmem>>, vector<256x8xbf16>,
    %c0_69 = arith.constant 0 : index
    %c2_70 = arith.constant 2 : index
    %c0_71 = arith.constant 0 : index
    %70 = vector.load %arg10[%c0_69, %c2_70, %c0_71] : memref<18x18x8xf32, #tpu.memory_space<vmem>>, vector<16x16x8xf32>
    %71 = vector.shape_cast %70 : vector<16x16x8xf32> to vector<256x8xf32>
    %72 = arith.truncf %71 : vector<256x8xf32> to vector<256x8xbf16>
    %c0_72 = arith.constant 0 : index
    %c16 = arith.constant 16 : index
    %73 = vector.load %arg12[%c0_72, %c16] : memref<256x72xbf16, #tpu.memory_space<vmem>>, vector<256x8xbf16>
    tpu.vector_store %arg12[%c0_72, %c16], %72 {strides = array<i32>} : memref<256x72xbf16, #tpu.memory_space<vmem>>, vector<256x8xbf16>,
    %c1_73 = arith.constant 1 : index
    %c0_74 = arith.constant 0 : index
    %c0_75 = arith.constant 0 : index
    %74 = vector.load %arg10[%c1_73, %c0_74, %c0_75] : memref<18x18x8xf32, #tpu.memory_space<vmem>>, vector<16x16x8xf32>
    %75 = vector.shape_cast %74 : vector<16x16x8xf32> to vector<256x8xf32>
    %76 = arith.truncf %75 : vector<256x8xf32> to vector<256x8xbf16>
    %c0_76 = arith.constant 0 : index
    %c24 = arith.constant 24 : index
    %77 = vector.load %arg12[%c0_76, %c24] : memref<256x72xbf16, #tpu.memory_space<vmem>>, vector<256x8xbf16>
    tpu.vector_store %arg12[%c0_76, %c24], %76 {strides = array<i32>} : memref<256x72xbf16, #tpu.memory_space<vmem>>, vector<256x8xbf16>,
    %c1_77 = arith.constant 1 : index
    %c1_78 = arith.constant 1 : index
    %c0_79 = arith.constant 0 : index
    %78 = vector.load %arg10[%c1_77, %c1_78, %c0_79] : memref<18x18x8xf32, #tpu.memory_space<vmem>>, vector<16x16x8xf32>
    %79 = vector.shape_cast %78 : vector<16x16x8xf32> to vector<256x8xf32>
    %80 = arith.truncf %79 : vector<256x8xf32> to vector<256x8xbf16>
    %c0_80 = arith.constant 0 : index
    %c32_81 = arith.constant 32 : index
    %81 = vector.load %arg12[%c0_80, %c32_81] : memref<256x72xbf16, #tpu.memory_space<vmem>>, vector<256x8xbf16>
    tpu.vector_store %arg12[%c0_80, %c32_81], %80 {strides = array<i32>} : memref<256x72xbf16, #tpu.memory_space<vmem>>, vector<256x8xbf16>,
    %c1_82 = arith.constant 1 : index
    %c2_83 = arith.constant 2 : index
    %c0_84 = arith.constant 0 : index
    %82 = vector.load %arg10[%c1_82, %c2_83, %c0_84] : memref<18x18x8xf32, #tpu.memory_space<vmem>>, vector<16x16x8xf32>
    %83 = vector.shape_cast %82 : vector<16x16x8xf32> to vector<256x8xf32>
    %84 = arith.truncf %83 : vector<256x8xf32> to vector<256x8xbf16>
    %c0_85 = arith.constant 0 : index
    %c40 = arith.constant 40 : index
    %85 = vector.load %arg12[%c0_85, %c40] : memref<256x72xbf16, #tpu.memory_space<vmem>>, vector<256x8xbf16>
    tpu.vector_store %arg12[%c0_85, %c40], %84 {strides = array<i32>} : memref<256x72xbf16, #tpu.memory_space<vmem>>, vector<256x8xbf16>,
    %c2_86 = arith.constant 2 : index
    %c0_87 = arith.constant 0 : index
    %c0_88 = arith.constant 0 : index
    %86 = vector.load %arg10[%c2_86, %c0_87, %c0_88] : memref<18x18x8xf32, #tpu.memory_space<vmem>>, vector<16x16x8xf32>
    %87 = vector.shape_cast %86 : vector<16x16x8xf32> to vector<256x8xf32>
    %88 = arith.truncf %87 : vector<256x8xf32> to vector<256x8xbf16>
    %c0_89 = arith.constant 0 : index
    %c48 = arith.constant 48 : index
    %89 = vector.load %arg12[%c0_89, %c48] : memref<256x72xbf16, #tpu.memory_space<vmem>>, vector<256x8xbf16>
    tpu.vector_store %arg12[%c0_89, %c48], %88 {strides = array<i32>} : memref<256x72xbf16, #tpu.memory_space<vmem>>, vector<256x8xbf16>,
    %c2_90 = arith.constant 2 : index
    %c1_91 = arith.constant 1 : index
    %c0_92 = arith.constant 0 : index
    %90 = vector.load %arg10[%c2_90, %c1_91, %c0_92] : memref<18x18x8xf32, #tpu.memory_space<vmem>>, vector<16x16x8xf32>
    %91 = vector.shape_cast %90 : vector<16x16x8xf32> to vector<256x8xf32>
    %92 = arith.truncf %91 : vector<256x8xf32> to vector<256x8xbf16>
    %c0_93 = arith.constant 0 : index
    %c56 = arith.constant 56 : index
    %93 = vector.load %arg12[%c0_93, %c56] : memref<256x72xbf16, #tpu.memory_space<vmem>>, vector<256x8xbf16>
    tpu.vector_store %arg12[%c0_93, %c56], %92 {strides = array<i32>} : memref<256x72xbf16, #tpu.memory_space<vmem>>, vector<256x8xbf16>,
    %c2_94 = arith.constant 2 : index
    %c2_95 = arith.constant 2 : index
    %c0_96 = arith.constant 0 : index
    %94 = vector.load %arg10[%c2_94, %c2_95, %c0_96] : memref<18x18x8xf32, #tpu.memory_space<vmem>>, vector<16x16x8xf32>
    %95 = vector.shape_cast %94 : vector<16x16x8xf32> to vector<256x8xf32>
    %96 = arith.truncf %95 : vector<256x8xf32> to vector<256x8xbf16>
    %c0_97 = arith.constant 0 : index
    %c64_98 = arith.constant 64 : index
    %97 = vector.load %arg12[%c0_97, %c64_98] : memref<256x72xbf16, #tpu.memory_space<vmem>>, vector<256x8xbf16>
    tpu.vector_store %arg12[%c0_97, %c64_98], %96 {strides = array<i32>} : memref<256x72xbf16, #tpu.memory_space<vmem>>, vector<256x8xbf16>,
    %c0_99 = arith.constant 0 : index
    %c0_100 = arith.constant 0 : index
    %98 = vector.load %arg12[%c0_99, %c0_100] : memref<256x72xbf16, #tpu.memory_space<vmem>>, vector<256x72xbf16>
    %c0_101 = arith.constant 0 : index
    %c0_102 = arith.constant 0 : index
    %99 = vector.load %arg4[%c0_101, %c0_102] : memref<72x16xbf16, #tpu.memory_space<vmem>>, vector<72x16xbf16>
    %cst_103 = arith.constant dense<0.000000e+00> : vector<256x16xf32>
    %100 = tpu.matmul %98, %99, %cst_103 {dimension_numbers = #tpu.dot_dimension_numbers<[1], [0], [0], [1], [0, 0, 1, 1], [], []>} : vector<256x72xbf16>, vector<72x16xbf16>, vector<256x16xf32> -> vector<256x16xf32>
    %c0_104 = arith.constant 0 : index
    %c0_105 = arith.constant 0 : index
    %101 = vector.load %arg5[%c0_104, %c0_105] : memref<1x16xf32, #tpu.memory_space<vmem>>, vector<1x16xf32>
    %102 = vector.broadcast %101 : vector<1x16xf32> to vector<256x16xf32>
    %103 = arith.addf %100, %102 : vector<256x16xf32>
    %104 = vector.extract_strided_slice %103 {offsets = [0, 0], sizes = [256, 8], strides = [1, 1]} : vector<256x16xf32> to vector<256x8xf32>
    %cst_106 = arith.constant 0.000000e+00 : f32
    %105 = vector.broadcast %cst_106 : f32 to vector<256x8xf32>
    %106 = arith.maximumf %104, %105 : vector<256x8xf32>
    %107 = vector.extract_strided_slice %103 {offsets = [0, 8], sizes = [256, 8], strides = [1, 1]} : vector<256x16xf32> to vector<256x8xf32>
    %cst_107 = arith.constant 0.000000e+00 : f32
    %108 = vector.broadcast %cst_107 : f32 to vector<256x8xf32>
    %109 = arith.cmpf oge, %107, %108 : vector<256x8xf32>
    %cst_108 = arith.constant 1.000000e-01 : f32
    %110 = vector.broadcast %cst_108 : f32 to vector<256x8xf32>
    %111 = arith.mulf %107, %110 : vector<256x8xf32>
    %112 = arith.select %109, %107, %111 : vector<256x8xi1>, vector<256x8xf32>
    %113 = vector.shape_cast %112 : vector<256x8xf32> to vector<16x16x8xf32>
    %c1_109 = arith.constant 1 : index
    %c1_110 = arith.constant 1 : index
    %c0_111 = arith.constant 0 : index
    %114 = vector.load %arg10[%c1_109, %c1_110, %c0_111] : memref<18x18x8xf32, #tpu.memory_space<vmem>>, vector<16x16x8xf32>
    tpu.vector_store %arg10[%c1_109, %c1_110, %c0_111], %113 {strides = array<i32>} : memref<18x18x8xf32, #tpu.memory_space<vmem>>, vector<16x16x8xf32>,
    %c0_112 = arith.constant 0 : index
    %c0_113 = arith.constant 0 : index
    %c0_114 = arith.constant 0 : index
    %115 = vector.load %arg10[%c0_112, %c0_113, %c0_114] : memref<18x18x8xf32, #tpu.memory_space<vmem>>, vector<16x16x8xf32>
    %116 = vector.shape_cast %115 : vector<16x16x8xf32> to vector<256x8xf32>
    %117 = arith.truncf %116 : vector<256x8xf32> to vector<256x8xbf16>
    %c0_115 = arith.constant 0 : index
    %c0_116 = arith.constant 0 : index
    %118 = vector.load %arg12[%c0_115, %c0_116] : memref<256x72xbf16, #tpu.memory_space<vmem>>, vector<256x8xbf16>
    tpu.vector_store %arg12[%c0_115, %c0_116], %117 {strides = array<i32>} : memref<256x72xbf16, #tpu.memory_space<vmem>>, vector<256x8xbf16>,
    %c0_117 = arith.constant 0 : index
    %c1_118 = arith.constant 1 : index
    %c0_119 = arith.constant 0 : index
    %119 = vector.load %arg10[%c0_117, %c1_118, %c0_119] : memref<18x18x8xf32, #tpu.memory_space<vmem>>, vector<16x16x8xf32>
    %120 = vector.shape_cast %119 : vector<16x16x8xf32> to vector<256x8xf32>
    %121 = arith.truncf %120 : vector<256x8xf32> to vector<256x8xbf16>
    %c0_120 = arith.constant 0 : index
    %c8_121 = arith.constant 8 : index
    %122 = vector.load %arg12[%c0_120, %c8_121] : memref<256x72xbf16, #tpu.memory_space<vmem>>, vector<256x8xbf16>
    tpu.vector_store %arg12[%c0_120, %c8_121], %121 {strides = array<i32>} : memref<256x72xbf16, #tpu.memory_space<vmem>>, vector<256x8xbf16>,
    %c0_122 = arith.constant 0 : index
    %c2_123 = arith.constant 2 : index
    %c0_124 = arith.constant 0 : index
    %123 = vector.load %arg10[%c0_122, %c2_123, %c0_124] : memref<18x18x8xf32, #tpu.memory_space<vmem>>, vector<16x16x8xf32>
    %124 = vector.shape_cast %123 : vector<16x16x8xf32> to vector<256x8xf32>
    %125 = arith.truncf %124 : vector<256x8xf32> to vector<256x8xbf16>
    %c0_125 = arith.constant 0 : index
    %c16_126 = arith.constant 16 : index
    %126 = vector.load %arg12[%c0_125, %c16_126] : memref<256x72xbf16, #tpu.memory_space<vmem>>, vector<256x8xbf16>
    tpu.vector_store %arg12[%c0_125, %c16_126], %125 {strides = array<i32>} : memref<256x72xbf16, #tpu.memory_space<vmem>>, vector<256x8xbf16>,
    %c1_127 = arith.constant 1 : index
    %c0_128 = arith.constant 0 : index
    %c0_129 = arith.constant 0 : index
    %127 = vector.load %arg10[%c1_127, %c0_128, %c0_129] : memref<18x18x8xf32, #tpu.memory_space<vmem>>, vector<16x16x8xf32>
    %128 = vector.shape_cast %127 : vector<16x16x8xf32> to vector<256x8xf32>
    %129 = arith.truncf %128 : vector<256x8xf32> to vector<256x8xbf16>
    %c0_130 = arith.constant 0 : index
    %c24_131 = arith.constant 24 : index
    %130 = vector.load %arg12[%c0_130, %c24_131] : memref<256x72xbf16, #tpu.memory_space<vmem>>, vector<256x8xbf16>
    tpu.vector_store %arg12[%c0_130, %c24_131], %129 {strides = array<i32>} : memref<256x72xbf16, #tpu.memory_space<vmem>>, vector<256x8xbf16>,
    %c1_132 = arith.constant 1 : index
    %c1_133 = arith.constant 1 : index
    %c0_134 = arith.constant 0 : index
    %131 = vector.load %arg10[%c1_132, %c1_133, %c0_134] : memref<18x18x8xf32, #tpu.memory_space<vmem>>, vector<16x16x8xf32>
    %132 = vector.shape_cast %131 : vector<16x16x8xf32> to vector<256x8xf32>
    %133 = arith.truncf %132 : vector<256x8xf32> to vector<256x8xbf16>
    %c0_135 = arith.constant 0 : index
    %c32_136 = arith.constant 32 : index
    %134 = vector.load %arg12[%c0_135, %c32_136] : memref<256x72xbf16, #tpu.memory_space<vmem>>, vector<256x8xbf16>
    tpu.vector_store %arg12[%c0_135, %c32_136], %133 {strides = array<i32>} : memref<256x72xbf16, #tpu.memory_space<vmem>>, vector<256x8xbf16>,
    %c1_137 = arith.constant 1 : index
    %c2_138 = arith.constant 2 : index
    %c0_139 = arith.constant 0 : index
    %135 = vector.load %arg10[%c1_137, %c2_138, %c0_139] : memref<18x18x8xf32, #tpu.memory_space<vmem>>, vector<16x16x8xf32>
    %136 = vector.shape_cast %135 : vector<16x16x8xf32> to vector<256x8xf32>
    %137 = arith.truncf %136 : vector<256x8xf32> to vector<256x8xbf16>
    %c0_140 = arith.constant 0 : index
    %c40_141 = arith.constant 40 : index
    %138 = vector.load %arg12[%c0_140, %c40_141] : memref<256x72xbf16, #tpu.memory_space<vmem>>, vector<256x8xbf16>
    tpu.vector_store %arg12[%c0_140, %c40_141], %137 {strides = array<i32>} : memref<256x72xbf16, #tpu.memory_space<vmem>>, vector<256x8xbf16>,
    %c2_142 = arith.constant 2 : index
    %c0_143 = arith.constant 0 : index
    %c0_144 = arith.constant 0 : index
    %139 = vector.load %arg10[%c2_142, %c0_143, %c0_144] : memref<18x18x8xf32, #tpu.memory_space<vmem>>, vector<16x16x8xf32>
    %140 = vector.shape_cast %139 : vector<16x16x8xf32> to vector<256x8xf32>
    %141 = arith.truncf %140 : vector<256x8xf32> to vector<256x8xbf16>
    %c0_145 = arith.constant 0 : index
    %c48_146 = arith.constant 48 : index
    %142 = vector.load %arg12[%c0_145, %c48_146] : memref<256x72xbf16, #tpu.memory_space<vmem>>, vector<256x8xbf16>
    tpu.vector_store %arg12[%c0_145, %c48_146], %141 {strides = array<i32>} : memref<256x72xbf16, #tpu.memory_space<vmem>>, vector<256x8xbf16>,
    %c2_147 = arith.constant 2 : index
    %c1_148 = arith.constant 1 : index
    %c0_149 = arith.constant 0 : index
    %143 = vector.load %arg10[%c2_147, %c1_148, %c0_149] : memref<18x18x8xf32, #tpu.memory_space<vmem>>, vector<16x16x8xf32>
    %144 = vector.shape_cast %143 : vector<16x16x8xf32> to vector<256x8xf32>
    %145 = arith.truncf %144 : vector<256x8xf32> to vector<256x8xbf16>
    %c0_150 = arith.constant 0 : index
    %c56_151 = arith.constant 56 : index
    %146 = vector.load %arg12[%c0_150, %c56_151] : memref<256x72xbf16, #tpu.memory_space<vmem>>, vector<256x8xbf16>
    tpu.vector_store %arg12[%c0_150, %c56_151], %145 {strides = array<i32>} : memref<256x72xbf16, #tpu.memory_space<vmem>>, vector<256x8xbf16>,
    %c2_152 = arith.constant 2 : index
    %c2_153 = arith.constant 2 : index
    %c0_154 = arith.constant 0 : index
    %147 = vector.load %arg10[%c2_152, %c2_153, %c0_154] : memref<18x18x8xf32, #tpu.memory_space<vmem>>, vector<16x16x8xf32>
    %148 = vector.shape_cast %147 : vector<16x16x8xf32> to vector<256x8xf32>
    %149 = arith.truncf %148 : vector<256x8xf32> to vector<256x8xbf16>
    %c0_155 = arith.constant 0 : index
    %c64_156 = arith.constant 64 : index
    %150 = vector.load %arg12[%c0_155, %c64_156] : memref<256x72xbf16, #tpu.memory_space<vmem>>, vector<256x8xbf16>
    tpu.vector_store %arg12[%c0_155, %c64_156], %149 {strides = array<i32>} : memref<256x72xbf16, #tpu.memory_space<vmem>>, vector<256x8xbf16>,
    %c0_157 = arith.constant 0 : index
    %c0_158 = arith.constant 0 : index
    %151 = vector.load %arg12[%c0_157, %c0_158] : memref<256x72xbf16, #tpu.memory_space<vmem>>, vector<256x72xbf16>
    %c0_159 = arith.constant 0 : index
    %c0_160 = arith.constant 0 : index
    %152 = vector.load %arg6[%c0_159, %c0_160] : memref<72x8xbf16, #tpu.memory_space<vmem>>, vector<72x8xbf16>
    %cst_161 = arith.constant dense<0.000000e+00> : vector<256x8xf32>
    %153 = tpu.matmul %151, %152, %cst_161 {dimension_numbers = #tpu.dot_dimension_numbers<[1], [0], [0], [1], [0, 0, 1, 1], [], []>} : vector<256x72xbf16>, vector<72x8xbf16>, vector<256x8xf32> -> vector<256x8xf32>
    %c0_162 = arith.constant 0 : index
    %c0_163 = arith.constant 0 : index
    %154 = vector.load %arg7[%c0_162, %c0_163] : memref<1x8xf32, #tpu.memory_space<vmem>>, vector<1x8xf32>
    %155 = vector.broadcast %154 : vector<1x8xf32> to vector<256x8xf32>
    %156 = arith.addf %153, %155 : vector<256x8xf32>
    %cst_164 = arith.constant 0.000000e+00 : f32
    %157 = vector.broadcast %cst_164 : f32 to vector<256x8xf32>
    %158 = arith.maximumf %156, %157 : vector<256x8xf32>
    %159 = tpu.transpose %51, [1, 0] : vector<256x16xf32> -> vector<16x256xf32>
    %c0_165 = arith.constant 0 : index
    %c0_166 = arith.constant 0 : index
    %c0_167 = arith.constant 0 : index
    %160 = vector.load %arg8[%c0_165, %c0_166, %c0_167] : memref<1x32x256xf32, #tpu.memory_space<vmem>>, vector<1x16x256xf32>
    %161 = vector.shape_cast %160 : vector<1x16x256xf32> to vector<16x256xf32>
    %162 = vector.shape_cast %159 : vector<16x256xf32> to vector<1x16x256xf32>
    tpu.vector_store %arg8[%c0_165, %c0_166, %c0_167], %162 {strides = array<i32>} : memref<1x32x256xf32, #tpu.memory_space<vmem>>, vector<1x16x256xf32>,
    %163 = tpu.transpose %106, [1, 0] : vector<256x8xf32> -> vector<8x256xf32>
    %c0_168 = arith.constant 0 : index
    %c16_169 = arith.constant 16 : index
    %c0_170 = arith.constant 0 : index
    %164 = vector.load %arg8[%c0_168, %c16_169, %c0_170] : memref<1x32x256xf32, #tpu.memory_space<vmem>>, vector<1x8x256xf32>
    %165 = vector.shape_cast %164 : vector<1x8x256xf32> to vector<8x256xf32>
    %166 = vector.shape_cast %163 : vector<8x256xf32> to vector<1x8x256xf32>
    tpu.vector_store %arg8[%c0_168, %c16_169, %c0_170], %166 {strides = array<i32>} : memref<1x32x256xf32, #tpu.memory_space<vmem>>, vector<1x8x256xf32>,
    %167 = tpu.transpose %158, [1, 0] : vector<256x8xf32> -> vector<8x256xf32>
    %c0_171 = arith.constant 0 : index
    %c24_172 = arith.constant 24 : index
    %c0_173 = arith.constant 0 : index
    %168 = vector.load %arg8[%c0_171, %c24_172, %c0_173] : memref<1x32x256xf32, #tpu.memory_space<vmem>>, vector<1x8x256xf32>
    %169 = vector.shape_cast %168 : vector<1x8x256xf32> to vector<8x256xf32>
    %170 = vector.shape_cast %167 : vector<8x256xf32> to vector<1x8x256xf32>
    tpu.vector_store %arg8[%c0_171, %c24_172, %c0_173], %170 {strides = array<i32>} : memref<1x32x256xf32, #tpu.memory_space<vmem>>, vector<1x8x256xf32>,
    return
  }
  func.func @transform_0(%arg0: i32) -> (i32, i32, i32) {
    %c0_i32 = arith.constant 0 : i32
    %c0_i32_0 = arith.constant 0 : i32
    %c0_i32_1 = arith.constant 0 : i32
    return %arg0, %c0_i32, %c0_i32_0 : i32, i32, i32
  }
  func.func @transform_1(%arg0: i32) -> (i32, i32) {
    %c0_i32 = arith.constant 0 : i32
    %c0_i32_0 = arith.constant 0 : i32
    %c0_i32_1 = arith.constant 0 : i32
    return %c0_i32, %c0_i32_0 : i32, i32
  }
  func.func @transform_2(%arg0: i32) -> (i32, i32) {
    %c0_i32 = arith.constant 0 : i32
    %c0_i32_0 = arith.constant 0 : i32
    %c0_i32_1 = arith.constant 0 : i32
    return %c0_i32, %c0_i32_0 : i32, i32
  }
  func.func @transform_3(%arg0: i32) -> (i32, i32) {
    %c0_i32 = arith.constant 0 : i32
    %c0_i32_0 = arith.constant 0 : i32
    %c0_i32_1 = arith.constant 0 : i32
    return %c0_i32, %c0_i32_0 : i32, i32
  }
  func.func @transform_4(%arg0: i32) -> (i32, i32) {
    %c0_i32 = arith.constant 0 : i32
    %c0_i32_0 = arith.constant 0 : i32
    %c0_i32_1 = arith.constant 0 : i32
    return %c0_i32, %c0_i32_0 : i32, i32
  }
  func.func @transform_5(%arg0: i32) -> (i32, i32) {
    %c0_i32 = arith.constant 0 : i32
    %c0_i32_0 = arith.constant 0 : i32
    %c0_i32_1 = arith.constant 0 : i32
    return %c0_i32, %c0_i32_0 : i32, i32
  }
  func.func @transform_6(%arg0: i32) -> (i32, i32) {
    %c0_i32 = arith.constant 0 : i32
    %c0_i32_0 = arith.constant 0 : i32
    %c0_i32_1 = arith.constant 0 : i32
    return %c0_i32, %c0_i32_0 : i32, i32
  }
  func.func @transform_7(%arg0: i32) -> (i32, i32, i32) {
    %c0_i32 = arith.constant 0 : i32
    %c0_i32_0 = arith.constant 0 : i32
    %c0_i32_1 = arith.constant 0 : i32
    return %arg0, %c0_i32, %c0_i32_0 : i32, i32, i32
  }
}

</mosaic_0001>

<llo_original>
// kernel: ssh_forward.1
$region0: #{ssh_forward.1}
  #allocation0 [shape = 'u32[]', space=smem, size = 0x4, offset = 0x4, fixed_abs, tag = 'smem constant byte address 0x4 - core index']
  #allocation1 [shape = 'u32[144,128]{1,0:T(1,128)}', space=vmem, size = 0x12000, scoped, tag = 'internal scratch']
  #allocation2 [shape = 'f32[18,18,32]{2,1,0:T(8,128)}', space=vmem, size = 0x36000, scoped, tag = 'scratch operand']
  #allocation3 [shape = 'f32[18,18,8]{2,1,0:T(8,128)}', space=vmem, size = 0x36000, scoped, tag = 'scratch operand']
  #allocation4 [shape = 'bf16[256,288]{1,0:T(16,128)(2,1)}', space=vmem, size = 0x30000, scoped, tag = 'scratch operand']
  #allocation5 [shape = 'bf16[256,72]{1,0:T(16,128)(2,1)}', space=vmem, size = 0x10000, scoped, tag = 'scratch operand']
  %s0 = inlined_call_operand.vmem [shape: f32[2,32,256], index: 0, kind: input, shape index: {}]
  %s1 = inlined_call_operand.vmem [shape: bf16[288,24], index: 1, kind: input, shape index: {}]
  %s2 = inlined_call_operand.vmem [shape: f32[1,24], index: 2, kind: input, shape index: {}]
  %s3 = inlined_call_operand.vmem [shape: bf16[72,16], index: 3, kind: input, shape index: {}]
  %s4 = inlined_call_operand.vmem [shape: f32[1,16], index: 4, kind: input, shape index: {}]
  %s5 = inlined_call_operand.vmem [shape: bf16[72,8], index: 5, kind: input, shape index: {}]
  %s6 = inlined_call_operand.vmem [shape: f32[1,8], index: 6, kind: input, shape index: {}]
  %s7 = inlined_call_operand.vmem [shape: f32[2,32,256], index: 7, kind: output, shape index: {}]
  %s8 = sld [smem:[#allocation0]]
  $region61: #{ssh_forward.1} parent=0
    _
  %s10 = ssub.s32 1, %s8
  %s11 = scalar_select 0, %s10, %s8
  loop: start=0, step=1, limit=4
  $region2: #{ssh_forward.1} parent=0 // loop_pre_header
    _
  $region3: #{ssh_forward.1} parent=0 // loop_header
    %s13 = sphi 0, %s17
    %p14 = scmp.ge.s32.totalorder %s13, 4
    %s23 = sphi 0, %s25
    %s26 = sphi 0, %s23
    %s27 = sphi 0, %s26
    %s43 = sphi 0, %s27
    %s47 = sphi 0, %s47
    %s49 = sphi 0, %s47
    %s50 = sphi 0, %s49
    %s64 = sphi 0, %s50
    %s68 = sphi 0, %s68
    %s70 = sphi 0, %s68
    %s71 = sphi 0, %s70
    %s85 = sphi 0, %s71
    %s89 = sphi 0, %s89
    %s91 = sphi 0, %s89
    %s92 = sphi 0, %s91
    %s106 = sphi 0, %s92
    %s110 = sphi 0, %s110
    %s112 = sphi 0, %s110
    %s113 = sphi 0, %s112
    %s127 = sphi 0, %s113
    %s131 = sphi 0, %s131
    %s133 = sphi 0, %s131
    %s134 = sphi 0, %s133
    %s148 = sphi 0, %s134
    %s152 = sphi 0, %s152
    %s154 = sphi 0, %s152
    %s155 = sphi 0, %s154
    %s169 = sphi 0, %s155
    %s175 = sphi 0, %s177
    %s178 = sphi 0, %s175
    %s179 = sphi 0, %s178
    %s195 = sphi 0, %s179
  $region4: #{ssh_forward.1} parent=0 // loop_header_branch
    %16 = sbr.rel (%p14) target = $region8
  $region5: #{ssh_forward.1} parent=0 // loop_body
    %s18 = ssub.s32 %s13, 1
    %s19 = ssub.s32 %s13, 2
    %s20 = sadd.s32 %s13, 1
    %s21 = ssub.s32 %s13, %s20
    %p22 = scmp.eq.s32.totalorder %s21, 0
    %s24 = sadd.s32 %s23, 1
    %s25 = scalar_select %p22, %s23, %s24
    %p28 = pneg %p22
    %p29 = scmp.eq.s32.totalorder %s13, 1
    %p30 = por %p28, %p29
    %p31 = scmp.ne.s32.totalorder %s23, %s26
    %p32 = scmp.eq.s32.totalorder %s13, 0
    %p33 = por %p31, %p32
    %p34 = scmp.ne.s32.totalorder %s23, %s26
    %p35 = scmp.eq.s32.totalorder %s18, 1
    %p36 = por %p34, %p35
    %p37 = scmp.ne.s32.totalorder %s26, %s27
    %p38 = scmp.eq.s32.totalorder %s18, 0
    %p39 = por %p37, %p38
    %p40 = scmp.ne.s32.totalorder %s26, %s27
    %p41 = scmp.eq.s32.totalorder %s19, 1
    %p42 = por %p40, %p41
    %p44 = scmp.ne.s32.totalorder %s27, %s43
    %p45 = scmp.eq.s32.totalorder %s19, 0
    %p46 = por %p44, %p45
    %s48 = sadd.s32 %s47, 1
    %p51 = scmp.eq.s32.totalorder %s13, 1
    %p52 = scmp.ne.s32.totalorder %s47, %s49
    %p53 = scmp.eq.s32.totalorder %s13, 0
    %p54 = por %p52, %p53
    %p55 = scmp.ne.s32.totalorder %s47, %s49
    %p56 = scmp.eq.s32.totalorder %s18, 1
    %p57 = por %p55, %p56
    %p58 = scmp.ne.s32.totalorder %s49, %s50
    %p59 = scmp.eq.s32.totalorder %s18, 0
    %p60 = por %p58, %p59
    %p61 = scmp.ne.s32.totalorder %s49, %s50
    %p62 = scmp.eq.s32.totalorder %s19, 1
    %p63 = por %p61, %p62
    %p65 = scmp.ne.s32.totalorder %s50, %s64
    %p66 = scmp.eq.s32.totalorder %s19, 0
    %p67 = por %p65, %p66
    %s69 = sadd.s32 %s68, 1
    %p72 = scmp.eq.s32.totalorder %s13, 1
    %p73 = scmp.ne.s32.totalorder %s68, %s70
    %p74 = scmp.eq.s32.totalorder %s13, 0
    %p75 = por %p73, %p74
    %p76 = scmp.ne.s32.totalorder %s68, %s70
    %p77 = scmp.eq.s32.totalorder %s18, 1
    %p78 = por %p76, %p77
    %p79 = scmp.ne.s32.totalorder %s70, %s71
    %p80 = scmp.eq.s32.totalorder %s18, 0
    %p81 = por %p79, %p80
    %p82 = scmp.ne.s32.totalorder %s70, %s71
    %p83 = scmp.eq.s32.totalorder %s19, 1
    %p84 = por %p82, %p83
    %p86 = scmp.ne.s32.totalorder %s71, %s85
    %p87 = scmp.eq.s32.totalorder %s19, 0
    %p88 = por %p86, %p87
    %s90 = sadd.s32 %s89, 1
    %p93 = scmp.eq.s32.totalorder %s13, 1
    %p94 = scmp.ne.s32.totalorder %s89, %s91
    %p95 = scmp.eq.s32.totalorder %s13, 0
    %p96 = por %p94, %p95
    %p97 = scmp.ne.s32.totalorder %s89, %s91
    %p98 = scmp.eq.s32.totalorder %s18, 1
    %p99 = por %p97, %p98
    %p100 = scmp.ne.s32.totalorder %s91, %s92
    %p101 = scmp.eq.s32.totalorder %s18, 0
    %p102 = por %p100, %p101
    %p103 = scmp.ne.s32.totalorder %s91, %s92
    %p104 = scmp.eq.s32.totalorder %s19, 1
    %p105 = por %p103, %p104
    %p107 = scmp.ne.s32.totalorder %s92, %s106
    %p108 = scmp.eq.s32.totalorder %s19, 0
    %p109 = por %p107, %p108
    %s111 = sadd.s32 %s110, 1
    %p114 = scmp.eq.s32.totalorder %s13, 1
    %p115 = scmp.ne.s32.totalorder %s110, %s112
    %p116 = scmp.eq.s32.totalorder %s13, 0
    %p117 = por %p115, %p116
    %p118 = scmp.ne.s32.totalorder %s110, %s112
    %p119 = scmp.eq.s32.totalorder %s18, 1
    %p120 = por %p118, %p119
    %p121 = scmp.ne.s32.totalorder %s112, %s113
    %p122 = scmp.eq.s32.totalorder %s18, 0
    %p123 = por %p121, %p122
    %p124 = scmp.ne.s32.totalorder %s112, %s113
    %p125 = scmp.eq.s32.totalorder %s19, 1
    %p126 = por %p124, %p125
    %p128 = scmp.ne.s32.totalorder %s113, %s127
    %p129 = scmp.eq.s32.totalorder %s19, 0
    %p130 = por %p128, %p129
    %s132 = sadd.s32 %s131, 1
    %p135 = scmp.eq.s32.totalorder %s13, 1
    %p136 = scmp.ne.s32.totalorder %s131, %s133
    %p137 = scmp.eq.s32.totalorder %s13, 0
    %p138 = por %p136, %p137
    %p139 = scmp.ne.s32.totalorder %s131, %s133
    %p140 = scmp.eq.s32.totalorder %s18, 1
    %p141 = por %p139, %p140
    %p142 = scmp.ne.s32.totalorder %s133, %s134
    %p143 = scmp.eq.s32.totalorder %s18, 0
    %p144 = por %p142, %p143
    %p145 = scmp.ne.s32.totalorder %s133, %s134
    %p146 = scmp.eq.s32.totalorder %s19, 1
    %p147 = por %p145, %p146
    %p149 = scmp.ne.s32.totalorder %s134, %s148
    %p150 = scmp.eq.s32.totalorder %s19, 0
    %p151 = por %p149, %p150
    %s153 = sadd.s32 %s152, 1
    %p156 = scmp.eq.s32.totalorder %s13, 1
    %p157 = scmp.ne.s32.totalorder %s152, %s154
    %p158 = scmp.eq.s32.totalorder %s13, 0
    %p159 = por %p157, %p158
    %p160 = scmp.ne.s32.totalorder %s152, %s154
    %p161 = scmp.eq.s32.totalorder %s18, 1
    %p162 = por %p160, %p161
    %p163 = scmp.ne.s32.totalorder %s154, %s155
    %p164 = scmp.eq.s32.totalorder %s18, 0
    %p165 = por %p163, %p164
    %p166 = scmp.ne.s32.totalorder %s154, %s155
    %p167 = scmp.eq.s32.totalorder %s19, 1
    %p168 = por %p166, %p167
    %p170 = scmp.ne.s32.totalorder %s155, %s169
    %p171 = scmp.eq.s32.totalorder %s19, 0
    %p172 = por %p170, %p171
    %s173 = ssub.s32 %s13, %s20
    %p174 = scmp.eq.s32.totalorder %s173, 0
    %s176 = sadd.s32 %s175, 1
    %s177 = scalar_select %p174, %s175, %s176
    %p180 = pneg %p174
    %p181 = scmp.eq.s32.totalorder %s13, 1
    %p182 = por %p180, %p181
    %p183 = scmp.ne.s32.totalorder %s175, %s178
    %p184 = scmp.eq.s32.totalorder %s13, 0
    %p185 = por %p183, %p184
    %p186 = scmp.ne.s32.totalorder %s175, %s178
    %p187 = scmp.eq.s32.totalorder %s18, 1
    %p188 = por %p186, %p187
    %p189 = scmp.ne.s32.totalorder %s178, %s179
    %p190 = scmp.eq.s32.totalorder %s18, 0
    %p191 = por %p189, %p190
    %p192 = scmp.ne.s32.totalorder %s178, %s179
    %p193 = scmp.eq.s32.totalorder %s19, 1
    %p194 = por %p192, %p193
    %p196 = scmp.ne.s32.totalorder %s179, %s195
    %p197 = scmp.eq.s32.totalorder %s19, 0
    %p198 = por %p196, %p197
    %p199 = scmp.le.s32.totalorder 1, %s13
    %p200 = scmp.lt.s32.totalorder %s13, 3
    %p201 = pnand %p199, %p200
    %p202 = pneg %p201
    // Predicated region
    $region9: #{ssh_forward.1} parent=5 // pred_check
      _
    $region10: #{ssh_forward.1} parent=5 // pred_check_branch
      %204 = sbr.rel (%p201) target = $region12
    $region11: #{ssh_forward.1} parent=5 // pred_region
      %s205 = ssub.s32 %s13, 1
      // Predicated region
      $region13: #{ssh_forward.1} parent=11 // pred_check
        %p206 = pneg %p60
      $region14: #{ssh_forward.1} parent=11 // pred_check_branch
        %208 = sbr.rel (%p206) target = $region16
      $region15: #{ssh_forward.1} parent=11 // pred_region
        _
      $region16: #{ssh_forward.1} parent=11 // pred_fallthru
        _
      // Predicated region
      $region17: #{ssh_forward.1} parent=11 // pred_check
        %p209 = pneg %p81
      $region18: #{ssh_forward.1} parent=11 // pred_check_branch
        %211 = sbr.rel (%p209) target = $region20
      $region19: #{ssh_forward.1} parent=11 // pred_region
        _
      $region20: #{ssh_forward.1} parent=11 // pred_fallthru
        _
      // Predicated region
      $region21: #{ssh_forward.1} parent=11 // pred_check
        %p212 = pneg %p102
      $region22: #{ssh_forward.1} parent=11 // pred_check_branch
        %214 = sbr.rel (%p212) target = $region24
      $region23: #{ssh_forward.1} parent=11 // pred_region
        _
      $region24: #{ssh_forward.1} parent=11 // pred_fallthru
        _
      // Predicated region
      $region25: #{ssh_forward.1} parent=11 // pred_check
        %p215 = pneg %p123
      $region26: #{ssh_forward.1} parent=11 // pred_check_branch
        %217 = sbr.rel (%p215) target = $region28
      $region27: #{ssh_forward.1} parent=11 // pred_region
        _
      $region28: #{ssh_forward.1} parent=11 // pred_fallthru
        _
      // Predicated region
      $region29: #{ssh_forward.1} parent=11 // pred_check
        %p218 = pneg %p144
      $region30: #{ssh_forward.1} parent=11 // pred_check_branch
        %220 = sbr.rel (%p218) target = $region32
      $region31: #{ssh_forward.1} parent=11 // pred_region
        _
      $region32: #{ssh_forward.1} parent=11 // pred_fallthru
        _
      // Predicated region
      $region33: #{ssh_forward.1} parent=11 // pred_check
        %p221 = pneg %p165
      $region34: #{ssh_forward.1} parent=11 // pred_check_branch
        %223 = sbr.rel (%p221) target = $region36
      $region35: #{ssh_forward.1} parent=11 // pred_region
        _
      $region36: #{ssh_forward.1} parent=11 // pred_fallthru
        _
    $region12: #{ssh_forward.1} parent=5 // pred_fallthru
      _
    %p224 = scmp.lt.s32.totalorder %s13, 2
    // Predicated region
    $region37: #{ssh_forward.1} parent=5 // pred_check
      %p225 = pneg %p224
    $region38: #{ssh_forward.1} parent=5 // pred_check_branch
      %227 = sbr.rel (%p225) target = $region40
    $region39: #{ssh_forward.1} parent=5 // pred_region
      // Predicated region
      $region41: #{ssh_forward.1} parent=39 // pred_check
        %p228 = pneg %p33
      $region42: #{ssh_forward.1} parent=39 // pred_check_branch
        %230 = sbr.rel (%p228) target = $region44
      $region43: #{ssh_forward.1} parent=39 // pred_region
        %p231 = scmp.lt.s32.totalorder %s13, 1
        %s232 = scalar_select %p231, %s13, 1
        %s233 = smul.addr %s232, 8
        %s234 = smul.addr %s233, 8
        %s235 = scalar_lea.vmem %s0, %s234
      $region44: #{ssh_forward.1} parent=39 // pred_fallthru
        _
    $region40: #{ssh_forward.1} parent=5 // pred_fallthru
      _
    %p236 = scmp.le.s32.totalorder 1, %s13
    %p237 = scmp.lt.s32.totalorder %s13, 3
    %p238 = pnand %p236, %p237
    %p239 = pneg %p238
    // Predicated region
    $region45: #{ssh_forward.1} parent=5 // pred_check
      _
    $region46: #{ssh_forward.1} parent=5 // pred_check_branch
      %241 = sbr.rel (%p238) target = $region48
    $region47: #{ssh_forward.1} parent=5 // pred_region
      %s242 = ssub.s32 %s13, 1
      %p243 = scmp.lt.s32.totalorder %s18, 1
      %s244 = scalar_select %p243, %s18, 1
      %s245 = smul.addr %s244, 8
      %s246 = smul.addr %s245, 8
      %s247 = scalar_lea.vmem %s0, %s246
      %p248 = pneg %p39
      %p249 = pneg %p36
      %p250 = pneg %p60
      %p251 = pneg %p57
      %p252 = pneg %p81
      %p253 = pneg %p78
      %p254 = pneg %p102
      %p255 = pneg %p99
      %p256 = pneg %p123
      %p257 = pneg %p120
      %p258 = pneg %p144
      %p259 = pneg %p141
      %p260 = pneg %p165
      %p261 = pneg %p162
      %p262 = pneg %p191
      %p263 = pneg %p188
      %p264 = scmp.lt.s32.totalorder %s18, 1
      %s265 = scalar_select %p264, %s18, 1
      %s266 = smul.addr %s265, 8
      %s267 = smul.addr %s266, 8
      %s268 = scalar_lea.vmem %s7, %s267
      %p269 = scmp.lt.s32.totalorder %s18, 1
      %s270 = scalar_select %p269, %s18, 1
      %s271 = smul.addr %s270, 8
      %s272 = smul.addr %s271, 8
      %s273 = scalar_lea.vmem %s0, %s272
      %p274 = scmp.lt.s32.totalorder %s18, 1
      %s275 = scalar_select %p274, %s18, 1
      %s276 = smul.addr %s275, 8
      %s277 = smul.addr %s276, 8
      %s278 = scalar_lea.vmem %s7, %s277
      %vm280 = vcmask 261120
      %281 = vst.msk [vmem:[#allocation2] sm:$0xff] %vm280, 0.0
      %282 = vst.msk [vmem:[#allocation2 + $0x8] sm:$0xff] %vm280, 0.0
      %vm283 = vcmask 254976
      %284 = vst.msk [vmem:[#allocation2 + $0x10] sm:$0x3] %vm283, 0.0
      %285 = vst.msk [vmem:[#allocation2 + $0x18] sm:$0xff] %vm280, 0.0
      %286 = vst.msk [vmem:[#allocation2 + $0x20] sm:$0xff] %vm280, 0.0
      %287 = vst.msk [vmem:[#allocation2 + $0x28] sm:$0x3] %vm283, 0.0
      %288 = vst.msk [vmem:[#allocation2 + $0x30] sm:$0xff] %vm280, 0.0
      %289 = vst.msk [vmem:[#allocation2 + $0x38] sm:$0xff] %vm280, 0.0
      %290 = vst.msk [vmem:[#allocation2 + $0x40] sm:$0x3] %vm283, 0.0
      %291 = vst.msk [vmem:[#allocation2 + $0x48] sm:$0xff] %vm280, 0.0
      %292 = vst.msk [vmem:[#allocation2 + $0x50] sm:$0xff] %vm280, 0.0
      %293 = vst.msk [vmem:[#allocation2 + $0x58] sm:$0x3] %vm283, 0.0
      %294 = vst.msk [vmem:[#allocation2 + $0x60] sm:$0xff] %vm280, 0.0
      %295 = vst.msk [vmem:[#allocation2 + $0x68] sm:$0xff] %vm280, 0.0
      %296 = vst.msk [vmem:[#allocation2 + $0x70] sm:$0x3] %vm283, 0.0
      %297 = vst.msk [vmem:[#allocation2 + $0x78] sm:$0xff] %vm280, 0.0
      %298 = vst.msk [vmem:[#allocation2 + $0x80] sm:$0xff] %vm280, 0.0
      %299 = vst.msk [vmem:[#allocation2 + $0x88] sm:$0x3] %vm283, 0.0
      %300 = vst.msk [vmem:[#allocation2 + $0x90] sm:$0xff] %vm280, 0.0
      %301 = vst.msk [vmem:[#allocation2 + $0x98] sm:$0xff] %vm280, 0.0
      %302 = vst.msk [vmem:[#allocation2 + $0xa0] sm:$0x3] %vm283, 0.0
      %303 = vst.msk [vmem:[#allocation2 + $0xa8] sm:$0xff] %vm280, 0.0
      %304 = vst.msk [vmem:[#allocation2 + $0xb0] sm:$0xff] %vm280, 0.0
      %305 = vst.msk [vmem:[#allocation2 + $0xb8] sm:$0x3] %vm283, 0.0
      %306 = vst.msk [vmem:[#allocation2 + $0xc0] sm:$0xff] %vm280, 0.0
      %307 = vst.msk [vmem:[#allocation2 + $0xc8] sm:$0xff] %vm280, 0.0
      %308 = vst.msk [vmem:[#allocation2 + $0xd0] sm:$0x3] %vm283, 0.0
      %309 = vst.msk [vmem:[#allocation2 + $0xd8] sm:$0xff] %vm280, 0.0
      %310 = vst.msk [vmem:[#allocation2 + $0xe0] sm:$0xff] %vm280, 0.0
      %311 = vst.msk [vmem:[#allocation2 + $0xe8] sm:$0x3] %vm283, 0.0
      %312 = vst.msk [vmem:[#allocation2 + $0xf0] sm:$0xff] %vm280, 0.0
      %313 = vst.msk [vmem:[#allocation2 + $0xf8] sm:$0xff] %vm280, 0.0
      %314 = vst.msk [vmem:[#allocation2 + $0x100] sm:$0x3] %vm283, 0.0
      %315 = vst.msk [vmem:[#allocation2 + $0x108] sm:$0xff] %vm280, 0.0
      %316 = vst.msk [vmem:[#allocation2 + $0x110] sm:$0xff] %vm280, 0.0
      %317 = vst.msk [vmem:[#allocation2 + $0x118] sm:$0x3] %vm283, 0.0
      %318 = vst.msk [vmem:[#allocation2 + $0x120] sm:$0xff] %vm280, 0.0
      %319 = vst.msk [vmem:[#allocation2 + $0x128] sm:$0xff] %vm280, 0.0
      %320 = vst.msk [vmem:[#allocation2 + $0x130] sm:$0x3] %vm283, 0.0
      %321 = vst.msk [vmem:[#allocation2 + $0x138] sm:$0xff] %vm280, 0.0
      %322 = vst.msk [vmem:[#allocation2 + $0x140] sm:$0xff] %vm280, 0.0
      %323 = vst.msk [vmem:[#allocation2 + $0x148] sm:$0x3] %vm283, 0.0
      %324 = vst.msk [vmem:[#allocation2 + $0x150] sm:$0xff] %vm280, 0.0
      %325 = vst.msk [vmem:[#allocation2 + $0x158] sm:$0xff] %vm280, 0.0
      %326 = vst.msk [vmem:[#allocation2 + $0x160] sm:$0x3] %vm283, 0.0
      %327 = vst.msk [vmem:[#allocation2 + $0x168] sm:$0xff] %vm280, 0.0
      %328 = vst.msk [vmem:[#allocation2 + $0x170] sm:$0xff] %vm280, 0.0
      %329 = vst.msk [vmem:[#allocation2 + $0x178] sm:$0x3] %vm283, 0.0
      %330 = vst.msk [vmem:[#allocation2 + $0x180] sm:$0xff] %vm280, 0.0
      %331 = vst.msk [vmem:[#allocation2 + $0x188] sm:$0xff] %vm280, 0.0
      %332 = vst.msk [vmem:[#allocation2 + $0x190] sm:$0x3] %vm283, 0.0
      %333 = vst.msk [vmem:[#allocation2 + $0x198] sm:$0xff] %vm280, 0.0
      %334 = vst.msk [vmem:[#allocation2 + $0x1a0] sm:$0xff] %vm280, 0.0
      %335 = vst.msk [vmem:[#allocation2 + $0x1a8] sm:$0x3] %vm283, 0.0
      %v336 = vld [vmem:[%s273] sm:$0xff]
      %v337 = vld [vmem:[%s273 + $0x8] sm:$0xff]
      %v338 = vld [vmem:[%s273 + $0x10] sm:$0xff]
      %v339 = vld [vmem:[%s273 + $0x18] sm:$0xff]
      %v340 = vld [vmem:[%s273 + $0x20] sm:$0xff]
      %v341 = vld [vmem:[%s273 + $0x28] sm:$0xff]
      %v342 = vld [vmem:[%s273 + $0x30] sm:$0xff]
      %v343 = vld [vmem:[%s273 + $0x38] sm:$0xff]
      %344 = vxpose.xlu0.b32.start [1/16] %v336, 128
      %345 = vxpose.xlu0.b32.cont [2/16] %v338, 128
      %346 = vxpose.xlu0.b32.cont [3/16] %v340, 128
      %347 = vxpose.xlu0.b32.cont [4/16] %v342, 128
      %348 = vxpose.xlu0.b32.cont [5/16] 0.0, 128
      %349 = vxpose.xlu0.b32.cont [6/16] 0.0, 128
      %350 = vxpose.xlu0.b32.cont [7/16] 0.0, 128
      %351 = vxpose.xlu0.b32.cont [8/16] 0.0, 128
      %352 = vxpose.xlu0.b32.cont [9/16] 0.0, 128
      %353 = vxpose.xlu0.b32.cont [10/16] 0.0, 128
      %354 = vxpose.xlu0.b32.cont [11/16] 0.0, 128
      %355 = vxpose.xlu0.b32.cont [12/16] 0.0, 128
      %356 = vxpose.xlu0.b32.cont [13/16] 0.0, 128
      %357 = vxpose.xlu0.b32.cont [14/16] 0.0, 128
      %358 = vxpose.xlu0.b32.cont [15/16] 0.0, 128
      %359 = vxpose.xlu0.b32.end [16/16] 0.0, 128
      %v360 = vpop.trf.xlu0
      %v361 = vpop.trf.xlu0
      %v362 = vpop.trf.xlu0
      %v363 = vpop.trf.xlu0
      %v364 = vpop.trf.xlu0
      %v365 = vpop.trf.xlu0
      %v366 = vpop.trf.xlu0
      %v367 = vpop.trf.xlu0
      %v368 = vpop.trf.xlu0
      %v369 = vpop.trf.xlu0
      %v370 = vpop.trf.xlu0
      %v371 = vpop.trf.xlu0
      %v372 = vpop.trf.xlu0
      %v373 = vpop.trf.xlu0
      %v374 = vpop.trf.xlu0
      %v375 = vpop.trf.xlu0
      %376 = vxpose.xlu0.b32.start [1/16] %v337, 128
      %377 = vxpose.xlu0.b32.cont [2/16] %v339, 128
      %378 = vxpose.xlu0.b32.cont [3/16] %v341, 128
      %379 = vxpose.xlu0.b32.cont [4/16] %v343, 128
      %380 = vxpose.xlu0.b32.cont [5/16] 0.0, 128
      %381 = vxpose.xlu0.b32.cont [6/16] 0.0, 128
      %382 = vxpose.xlu0.b32.cont [7/16] 0.0, 128
      %383 = vxpose.xlu0.b32.cont [8/16] 0.0, 128
      %384 = vxpose.xlu0.b32.cont [9/16] 0.0, 128
      %385 = vxpose.xlu0.b32.cont [10/16] 0.0, 128
      %386 = vxpose.xlu0.b32.cont [11/16] 0.0, 128
      %387 = vxpose.xlu0.b32.cont [12/16] 0.0, 128
      %388 = vxpose.xlu0.b32.cont [13/16] 0.0, 128
      %389 = vxpose.xlu0.b32.cont [14/16] 0.0, 128
      %390 = vxpose.xlu0.b32.cont [15/16] 0.0, 128
      %391 = vxpose.xlu0.b32.end [16/16] 0.0, 128
      %v392 = vpop.trf.xlu0
      %v393 = vpop.trf.xlu0
      %v394 = vpop.trf.xlu0
      %v395 = vpop.trf.xlu0
      %v396 = vpop.trf.xlu0
      %v397 = vpop.trf.xlu0
      %v398 = vpop.trf.xlu0
      %v399 = vpop.trf.xlu0
      %v400 = vpop.trf.xlu0
      %v401 = vpop.trf.xlu0
      %v402 = vpop.trf.xlu0
      %v403 = vpop.trf.xlu0
      %v404 = vpop.trf.xlu0
      %v405 = vpop.trf.xlu0
      %v406 = vpop.trf.xlu0
      %v407 = vpop.trf.xlu0
      %s408 = scalar_lea.vmem [#allocation2], 24
      %409 = vst.msk [vmem:[%s408 + $0x1] sm:$0xff] %vm280, %v360
      %410 = vst.msk [vmem:[%s408 + $0x9] sm:$0xff] %vm280, %v361
      %411 = vst.msk [vmem:[%s408 + $0x19] sm:$0xff] %vm280, %v362
      %412 = vst.msk [vmem:[%s408 + $0x21] sm:$0xff] %vm280, %v363
      %413 = vst.msk [vmem:[%s408 + $0x31] sm:$0xff] %vm280, %v364
      %414 = vst.msk [vmem:[%s408 + $0x39] sm:$0xff] %vm280, %v365
      %415 = vst.msk [vmem:[%s408 + $0x49] sm:$0xff] %vm280, %v366
      %416 = vst.msk [vmem:[%s408 + $0x51] sm:$0xff] %vm280, %v367
      %417 = vst.msk [vmem:[%s408 + $0x61] sm:$0xff] %vm280, %v368
      %418 = vst.msk [vmem:[%s408 + $0x69] sm:$0xff] %vm280, %v369
      %419 = vst.msk [vmem:[%s408 + $0x79] sm:$0xff] %vm280, %v370
      %420 = vst.msk [vmem:[%s408 + $0x81] sm:$0xff] %vm280, %v371
      %421 = vst.msk [vmem:[%s408 + $0x91] sm:$0xff] %vm280, %v372
      %422 = vst.msk [vmem:[%s408 + $0x99] sm:$0xff] %vm280, %v373
      %423 = vst.msk [vmem:[%s408 + $0xa9] sm:$0xff] %vm280, %v374
      %424 = vst.msk [vmem:[%s408 + $0xb1] sm:$0xff] %vm280, %v375
      %425 = vst.msk [vmem:[%s408 + $0xc1] sm:$0xff] %vm280, %v392
      %426 = vst.msk [vmem:[%s408 + $0xc9] sm:$0xff] %vm280, %v393
      %427 = vst.msk [vmem:[%s408 + $0xd9] sm:$0xff] %vm280, %v394
      %428 = vst.msk [vmem:[%s408 + $0xe1] sm:$0xff] %vm280, %v395
      %429 = vst.msk [vmem:[%s408 + $0xf1] sm:$0xff] %vm280, %v396
      %430 = vst.msk [vmem:[%s408 + $0xf9] sm:$0xff] %vm280, %v397
      %431 = vst.msk [vmem:[%s408 + $0x109] sm:$0xff] %vm280, %v398
      %432 = vst.msk [vmem:[%s408 + $0x111] sm:$0xff] %vm280, %v399
      %433 = vst.msk [vmem:[%s408 + $0x121] sm:$0xff] %vm280, %v400
      %434 = vst.msk [vmem:[%s408 + $0x129] sm:$0xff] %vm280, %v401
      %435 = vst.msk [vmem:[%s408 + $0x139] sm:$0xff] %vm280, %v402
      %436 = vst.msk [vmem:[%s408 + $0x141] sm:$0xff] %vm280, %v403
      %437 = vst.msk [vmem:[%s408 + $0x151] sm:$0xff] %vm280, %v404
      %438 = vst.msk [vmem:[%s408 + $0x159] sm:$0xff] %vm280, %v405
      %439 = vst.msk [vmem:[%s408 + $0x169] sm:$0xff] %vm280, %v406
      %440 = vst.msk [vmem:[%s408 + $0x171] sm:$0xff] %vm280, %v407
      %v441 = vld [vmem:[#allocation2] sm:$0xff]
      %v442 = vld [vmem:[#allocation2 + $0x8] sm:$0xff]
      %v443 = vld [vmem:[#allocation2 + $0x18] sm:$0xff]
      %v444 = vld [vmem:[#allocation2 + $0x20] sm:$0xff]
      %v445 = vld [vmem:[#allocation2 + $0x30] sm:$0xff]
      %v446 = vld [vmem:[#allocation2 + $0x38] sm:$0xff]
      %v447 = vld [vmem:[#allocation2 + $0x48] sm:$0xff]
      %v448 = vld [vmem:[#allocation2 + $0x50] sm:$0xff]
      %v449 = vld [vmem:[#allocation2 + $0x60] sm:$0xff]
      %v450 = vld [vmem:[#allocation2 + $0x68] sm:$0xff]
      %v451 = vld [vmem:[#allocation2 + $0x78] sm:$0xff]
      %v452 = vld [vmem:[#allocation2 + $0x80] sm:$0xff]
      %v453 = vld [vmem:[#allocation2 + $0x90] sm:$0xff]
      %v454 = vld [vmem:[#allocation2 + $0x98] sm:$0xff]
      %v455 = vld [vmem:[#allocation2 + $0xa8] sm:$0xff]
      %v456 = vld [vmem:[#allocation2 + $0xb0] sm:$0xff]
      %v457 = vld [vmem:[#allocation2 + $0xc0] sm:$0xff]
      %v458 = vld [vmem:[#allocation2 + $0xc8] sm:$0xff]
      %v459 = vld [vmem:[#allocation2 + $0xd8] sm:$0xff]
      %v460 = vld [vmem:[#allocation2 + $0xe0] sm:$0xff]
      %v461 = vld [vmem:[#allocation2 + $0xf0] sm:$0xff]
      %v462 = vld [vmem:[#allocation2 + $0xf8] sm:$0xff]
      %v463 = vld [vmem:[#allocation2 + $0x108] sm:$0xff]
      %v464 = vld [vmem:[#allocation2 + $0x110] sm:$0xff]
      %v465 = vld [vmem:[#allocation2 + $0x120] sm:$0xff]
      %v466 = vld [vmem:[#allocation2 + $0x128] sm:$0xff]
      %v467 = vld [vmem:[#allocation2 + $0x138] sm:$0xff]
      %v468 = vld [vmem:[#allocation2 + $0x140] sm:$0xff]
      %v469 = vld [vmem:[#allocation2 + $0x150] sm:$0xff]
      %v470 = vld [vmem:[#allocation2 + $0x158] sm:$0xff]
      %v471 = vld [vmem:[#allocation2 + $0x168] sm:$0xff]
      %v472 = vld [vmem:[#allocation2 + $0x170] sm:$0xff]
      %v473 = vpack.c.bf16 %v442, %v441
      %v474 = vpack.c.bf16 %v444, %v443
      %v475 = vpack.c.bf16 %v446, %v445
      %v476 = vpack.c.bf16 %v448, %v447
      %v477 = vpack.c.bf16 %v450, %v449
      %v478 = vpack.c.bf16 %v452, %v451
      %v479 = vpack.c.bf16 %v454, %v453
      %v480 = vpack.c.bf16 %v456, %v455
      %v481 = vpack.c.bf16 %v458, %v457
      %v482 = vpack.c.bf16 %v460, %v459
      %v483 = vpack.c.bf16 %v462, %v461
      %v484 = vpack.c.bf16 %v464, %v463
      %v485 = vpack.c.bf16 %v466, %v465
      %v486 = vpack.c.bf16 %v468, %v467
      %v487 = vpack.c.bf16 %v470, %v469
      %v488 = vpack.c.bf16 %v472, %v471
      %489 = vst.msk [vmem:[#allocation4] sm:$0xff] %vm280, %v473
      %490 = vst.msk [vmem:[#allocation4 + $0x18] sm:$0xff] %vm280, %v474
      %491 = vst.msk [vmem:[#allocation4 + $0x30] sm:$0xff] %vm280, %v475
      %492 = vst.msk [vmem:[#allocation4 + $0x48] sm:$0xff] %vm280, %v476
      %493 = vst.msk [vmem:[#allocation4 + $0x60] sm:$0xff] %vm280, %v477
      %494 = vst.msk [vmem:[#allocation4 + $0x78] sm:$0xff] %vm280, %v478
      %495 = vst.msk [vmem:[#allocation4 + $0x90] sm:$0xff] %vm280, %v479
      %496 = vst.msk [vmem:[#allocation4 + $0xa8] sm:$0xff] %vm280, %v480
      %497 = vst.msk [vmem:[#allocation4 + $0xc0] sm:$0xff] %vm280, %v481
      %498 = vst.msk [vmem:[#allocation4 + $0xd8] sm:$0xff] %vm280, %v482
      %499 = vst.msk [vmem:[#allocation4 + $0xf0] sm:$0xff] %vm280, %v483
      %500 = vst.msk [vmem:[#allocation4 + $0x108] sm:$0xff] %vm280, %v484
      %501 = vst.msk [vmem:[#allocation4 + $0x120] sm:$0xff] %vm280, %v485
      %502 = vst.msk [vmem:[#allocation4 + $0x138] sm:$0xff] %vm280, %v486
      %503 = vst.msk [vmem:[#allocation4 + $0x150] sm:$0xff] %vm280, %v487
      %504 = vst.msk [vmem:[#allocation4 + $0x168] sm:$0xff] %vm280, %v488
      %v505 = vld [vmem:[#allocation2 + $0x1] sm:$0xff]
      %v506 = vld [vmem:[#allocation2 + $0x9] sm:$0xff]
      %v507 = vld [vmem:[#allocation2 + $0x19] sm:$0xff]
      %v508 = vld [vmem:[#allocation2 + $0x21] sm:$0xff]
      %v509 = vld [vmem:[#allocation2 + $0x31] sm:$0xff]
      %v510 = vld [vmem:[#allocation2 + $0x39] sm:$0xff]
      %v511 = vld [vmem:[#allocation2 + $0x49] sm:$0xff]
      %v512 = vld [vmem:[#allocation2 + $0x51] sm:$0xff]
      %v513 = vld [vmem:[#allocation2 + $0x61] sm:$0xff]
      %v514 = vld [vmem:[#allocation2 + $0x69] sm:$0xff]
      %v515 = vld [vmem:[#allocation2 + $0x79] sm:$0xff]
      %v516 = vld [vmem:[#allocation2 + $0x81] sm:$0xff]
      %v517 = vld [vmem:[#allocation2 + $0x91] sm:$0xff]
      %v518 = vld [vmem:[#allocation2 + $0x99] sm:$0xff]
      %v519 = vld [vmem:[#allocation2 + $0xa9] sm:$0xff]
      %v520 = vld [vmem:[#allocation2 + $0xb1] sm:$0xff]
      %v521 = vld [vmem:[#allocation2 + $0xc1] sm:$0xff]
      %v522 = vld [vmem:[#allocation2 + $0xc9] sm:$0xff]
      %v523 = vld [vmem:[#allocation2 + $0xd9] sm:$0xff]
      %v524 = vld [vmem:[#allocation2 + $0xe1] sm:$0xff]
      %v525 = vld [vmem:[#allocation2 + $0xf1] sm:$0xff]
      %v526 = vld [vmem:[#allocation2 + $0xf9] sm:$0xff]
      %v527 = vld [vmem:[#allocation2 + $0x109] sm:$0xff]
      %v528 = vld [vmem:[#allocation2 + $0x111] sm:$0xff]
      %v529 = vld [vmem:[#allocation2 + $0x121] sm:$0xff]
      %v530 = vld [vmem:[#allocation2 + $0x129] sm:$0xff]
      %v531 = vld [vmem:[#allocation2 + $0x139] sm:$0xff]
      %v532 = vld [vmem:[#allocation2 + $0x141] sm:$0xff]
      %v533 = vld [vmem:[#allocation2 + $0x151] sm:$0xff]
      %v534 = vld [vmem:[#allocation2 + $0x159] sm:$0xff]
      %v535 = vld [vmem:[#allocation2 + $0x169] sm:$0xff]
      %v536 = vld [vmem:[#allocation2 + $0x171] sm:$0xff]
      %v537 = vpack.c.bf16 %v506, %v505
      %v538 = vpack.c.bf16 %v508, %v507
      %v539 = vpack.c.bf16 %v510, %v509
      %v540 = vpack.c.bf16 %v512, %v511
      %v541 = vpack.c.bf16 %v514, %v513
      %v542 = vpack.c.bf16 %v516, %v515
      %v543 = vpack.c.bf16 %v518, %v517
      %v544 = vpack.c.bf16 %v520, %v519
      %v545 = vpack.c.bf16 %v522, %v521
      %v546 = vpack.c.bf16 %v524, %v523
      %v547 = vpack.c.bf16 %v526, %v525
      %v548 = vpack.c.bf16 %v528, %v527
      %v549 = vpack.c.bf16 %v530, %v529
      %v550 = vpack.c.bf16 %v532, %v531
      %v551 = vpack.c.bf16 %v534, %v533
      %v552 = vpack.c.bf16 %v536, %v535
      %569 = vrot.lane.b32.xlu0 %v537, 32
      %v570 = vpop.permute.xlu0 %569
      %571 = vrot.lane.b32.xlu0 %v538, 32
      %v572 = vpop.permute.xlu0 %571
      %573 = vrot.lane.b32.xlu0 %v539, 32
      %v574 = vpop.permute.xlu0 %573
      %575 = vrot.lane.b32.xlu0 %v540, 32
      %v576 = vpop.permute.xlu0 %575
      %577 = vrot.lane.b32.xlu0 %v541, 32
      %v578 = vpop.permute.xlu0 %577
      %579 = vrot.lane.b32.xlu0 %v542, 32
      %v580 = vpop.permute.xlu0 %579
      %581 = vrot.lane.b32.xlu0 %v543, 32
      %v582 = vpop.permute.xlu0 %581
      %583 = vrot.lane.b32.xlu0 %v544, 32
      %v584 = vpop.permute.xlu0 %583
      %585 = vrot.lane.b32.xlu0 %v545, 32
      %v586 = vpop.permute.xlu0 %585
      %587 = vrot.lane.b32.xlu0 %v546, 32
      %v588 = vpop.permute.xlu0 %587
      %589 = vrot.lane.b32.xlu0 %v547, 32
      %v590 = vpop.permute.xlu0 %589
      %591 = vrot.lane.b32.xlu0 %v548, 32
      %v592 = vpop.permute.xlu0 %591
      %593 = vrot.lane.b32.xlu0 %v549, 32
      %v594 = vpop.permute.xlu0 %593
      %595 = vrot.lane.b32.xlu0 %v550, 32
      %v596 = vpop.permute.xlu0 %595
      %597 = vrot.lane.b32.xlu0 %v551, 32
      %v598 = vpop.permute.xlu0 %597
      %599 = vrot.lane.b32.xlu0 %v552, 32
      %v600 = vpop.permute.xlu0 %599
      %vm617 = vcmask 523520
      %618 = vst.msk [vmem:[#allocation4] sm:$0xff] %vm617, %v570
      %619 = vst.msk [vmem:[#allocation4 + $0x18] sm:$0xff] %vm617, %v572
      %620 = vst.msk [vmem:[#allocation4 + $0x30] sm:$0xff] %vm617, %v574
      %621 = vst.msk [vmem:[#allocation4 + $0x48] sm:$0xff] %vm617, %v576
      %622 = vst.msk [vmem:[#allocation4 + $0x60] sm:$0xff] %vm617, %v578
      %623 = vst.msk [vmem:[#allocation4 + $0x78] sm:$0xff] %vm617, %v580
      %624 = vst.msk [vmem:[#allocation4 + $0x90] sm:$0xff] %vm617, %v582
      %625 = vst.msk [vmem:[#allocation4 + $0xa8] sm:$0xff] %vm617, %v584
      %626 = vst.msk [vmem:[#allocation4 + $0xc0] sm:$0xff] %vm617, %v586
      %627 = vst.msk [vmem:[#allocation4 + $0xd8] sm:$0xff] %vm617, %v588
      %628 = vst.msk [vmem:[#allocation4 + $0xf0] sm:$0xff] %vm617, %v590
      %629 = vst.msk [vmem:[#allocation4 + $0x108] sm:$0xff] %vm617, %v592
      %630 = vst.msk [vmem:[#allocation4 + $0x120] sm:$0xff] %vm617, %v594
      %631 = vst.msk [vmem:[#allocation4 + $0x138] sm:$0xff] %vm617, %v596
      %632 = vst.msk [vmem:[#allocation4 + $0x150] sm:$0xff] %vm617, %v598
      %633 = vst.msk [vmem:[#allocation4 + $0x168] sm:$0xff] %vm617, %v600
      %v634 = vld [vmem:[#allocation2 + $0x2] sm:$0xff]
      %v635 = vld [vmem:[#allocation2 + $0xa] sm:$0xff]
      %v636 = vld [vmem:[#allocation2 + $0x1a] sm:$0xff]
      %v637 = vld [vmem:[#allocation2 + $0x22] sm:$0xff]
      %v638 = vld [vmem:[#allocation2 + $0x32] sm:$0xff]
      %v639 = vld [vmem:[#allocation2 + $0x3a] sm:$0xff]
      %v640 = vld [vmem:[#allocation2 + $0x4a] sm:$0xff]
      %v641 = vld [vmem:[#allocation2 + $0x52] sm:$0xff]
      %v642 = vld [vmem:[#allocation2 + $0x62] sm:$0xff]
      %v643 = vld [vmem:[#allocation2 + $0x6a] sm:$0xff]
      %v644 = vld [vmem:[#allocation2 + $0x7a] sm:$0xff]
      %v645 = vld [vmem:[#allocation2 + $0x82] sm:$0xff]
      %v646 = vld [vmem:[#allocation2 + $0x92] sm:$0xff]
      %v647 = vld [vmem:[#allocation2 + $0x9a] sm:$0xff]
      %v648 = vld [vmem:[#allocation2 + $0xaa] sm:$0xff]
      %v649 = vld [vmem:[#allocation2 + $0xb2] sm:$0xff]
      %v650 = vld [vmem:[#allocation2 + $0xc2] sm:$0xff]
      %v651 = vld [vmem:[#allocation2 + $0xca] sm:$0xff]
      %v652 = vld [vmem:[#allocation2 + $0xda] sm:$0xff]
      %v653 = vld [vmem:[#allocation2 + $0xe2] sm:$0xff]
      %v654 = vld [vmem:[#allocation2 + $0xf2] sm:$0xff]
      %v655 = vld [vmem:[#allocation2 + $0xfa] sm:$0xff]
      %v656 = vld [vmem:[#allocation2 + $0x10a] sm:$0xff]
      %v657 = vld [vmem:[#allocation2 + $0x112] sm:$0xff]
      %v658 = vld [vmem:[#allocation2 + $0x122] sm:$0xff]
      %v659 = vld [vmem:[#allocation2 + $0x12a] sm:$0xff]
      %v660 = vld [vmem:[#allocation2 + $0x13a] sm:$0xff]
      %v661 = vld [vmem:[#allocation2 + $0x142] sm:$0xff]
      %v662 = vld [vmem:[#allocation2 + $0x152] sm:$0xff]
      %v663 = vld [vmem:[#allocation2 + $0x15a] sm:$0xff]
      %v664 = vld [vmem:[#allocation2 + $0x16a] sm:$0xff]
      %v665 = vld [vmem:[#allocation2 + $0x172] sm:$0xff]
      %v666 = vpack.c.bf16 %v635, %v634
      %v667 = vpack.c.bf16 %v637, %v636
      %v668 = vpack.c.bf16 %v639, %v638
      %v669 = vpack.c.bf16 %v641, %v640
      %v670 = vpack.c.bf16 %v643, %v642
      %v671 = vpack.c.bf16 %v645, %v644
      %v672 = vpack.c.bf16 %v647, %v646
      %v673 = vpack.c.bf16 %v649, %v648
      %v674 = vpack.c.bf16 %v651, %v650
      %v675 = vpack.c.bf16 %v653, %v652
      %v676 = vpack.c.bf16 %v655, %v654
      %v677 = vpack.c.bf16 %v657, %v656
      %v678 = vpack.c.bf16 %v659, %v658
      %v679 = vpack.c.bf16 %v661, %v660
      %v680 = vpack.c.bf16 %v663, %v662
      %v681 = vpack.c.bf16 %v665, %v664
      %698 = vrot.lane.b32.xlu0 %v666, 64
      %v699 = vpop.permute.xlu0 %698
      %700 = vrot.lane.b32.xlu0 %v667, 64
      %v701 = vpop.permute.xlu0 %700
      %702 = vrot.lane.b32.xlu0 %v668, 64
      %v703 = vpop.permute.xlu0 %702
      %704 = vrot.lane.b32.xlu0 %v669, 64
      %v705 = vpop.permute.xlu0 %704
      %706 = vrot.lane.b32.xlu0 %v670, 64
      %v707 = vpop.permute.xlu0 %706
      %708 = vrot.lane.b32.xlu0 %v671, 64
      %v709 = vpop.permute.xlu0 %708
      %710 = vrot.lane.b32.xlu0 %v672, 64
      %v711 = vpop.permute.xlu0 %710
      %712 = vrot.lane.b32.xlu0 %v673, 64
      %v713 = vpop.permute.xlu0 %712
      %714 = vrot.lane.b32.xlu0 %v674, 64
      %v715 = vpop.permute.xlu0 %714
      %716 = vrot.lane.b32.xlu0 %v675, 64
      %v717 = vpop.permute.xlu0 %716
      %718 = vrot.lane.b32.xlu0 %v676, 64
      %v719 = vpop.permute.xlu0 %718
      %720 = vrot.lane.b32.xlu0 %v677, 64
      %v721 = vpop.permute.xlu0 %720
      %722 = vrot.lane.b32.xlu0 %v678, 64
      %v723 = vpop.permute.xlu0 %722
      %724 = vrot.lane.b32.xlu0 %v679, 64
      %v725 = vpop.permute.xlu0 %724
      %726 = vrot.lane.b32.xlu0 %v680, 64
      %v727 = vpop.permute.xlu0 %726
      %728 = vrot.lane.b32.xlu0 %v681, 64
      %v729 = vpop.permute.xlu0 %728
      %vm746 = vcmask 785920
      %747 = vst.msk [vmem:[#allocation4] sm:$0xff] %vm746, %v699
      %748 = vst.msk [vmem:[#allocation4 + $0x18] sm:$0xff] %vm746, %v701
      %749 = vst.msk [vmem:[#allocation4 + $0x30] sm:$0xff] %vm746, %v703
      %750 = vst.msk [vmem:[#allocation4 + $0x48] sm:$0xff] %vm746, %v705
      %751 = vst.msk [vmem:[#allocation4 + $0x60] sm:$0xff] %vm746, %v707
      %752 = vst.msk [vmem:[#allocation4 + $0x78] sm:$0xff] %vm746, %v709
      %753 = vst.msk [vmem:[#allocation4 + $0x90] sm:$0xff] %vm746, %v711
      %754 = vst.msk [vmem:[#allocation4 + $0xa8] sm:$0xff] %vm746, %v713
      %755 = vst.msk [vmem:[#allocation4 + $0xc0] sm:$0xff] %vm746, %v715
      %756 = vst.msk [vmem:[#allocation4 + $0xd8] sm:$0xff] %vm746, %v717
      %757 = vst.msk [vmem:[#allocation4 + $0xf0] sm:$0xff] %vm746, %v719
      %758 = vst.msk [vmem:[#allocation4 + $0x108] sm:$0xff] %vm746, %v721
      %759 = vst.msk [vmem:[#allocation4 + $0x120] sm:$0xff] %vm746, %v723
      %760 = vst.msk [vmem:[#allocation4 + $0x138] sm:$0xff] %vm746, %v725
      %761 = vst.msk [vmem:[#allocation4 + $0x150] sm:$0xff] %vm746, %v727
      %762 = vst.msk [vmem:[#allocation4 + $0x168] sm:$0xff] %vm746, %v729
      %v763 = vld [vmem:[%s408] sm:$0xff]
      %v764 = vld [vmem:[%s408 + $0x8] sm:$0xff]
      %v765 = vld [vmem:[%s408 + $0x18] sm:$0xff]
      %v766 = vld [vmem:[%s408 + $0x20] sm:$0xff]
      %v767 = vld [vmem:[%s408 + $0x30] sm:$0xff]
      %v768 = vld [vmem:[%s408 + $0x38] sm:$0xff]
      %v769 = vld [vmem:[%s408 + $0x48] sm:$0xff]
      %v770 = vld [vmem:[%s408 + $0x50] sm:$0xff]
      %v771 = vld [vmem:[%s408 + $0x60] sm:$0xff]
      %v772 = vld [vmem:[%s408 + $0x68] sm:$0xff]
      %v773 = vld [vmem:[%s408 + $0x78] sm:$0xff]
      %v774 = vld [vmem:[%s408 + $0x80] sm:$0xff]
      %v775 = vld [vmem:[%s408 + $0x90] sm:$0xff]
      %v776 = vld [vmem:[%s408 + $0x98] sm:$0xff]
      %v777 = vld [vmem:[%s408 + $0xa8] sm:$0xff]
      %v778 = vld [vmem:[%s408 + $0xb0] sm:$0xff]
      %v779 = vld [vmem:[%s408 + $0xc0] sm:$0xff]
      %v780 = vld [vmem:[%s408 + $0xc8] sm:$0xff]
      %v781 = vld [vmem:[%s408 + $0xd8] sm:$0xff]
      %v782 = vld [vmem:[%s408 + $0xe0] sm:$0xff]
      %v783 = vld [vmem:[%s408 + $0xf0] sm:$0xff]
      %v784 = vld [vmem:[%s408 + $0xf8] sm:$0xff]
      %v785 = vld [vmem:[%s408 + $0x108] sm:$0xff]
      %v786 = vld [vmem:[%s408 + $0x110] sm:$0xff]
      %v787 = vld [vmem:[%s408 + $0x120] sm:$0xff]
      %v788 = vld [vmem:[%s408 + $0x128] sm:$0xff]
      %v789 = vld [vmem:[%s408 + $0x138] sm:$0xff]
      %v790 = vld [vmem:[%s408 + $0x140] sm:$0xff]
      %v791 = vld [vmem:[%s408 + $0x150] sm:$0xff]
      %v792 = vld [vmem:[%s408 + $0x158] sm:$0xff]
      %v793 = vld [vmem:[%s408 + $0x168] sm:$0xff]
      %v794 = vld [vmem:[%s408 + $0x170] sm:$0xff]
      %v795 = vpack.c.bf16 %v764, %v763
      %v796 = vpack.c.bf16 %v766, %v765
      %v797 = vpack.c.bf16 %v768, %v767
      %v798 = vpack.c.bf16 %v770, %v769
      %v799 = vpack.c.bf16 %v772, %v771
      %v800 = vpack.c.bf16 %v774, %v773
      %v801 = vpack.c.bf16 %v776, %v775
      %v802 = vpack.c.bf16 %v778, %v777
      %v803 = vpack.c.bf16 %v780, %v779
      %v804 = vpack.c.bf16 %v782, %v781
      %v805 = vpack.c.bf16 %v784, %v783
      %v806 = vpack.c.bf16 %v786, %v785
      %v807 = vpack.c.bf16 %v788, %v787
      %v808 = vpack.c.bf16 %v790, %v789
      %v809 = vpack.c.bf16 %v792, %v791
      %v810 = vpack.c.bf16 %v794, %v793
      %827 = vrot.lane.b32.xlu0 %v795, 96
      %v828 = vpop.permute.xlu0 %827
      %829 = vrot.lane.b32.xlu0 %v796, 96
      %v830 = vpop.permute.xlu0 %829
      %831 = vrot.lane.b32.xlu0 %v797, 96
      %v832 = vpop.permute.xlu0 %831
      %833 = vrot.lane.b32.xlu0 %v798, 96
      %v834 = vpop.permute.xlu0 %833
      %835 = vrot.lane.b32.xlu0 %v799, 96
      %v836 = vpop.permute.xlu0 %835
      %837 = vrot.lane.b32.xlu0 %v800, 96
      %v838 = vpop.permute.xlu0 %837
      %839 = vrot.lane.b32.xlu0 %v801, 96
      %v840 = vpop.permute.xlu0 %839
      %841 = vrot.lane.b32.xlu0 %v802, 96
      %v842 = vpop.permute.xlu0 %841
      %843 = vrot.lane.b32.xlu0 %v803, 96
      %v844 = vpop.permute.xlu0 %843
      %845 = vrot.lane.b32.xlu0 %v804, 96
      %v846 = vpop.permute.xlu0 %845
      %847 = vrot.lane.b32.xlu0 %v805, 96
      %v848 = vpop.permute.xlu0 %847
      %849 = vrot.lane.b32.xlu0 %v806, 96
      %v850 = vpop.permute.xlu0 %849
      %851 = vrot.lane.b32.xlu0 %v807, 96
      %v852 = vpop.permute.xlu0 %851
      %853 = vrot.lane.b32.xlu0 %v808, 96
      %v854 = vpop.permute.xlu0 %853
      %855 = vrot.lane.b32.xlu0 %v809, 96
      %v856 = vpop.permute.xlu0 %855
      %857 = vrot.lane.b32.xlu0 %v810, 96
      %v858 = vpop.permute.xlu0 %857
      %vm875 = vcmask 1048320
      %876 = vst.msk [vmem:[#allocation4] sm:$0xff] %vm875, %v828
      %877 = vst.msk [vmem:[#allocation4 + $0x18] sm:$0xff] %vm875, %v830
      %878 = vst.msk [vmem:[#allocation4 + $0x30] sm:$0xff] %vm875, %v832
      %879 = vst.msk [vmem:[#allocation4 + $0x48] sm:$0xff] %vm875, %v834
      %880 = vst.msk [vmem:[#allocation4 + $0x60] sm:$0xff] %vm875, %v836
      %881 = vst.msk [vmem:[#allocation4 + $0x78] sm:$0xff] %vm875, %v838
      %882 = vst.msk [vmem:[#allocation4 + $0x90] sm:$0xff] %vm875, %v840
      %883 = vst.msk [vmem:[#allocation4 + $0xa8] sm:$0xff] %vm875, %v842
      %884 = vst.msk [vmem:[#allocation4 + $0xc0] sm:$0xff] %vm875, %v844
      %885 = vst.msk [vmem:[#allocation4 + $0xd8] sm:$0xff] %vm875, %v846
      %886 = vst.msk [vmem:[#allocation4 + $0xf0] sm:$0xff] %vm875, %v848
      %887 = vst.msk [vmem:[#allocation4 + $0x108] sm:$0xff] %vm875, %v850
      %888 = vst.msk [vmem:[#allocation4 + $0x120] sm:$0xff] %vm875, %v852
      %889 = vst.msk [vmem:[#allocation4 + $0x138] sm:$0xff] %vm875, %v854
      %890 = vst.msk [vmem:[#allocation4 + $0x150] sm:$0xff] %vm875, %v856
      %891 = vst.msk [vmem:[#allocation4 + $0x168] sm:$0xff] %vm875, %v858
      %v892 = vld [vmem:[%s408 + $0x1] sm:$0xff]
      %v893 = vld [vmem:[%s408 + $0x9] sm:$0xff]
      %v894 = vld [vmem:[%s408 + $0x19] sm:$0xff]
      %v895 = vld [vmem:[%s408 + $0x21] sm:$0xff]
      %v896 = vld [vmem:[%s408 + $0x31] sm:$0xff]
      %v897 = vld [vmem:[%s408 + $0x39] sm:$0xff]
      %v898 = vld [vmem:[%s408 + $0x49] sm:$0xff]
      %v899 = vld [vmem:[%s408 + $0x51] sm:$0xff]
      %v900 = vld [vmem:[%s408 + $0x61] sm:$0xff]
      %v901 = vld [vmem:[%s408 + $0x69] sm:$0xff]
      %v902 = vld [vmem:[%s408 + $0x79] sm:$0xff]
      %v903 = vld [vmem:[%s408 + $0x81] sm:$0xff]
      %v904 = vld [vmem:[%s408 + $0x91] sm:$0xff]
      %v905 = vld [vmem:[%s408 + $0x99] sm:$0xff]
      %v906 = vld [vmem:[%s408 + $0xa9] sm:$0xff]
      %v907 = vld [vmem:[%s408 + $0xb1] sm:$0xff]
      %v908 = vld [vmem:[%s408 + $0xc1] sm:$0xff]
      %v909 = vld [vmem:[%s408 + $0xc9] sm:$0xff]
      %v910 = vld [vmem:[%s408 + $0xd9] sm:$0xff]
      %v911 = vld [vmem:[%s408 + $0xe1] sm:$0xff]
      %v912 = vld [vmem:[%s408 + $0xf1] sm:$0xff]
      %v913 = vld [vmem:[%s408 + $0xf9] sm:$0xff]
      %v914 = vld [vmem:[%s408 + $0x109] sm:$0xff]
      %v915 = vld [vmem:[%s408 + $0x111] sm:$0xff]
      %v916 = vld [vmem:[%s408 + $0x121] sm:$0xff]
      %v917 = vld [vmem:[%s408 + $0x129] sm:$0xff]
      %v918 = vld [vmem:[%s408 + $0x139] sm:$0xff]
      %v919 = vld [vmem:[%s408 + $0x141] sm:$0xff]
      %v920 = vld [vmem:[%s408 + $0x151] sm:$0xff]
      %v921 = vld [vmem:[%s408 + $0x159] sm:$0xff]
      %v922 = vld [vmem:[%s408 + $0x169] sm:$0xff]
      %v923 = vld [vmem:[%s408 + $0x171] sm:$0xff]
      %v924 = vpack.c.bf16 %v893, %v892
      %v925 = vpack.c.bf16 %v895, %v894
      %v926 = vpack.c.bf16 %v897, %v896
      %v927 = vpack.c.bf16 %v899, %v898
      %v928 = vpack.c.bf16 %v901, %v900
      %v929 = vpack.c.bf16 %v903, %v902
      %v930 = vpack.c.bf16 %v905, %v904
      %v931 = vpack.c.bf16 %v907, %v906
      %v932 = vpack.c.bf16 %v909, %v908
      %v933 = vpack.c.bf16 %v911, %v910
      %v934 = vpack.c.bf16 %v913, %v912
      %v935 = vpack.c.bf16 %v915, %v914
      %v936 = vpack.c.bf16 %v917, %v916
      %v937 = vpack.c.bf16 %v919, %v918
      %v938 = vpack.c.bf16 %v921, %v920
      %v939 = vpack.c.bf16 %v923, %v922
      %940 = vst.msk [vmem:[#allocation4 + $0x8] sm:$0xff] %vm280, %v924
      %941 = vst.msk [vmem:[#allocation4 + $0x20] sm:$0xff] %vm280, %v925
      %942 = vst.msk [vmem:[#allocation4 + $0x38] sm:$0xff] %vm280, %v926
      %943 = vst.msk [vmem:[#allocation4 + $0x50] sm:$0xff] %vm280, %v927
      %944 = vst.msk [vmem:[#allocation4 + $0x68] sm:$0xff] %vm280, %v928
      %945 = vst.msk [vmem:[#allocation4 + $0x80] sm:$0xff] %vm280, %v929
      %946 = vst.msk [vmem:[#allocation4 + $0x98] sm:$0xff] %vm280, %v930
      %947 = vst.msk [vmem:[#allocation4 + $0xb0] sm:$0xff] %vm280, %v931
      %948 = vst.msk [vmem:[#allocation4 + $0xc8] sm:$0xff] %vm280, %v932
      %949 = vst.msk [vmem:[#allocation4 + $0xe0] sm:$0xff] %vm280, %v933
      %950 = vst.msk [vmem:[#allocation4 + $0xf8] sm:$0xff] %vm280, %v934
      %951 = vst.msk [vmem:[#allocation4 + $0x110] sm:$0xff] %vm280, %v935
      %952 = vst.msk [vmem:[#allocation4 + $0x128] sm:$0xff] %vm280, %v936
      %953 = vst.msk [vmem:[#allocation4 + $0x140] sm:$0xff] %vm280, %v937
      %954 = vst.msk [vmem:[#allocation4 + $0x158] sm:$0xff] %vm280, %v938
      %955 = vst.msk [vmem:[#allocation4 + $0x170] sm:$0xff] %vm280, %v939
      %v956 = vld [vmem:[%s408 + $0x2] sm:$0xff]
      %v957 = vld [vmem:[%s408 + $0xa] sm:$0xff]
      %v958 = vld [vmem:[%s408 + $0x1a] sm:$0xff]
      %v959 = vld [vmem:[%s408 + $0x22] sm:$0xff]
      %v960 = vld [vmem:[%s408 + $0x32] sm:$0xff]
      %v961 = vld [vmem:[%s408 + $0x3a] sm:$0xff]
      %v962 = vld [vmem:[%s408 + $0x4a] sm:$0xff]
      %v963 = vld [vmem:[%s408 + $0x52] sm:$0xff]
      %v964 = vld [vmem:[%s408 + $0x62] sm:$0xff]
      %v965 = vld [vmem:[%s408 + $0x6a] sm:$0xff]
      %v966 = vld [vmem:[%s408 + $0x7a] sm:$0xff]
      %v967 = vld [vmem:[%s408 + $0x82] sm:$0xff]
      %v968 = vld [vmem:[%s408 + $0x92] sm:$0xff]
      %v969 = vld [vmem:[%s408 + $0x9a] sm:$0xff]
      %v970 = vld [vmem:[%s408 + $0xaa] sm:$0xff]
      %v971 = vld [vmem:[%s408 + $0xb2] sm:$0xff]
      %v972 = vld [vmem:[%s408 + $0xc2] sm:$0xff]
      %v973 = vld [vmem:[%s408 + $0xca] sm:$0xff]
      %v974 = vld [vmem:[%s408 + $0xda] sm:$0xff]
      %v975 = vld [vmem:[%s408 + $0xe2] sm:$0xff]
      %v976 = vld [vmem:[%s408 + $0xf2] sm:$0xff]
      %v977 = vld [vmem:[%s408 + $0xfa] sm:$0xff]
      %v978 = vld [vmem:[%s408 + $0x10a] sm:$0xff]
      %v979 = vld [vmem:[%s408 + $0x112] sm:$0xff]
      %v980 = vld [vmem:[%s408 + $0x122] sm:$0xff]
      %v981 = vld [vmem:[%s408 + $0x12a] sm:$0xff]
      %v982 = vld [vmem:[%s408 + $0x13a] sm:$0xff]
      %v983 = vld [vmem:[%s408 + $0x142] sm:$0xff]
      %v984 = vld [vmem:[%s408 + $0x152] sm:$0xff]
      %v985 = vld [vmem:[%s408 + $0x15a] sm:$0xff]
      %v986 = vld [vmem:[%s408 + $0x16a] sm:$0xff]
      %v987 = vld [vmem:[%s408 + $0x172] sm:$0xff]
      %v988 = vpack.c.bf16 %v957, %v956
      %v989 = vpack.c.bf16 %v959, %v958
      %v990 = vpack.c.bf16 %v961, %v960
      %v991 = vpack.c.bf16 %v963, %v962
      %v992 = vpack.c.bf16 %v965, %v964
      %v993 = vpack.c.bf16 %v967, %v966
      %v994 = vpack.c.bf16 %v969, %v968
      %v995 = vpack.c.bf16 %v971, %v970
      %v996 = vpack.c.bf16 %v973, %v972
      %v997 = vpack.c.bf16 %v975, %v974
      %v998 = vpack.c.bf16 %v977, %v976
      %v999 = vpack.c.bf16 %v979, %v978
      %v1000 = vpack.c.bf16 %v981, %v980
      %v1001 = vpack.c.bf16 %v983, %v982
      %v1002 = vpack.c.bf16 %v985, %v984
      %v1003 = vpack.c.bf16 %v987, %v986
      %1020 = vrot.lane.b32.xlu0 %v988, 32
      %v1021 = vpop.permute.xlu0 %1020
      %1022 = vrot.lane.b32.xlu0 %v989, 32
      %v1023 = vpop.permute.xlu0 %1022
      %1024 = vrot.lane.b32.xlu0 %v990, 32
      %v1025 = vpop.permute.xlu0 %1024
      %1026 = vrot.lane.b32.xlu0 %v991, 32
      %v1027 = vpop.permute.xlu0 %1026
      %1028 = vrot.lane.b32.xlu0 %v992, 32
      %v1029 = vpop.permute.xlu0 %1028
      %1030 = vrot.lane.b32.xlu0 %v993, 32
      %v1031 = vpop.permute.xlu0 %1030
      %1032 = vrot.lane.b32.xlu0 %v994, 32
      %v1033 = vpop.permute.xlu0 %1032
      %1034 = vrot.lane.b32.xlu0 %v995, 32
      %v1035 = vpop.permute.xlu0 %1034
      %1036 = vrot.lane.b32.xlu0 %v996, 32
      %v1037 = vpop.permute.xlu0 %1036
      %1038 = vrot.lane.b32.xlu0 %v997, 32
      %v1039 = vpop.permute.xlu0 %1038
      %1040 = vrot.lane.b32.xlu0 %v998, 32
      %v1041 = vpop.permute.xlu0 %1040
      %1042 = vrot.lane.b32.xlu0 %v999, 32
      %v1043 = vpop.permute.xlu0 %1042
      %1044 = vrot.lane.b32.xlu0 %v1000, 32
      %v1045 = vpop.permute.xlu0 %1044
      %1046 = vrot.lane.b32.xlu0 %v1001, 32
      %v1047 = vpop.permute.xlu0 %1046
      %1048 = vrot.lane.b32.xlu0 %v1002, 32
      %v1049 = vpop.permute.xlu0 %1048
      %1050 = vrot.lane.b32.xlu0 %v1003, 32
      %v1051 = vpop.permute.xlu0 %1050
      %1068 = vst.msk [vmem:[#allocation4 + $0x8] sm:$0xff] %vm617, %v1021
      %1069 = vst.msk [vmem:[#allocation4 + $0x20] sm:$0xff] %vm617, %v1023
      %1070 = vst.msk [vmem:[#allocation4 + $0x38] sm:$0xff] %vm617, %v1025
      %1071 = vst.msk [vmem:[#allocation4 + $0x50] sm:$0xff] %vm617, %v1027
      %1072 = vst.msk [vmem:[#allocation4 + $0x68] sm:$0xff] %vm617, %v1029
      %1073 = vst.msk [vmem:[#allocation4 + $0x80] sm:$0xff] %vm617, %v1031
      %1074 = vst.msk [vmem:[#allocation4 + $0x98] sm:$0xff] %vm617, %v1033
      %1075 = vst.msk [vmem:[#allocation4 + $0xb0] sm:$0xff] %vm617, %v1035
      %1076 = vst.msk [vmem:[#allocation4 + $0xc8] sm:$0xff] %vm617, %v1037
      %1077 = vst.msk [vmem:[#allocation4 + $0xe0] sm:$0xff] %vm617, %v1039
      %1078 = vst.msk [vmem:[#allocation4 + $0xf8] sm:$0xff] %vm617, %v1041
      %1079 = vst.msk [vmem:[#allocation4 + $0x110] sm:$0xff] %vm617, %v1043
      %1080 = vst.msk [vmem:[#allocation4 + $0x128] sm:$0xff] %vm617, %v1045
      %1081 = vst.msk [vmem:[#allocation4 + $0x140] sm:$0xff] %vm617, %v1047
      %1082 = vst.msk [vmem:[#allocation4 + $0x158] sm:$0xff] %vm617, %v1049
      %1083 = vst.msk [vmem:[#allocation4 + $0x170] sm:$0xff] %vm617, %v1051
      %s1084 = scalar_lea.vmem [#allocation2], 48
      %v1085 = vld [vmem:[%s1084] sm:$0xff]
      %v1086 = vld [vmem:[%s1084 + $0x8] sm:$0xff]
      %v1087 = vld [vmem:[%s1084 + $0x18] sm:$0xff]
      %v1088 = vld [vmem:[%s1084 + $0x20] sm:$0xff]
      %v1089 = vld [vmem:[%s1084 + $0x30] sm:$0xff]
      %v1090 = vld [vmem:[%s1084 + $0x38] sm:$0xff]
      %v1091 = vld [vmem:[%s1084 + $0x48] sm:$0xff]
      %v1092 = vld [vmem:[%s1084 + $0x50] sm:$0xff]
      %v1093 = vld [vmem:[%s1084 + $0x60] sm:$0xff]
      %v1094 = vld [vmem:[%s1084 + $0x68] sm:$0xff]
      %v1095 = vld [vmem:[%s1084 + $0x78] sm:$0xff]
      %v1096 = vld [vmem:[%s1084 + $0x80] sm:$0xff]
      %v1097 = vld [vmem:[%s1084 + $0x90] sm:$0xff]
      %v1098 = vld [vmem:[%s1084 + $0x98] sm:$0xff]
      %v1099 = vld [vmem:[%s1084 + $0xa8] sm:$0xff]
      %v1100 = vld [vmem:[%s1084 + $0xb0] sm:$0xff]
      %v1101 = vld [vmem:[%s1084 + $0xc0] sm:$0xff]
      %v1102 = vld [vmem:[%s1084 + $0xc8] sm:$0xff]
      %v1103 = vld [vmem:[%s1084 + $0xd8] sm:$0xff]
      %v1104 = vld [vmem:[%s1084 + $0xe0] sm:$0xff]
      %v1105 = vld [vmem:[%s1084 + $0xf0] sm:$0xff]
      %v1106 = vld [vmem:[%s1084 + $0xf8] sm:$0xff]
      %v1107 = vld [vmem:[%s1084 + $0x108] sm:$0xff]
      %v1108 = vld [vmem:[%s1084 + $0x110] sm:$0xff]
      %v1109 = vld [vmem:[%s1084 + $0x120] sm:$0xff]
      %v1110 = vld [vmem:[%s1084 + $0x128] sm:$0xff]
      %v1111 = vld [vmem:[%s1084 + $0x138] sm:$0xff]
      %v1112 = vld [vmem:[%s1084 + $0x140] sm:$0xff]
      %v1113 = vld [vmem:[%s1084 + $0x150] sm:$0xff]
      %v1114 = vld [vmem:[%s1084 + $0x158] sm:$0xff]
      %v1115 = vld [vmem:[%s1084 + $0x168] sm:$0xff]
      %v1116 = vld [vmem:[%s1084 + $0x170] sm:$0xff]
      %v1117 = vpack.c.bf16 %v1086, %v1085
      %v1118 = vpack.c.bf16 %v1088, %v1087
      %v1119 = vpack.c.bf16 %v1090, %v1089
      %v1120 = vpack.c.bf16 %v1092, %v1091
      %v1121 = vpack.c.bf16 %v1094, %v1093
      %v1122 = vpack.c.bf16 %v1096, %v1095
      %v1123 = vpack.c.bf16 %v1098, %v1097
      %v1124 = vpack.c.bf16 %v1100, %v1099
      %v1125 = vpack.c.bf16 %v1102, %v1101
      %v1126 = vpack.c.bf16 %v1104, %v1103
      %v1127 = vpack.c.bf16 %v1106, %v1105
      %v1128 = vpack.c.bf16 %v1108, %v1107
      %v1129 = vpack.c.bf16 %v1110, %v1109
      %v1130 = vpack.c.bf16 %v1112, %v1111
      %v1131 = vpack.c.bf16 %v1114, %v1113
      %v1132 = vpack.c.bf16 %v1116, %v1115
      %1149 = vrot.lane.b32.xlu0 %v1117, 64
      %v1150 = vpop.permute.xlu0 %1149
      %1151 = vrot.lane.b32.xlu0 %v1118, 64
      %v1152 = vpop.permute.xlu0 %1151
      %1153 = vrot.lane.b32.xlu0 %v1119, 64
      %v1154 = vpop.permute.xlu0 %1153
      %1155 = vrot.lane.b32.xlu0 %v1120, 64
      %v1156 = vpop.permute.xlu0 %1155
      %1157 = vrot.lane.b32.xlu0 %v1121, 64
      %v1158 = vpop.permute.xlu0 %1157
      %1159 = vrot.lane.b32.xlu0 %v1122, 64
      %v1160 = vpop.permute.xlu0 %1159
      %1161 = vrot.lane.b32.xlu0 %v1123, 64
      %v1162 = vpop.permute.xlu0 %1161
      %1163 = vrot.lane.b32.xlu0 %v1124, 64
      %v1164 = vpop.permute.xlu0 %1163
      %1165 = vrot.lane.b32.xlu0 %v1125, 64
      %v1166 = vpop.permute.xlu0 %1165
      %1167 = vrot.lane.b32.xlu0 %v1126, 64
      %v1168 = vpop.permute.xlu0 %1167
      %1169 = vrot.lane.b32.xlu0 %v1127, 64
      %v1170 = vpop.permute.xlu0 %1169
      %1171 = vrot.lane.b32.xlu0 %v1128, 64
      %v1172 = vpop.permute.xlu0 %1171
      %1173 = vrot.lane.b32.xlu0 %v1129, 64
      %v1174 = vpop.permute.xlu0 %1173
      %1175 = vrot.lane.b32.xlu0 %v1130, 64
      %v1176 = vpop.permute.xlu0 %1175
      %1177 = vrot.lane.b32.xlu0 %v1131, 64
      %v1178 = vpop.permute.xlu0 %1177
      %1179 = vrot.lane.b32.xlu0 %v1132, 64
      %v1180 = vpop.permute.xlu0 %1179
      %1197 = vst.msk [vmem:[#allocation4 + $0x8] sm:$0xff] %vm746, %v1150
      %1198 = vst.msk [vmem:[#allocation4 + $0x20] sm:$0xff] %vm746, %v1152
      %1199 = vst.msk [vmem:[#allocation4 + $0x38] sm:$0xff] %vm746, %v1154
      %1200 = vst.msk [vmem:[#allocation4 + $0x50] sm:$0xff] %vm746, %v1156
      %1201 = vst.msk [vmem:[#allocation4 + $0x68] sm:$0xff] %vm746, %v1158
      %1202 = vst.msk [vmem:[#allocation4 + $0x80] sm:$0xff] %vm746, %v1160
      %1203 = vst.msk [vmem:[#allocation4 + $0x98] sm:$0xff] %vm746, %v1162
      %1204 = vst.msk [vmem:[#allocation4 + $0xb0] sm:$0xff] %vm746, %v1164
      %1205 = vst.msk [vmem:[#allocation4 + $0xc8] sm:$0xff] %vm746, %v1166
      %1206 = vst.msk [vmem:[#allocation4 + $0xe0] sm:$0xff] %vm746, %v1168
      %1207 = vst.msk [vmem:[#allocation4 + $0xf8] sm:$0xff] %vm746, %v1170
      %1208 = vst.msk [vmem:[#allocation4 + $0x110] sm:$0xff] %vm746, %v1172
      %1209 = vst.msk [vmem:[#allocation4 + $0x128] sm:$0xff] %vm746, %v1174
      %1210 = vst.msk [vmem:[#allocation4 + $0x140] sm:$0xff] %vm746, %v1176
      %1211 = vst.msk [vmem:[#allocation4 + $0x158] sm:$0xff] %vm746, %v1178
      %1212 = vst.msk [vmem:[#allocation4 + $0x170] sm:$0xff] %vm746, %v1180
      %v1213 = vld [vmem:[%s1084 + $0x1] sm:$0xff]
      %v1214 = vld [vmem:[%s1084 + $0x9] sm:$0xff]
      %v1215 = vld [vmem:[%s1084 + $0x19] sm:$0xff]
      %v1216 = vld [vmem:[%s1084 + $0x21] sm:$0xff]
      %v1217 = vld [vmem:[%s1084 + $0x31] sm:$0xff]
      %v1218 = vld [vmem:[%s1084 + $0x39] sm:$0xff]
      %v1219 = vld [vmem:[%s1084 + $0x49] sm:$0xff]
      %v1220 = vld [vmem:[%s1084 + $0x51] sm:$0xff]
      %v1221 = vld [vmem:[%s1084 + $0x61] sm:$0xff]
      %v1222 = vld [vmem:[%s1084 + $0x69] sm:$0xff]
      %v1223 = vld [vmem:[%s1084 + $0x79] sm:$0xff]
      %v1224 = vld [vmem:[%s1084 + $0x81] sm:$0xff]
      %v1225 = vld [vmem:[%s1084 + $0x91] sm:$0xff]
      %v1226 = vld [vmem:[%s1084 + $0x99] sm:$0xff]
      %v1227 = vld [vmem:[%s1084 + $0xa9] sm:$0xff]
      %v1228 = vld [vmem:[%s1084 + $0xb1] sm:$0xff]
      %v1229 = vld [vmem:[%s1084 + $0xc1] sm:$0xff]
      %v1230 = vld [vmem:[%s1084 + $0xc9] sm:$0xff]
      %v1231 = vld [vmem:[%s1084 + $0xd9] sm:$0xff]
      %v1232 = vld [vmem:[%s1084 + $0xe1] sm:$0xff]
      %v1233 = vld [vmem:[%s1084 + $0xf1] sm:$0xff]
      %v1234 = vld [vmem:[%s1084 + $0xf9] sm:$0xff]
      %v1235 = vld [vmem:[%s1084 + $0x109] sm:$0xff]
      %v1236 = vld [vmem:[%s1084 + $0x111] sm:$0xff]
      %v1237 = vld [vmem:[%s1084 + $0x121] sm:$0xff]
      %v1238 = vld [vmem:[%s1084 + $0x129] sm:$0xff]
      %v1239 = vld [vmem:[%s1084 + $0x139] sm:$0xff]
      %v1240 = vld [vmem:[%s1084 + $0x141] sm:$0xff]
      %v1241 = vld [vmem:[%s1084 + $0x151] sm:$0xff]
      %v1242 = vld [vmem:[%s1084 + $0x159] sm:$0xff]
      %v1243 = vld [vmem:[%s1084 + $0x169] sm:$0xff]
      %v1244 = vld [vmem:[%s1084 + $0x171] sm:$0xff]
      %v1245 = vpack.c.bf16 %v1214, %v1213
      %v1246 = vpack.c.bf16 %v1216, %v1215
      %v1247 = vpack.c.bf16 %v1218, %v1217
      %v1248 = vpack.c.bf16 %v1220, %v1219
      %v1249 = vpack.c.bf16 %v1222, %v1221
      %v1250 = vpack.c.bf16 %v1224, %v1223
      %v1251 = vpack.c.bf16 %v1226, %v1225
      %v1252 = vpack.c.bf16 %v1228, %v1227
      %v1253 = vpack.c.bf16 %v1230, %v1229
      %v1254 = vpack.c.bf16 %v1232, %v1231
      %v1255 = vpack.c.bf16 %v1234, %v1233
      %v1256 = vpack.c.bf16 %v1236, %v1235
      %v1257 = vpack.c.bf16 %v1238, %v1237
      %v1258 = vpack.c.bf16 %v1240, %v1239
      %v1259 = vpack.c.bf16 %v1242, %v1241
      %v1260 = vpack.c.bf16 %v1244, %v1243
      %1277 = vrot.lane.b32.xlu0 %v1245, 96
      %v1278 = vpop.permute.xlu0 %1277
      %1279 = vrot.lane.b32.xlu0 %v1246, 96
      %v1280 = vpop.permute.xlu0 %1279
      %1281 = vrot.lane.b32.xlu0 %v1247, 96
      %v1282 = vpop.permute.xlu0 %1281
      %1283 = vrot.lane.b32.xlu0 %v1248, 96
      %v1284 = vpop.permute.xlu0 %1283
      %1285 = vrot.lane.b32.xlu0 %v1249, 96
      %v1286 = vpop.permute.xlu0 %1285
      %1287 = vrot.lane.b32.xlu0 %v1250, 96
      %v1288 = vpop.permute.xlu0 %1287
      %1289 = vrot.lane.b32.xlu0 %v1251, 96
      %v1290 = vpop.permute.xlu0 %1289
      %1291 = vrot.lane.b32.xlu0 %v1252, 96
      %v1292 = vpop.permute.xlu0 %1291
      %1293 = vrot.lane.b32.xlu0 %v1253, 96
      %v1294 = vpop.permute.xlu0 %1293
      %1295 = vrot.lane.b32.xlu0 %v1254, 96
      %v1296 = vpop.permute.xlu0 %1295
      %1297 = vrot.lane.b32.xlu0 %v1255, 96
      %v1298 = vpop.permute.xlu0 %1297
      %1299 = vrot.lane.b32.xlu0 %v1256, 96
      %v1300 = vpop.permute.xlu0 %1299
      %1301 = vrot.lane.b32.xlu0 %v1257, 96
      %v1302 = vpop.permute.xlu0 %1301
      %1303 = vrot.lane.b32.xlu0 %v1258, 96
      %v1304 = vpop.permute.xlu0 %1303
      %1305 = vrot.lane.b32.xlu0 %v1259, 96
      %v1306 = vpop.permute.xlu0 %1305
      %1307 = vrot.lane.b32.xlu0 %v1260, 96
      %v1308 = vpop.permute.xlu0 %1307
      %1325 = vst.msk [vmem:[#allocation4 + $0x8] sm:$0xff] %vm875, %v1278
      %1326 = vst.msk [vmem:[#allocation4 + $0x20] sm:$0xff] %vm875, %v1280
      %1327 = vst.msk [vmem:[#allocation4 + $0x38] sm:$0xff] %vm875, %v1282
      %1328 = vst.msk [vmem:[#allocation4 + $0x50] sm:$0xff] %vm875, %v1284
      %1329 = vst.msk [vmem:[#allocation4 + $0x68] sm:$0xff] %vm875, %v1286
      %1330 = vst.msk [vmem:[#allocation4 + $0x80] sm:$0xff] %vm875, %v1288
      %1331 = vst.msk [vmem:[#allocation4 + $0x98] sm:$0xff] %vm875, %v1290
      %1332 = vst.msk [vmem:[#allocation4 + $0xb0] sm:$0xff] %vm875, %v1292
      %1333 = vst.msk [vmem:[#allocation4 + $0xc8] sm:$0xff] %vm875, %v1294
      %1334 = vst.msk [vmem:[#allocation4 + $0xe0] sm:$0xff] %vm875, %v1296
      %1335 = vst.msk [vmem:[#allocation4 + $0xf8] sm:$0xff] %vm875, %v1298
      %1336 = vst.msk [vmem:[#allocation4 + $0x110] sm:$0xff] %vm875, %v1300
      %1337 = vst.msk [vmem:[#allocation4 + $0x128] sm:$0xff] %vm875, %v1302
      %1338 = vst.msk [vmem:[#allocation4 + $0x140] sm:$0xff] %vm875, %v1304
      %1339 = vst.msk [vmem:[#allocation4 + $0x158] sm:$0xff] %vm875, %v1306
      %1340 = vst.msk [vmem:[#allocation4 + $0x170] sm:$0xff] %vm875, %v1308
      %v1341 = vld [vmem:[%s1084 + $0x2] sm:$0xff]
      %v1342 = vld [vmem:[%s1084 + $0xa] sm:$0xff]
      %v1343 = vld [vmem:[%s1084 + $0x1a] sm:$0xff]
      %v1344 = vld [vmem:[%s1084 + $0x22] sm:$0xff]
      %v1345 = vld [vmem:[%s1084 + $0x32] sm:$0xff]
      %v1346 = vld [vmem:[%s1084 + $0x3a] sm:$0xff]
      %v1347 = vld [vmem:[%s1084 + $0x4a] sm:$0xff]
      %v1348 = vld [vmem:[%s1084 + $0x52] sm:$0xff]
      %v1349 = vld [vmem:[%s1084 + $0x62] sm:$0xff]
      %v1350 = vld [vmem:[%s1084 + $0x6a] sm:$0xff]
      %v1351 = vld [vmem:[%s1084 + $0x7a] sm:$0xff]
      %v1352 = vld [vmem:[%s1084 + $0x82] sm:$0xff]
      %v1353 = vld [vmem:[%s1084 + $0x92] sm:$0xff]
      %v1354 = vld [vmem:[%s1084 + $0x9a] sm:$0xff]
      %v1355 = vld [vmem:[%s1084 + $0xaa] sm:$0xff]
      %v1356 = vld [vmem:[%s1084 + $0xb2] sm:$0xff]
      %v1357 = vld [vmem:[%s1084 + $0xc2] sm:$0xff]
      %v1358 = vld [vmem:[%s1084 + $0xca] sm:$0xff]
      %v1359 = vld [vmem:[%s1084 + $0xda] sm:$0xff]
      %v1360 = vld [vmem:[%s1084 + $0xe2] sm:$0xff]
      %v1361 = vld [vmem:[%s1084 + $0xf2] sm:$0xff]
      %v1362 = vld [vmem:[%s1084 + $0xfa] sm:$0xff]
      %v1363 = vld [vmem:[%s1084 + $0x10a] sm:$0xff]
      %v1364 = vld [vmem:[%s1084 + $0x112] sm:$0xff]
      %v1365 = vld [vmem:[%s1084 + $0x122] sm:$0xff]
      %v1366 = vld [vmem:[%s1084 + $0x12a] sm:$0xff]
      %v1367 = vld [vmem:[%s1084 + $0x13a] sm:$0xff]
      %v1368 = vld [vmem:[%s1084 + $0x142] sm:$0xff]
      %v1369 = vld [vmem:[%s1084 + $0x152] sm:$0xff]
      %v1370 = vld [vmem:[%s1084 + $0x15a] sm:$0xff]
      %v1371 = vld [vmem:[%s1084 + $0x16a] sm:$0xff]
      %v1372 = vld [vmem:[%s1084 + $0x172] sm:$0xff]
      %v1373 = vpack.c.bf16 %v1342, %v1341
      %v1374 = vpack.c.bf16 %v1344, %v1343
      %v1375 = vpack.c.bf16 %v1346, %v1345
      %v1376 = vpack.c.bf16 %v1348, %v1347
      %v1377 = vpack.c.bf16 %v1350, %v1349
      %v1378 = vpack.c.bf16 %v1352, %v1351
      %v1379 = vpack.c.bf16 %v1354, %v1353
      %v1380 = vpack.c.bf16 %v1356, %v1355
      %v1381 = vpack.c.bf16 %v1358, %v1357
      %v1382 = vpack.c.bf16 %v1360, %v1359
      %v1383 = vpack.c.bf16 %v1362, %v1361
      %v1384 = vpack.c.bf16 %v1364, %v1363
      %v1385 = vpack.c.bf16 %v1366, %v1365
      %v1386 = vpack.c.bf16 %v1368, %v1367
      %v1387 = vpack.c.bf16 %v1370, %v1369
      %v1388 = vpack.c.bf16 %v1372, %v1371
      %1389 = vst.msk [vmem:[#allocation4 + $0x10] sm:$0xff] %vm280, %v1373
      %1390 = vst.msk [vmem:[#allocation4 + $0x28] sm:$0xff] %vm280, %v1374
      %1391 = vst.msk [vmem:[#allocation4 + $0x40] sm:$0xff] %vm280, %v1375
      %1392 = vst.msk [vmem:[#allocation4 + $0x58] sm:$0xff] %vm280, %v1376
      %1393 = vst.msk [vmem:[#allocation4 + $0x70] sm:$0xff] %vm280, %v1377
      %1394 = vst.msk [vmem:[#allocation4 + $0x88] sm:$0xff] %vm280, %v1378
      %1395 = vst.msk [vmem:[#allocation4 + $0xa0] sm:$0xff] %vm280, %v1379
      %1396 = vst.msk [vmem:[#allocation4 + $0xb8] sm:$0xff] %vm280, %v1380
      %1397 = vst.msk [vmem:[#allocation4 + $0xd0] sm:$0xff] %vm280, %v1381
      %1398 = vst.msk [vmem:[#allocation4 + $0xe8] sm:$0xff] %vm280, %v1382
      %1399 = vst.msk [vmem:[#allocation4 + $0x100] sm:$0xff] %vm280, %v1383
      %1400 = vst.msk [vmem:[#allocation4 + $0x118] sm:$0xff] %vm280, %v1384
      %1401 = vst.msk [vmem:[#allocation4 + $0x130] sm:$0xff] %vm280, %v1385
      %1402 = vst.msk [vmem:[#allocation4 + $0x148] sm:$0xff] %vm280, %v1386
      %1403 = vst.msk [vmem:[#allocation4 + $0x160] sm:$0xff] %vm280, %v1387
      %1404 = vst.msk [vmem:[#allocation4 + $0x178] sm:$0xff] %vm280, %v1388
      %v1405 = vld [vmem:[#allocation4] sm:$0xff]
      %v1406 = vld [vmem:[#allocation4 + $0x8] sm:$0xff]
      %v1407 = vld [vmem:[#allocation4 + $0x10] sm:$0xff]
      %v1408 = vld [vmem:[#allocation4 + $0x18] sm:$0xff]
      %v1409 = vld [vmem:[#allocation4 + $0x20] sm:$0xff]
      %v1410 = vld [vmem:[#allocation4 + $0x28] sm:$0xff]
      %v1411 = vld [vmem:[#allocation4 + $0x30] sm:$0xff]
      %v1412 = vld [vmem:[#allocation4 + $0x38] sm:$0xff]
      %v1413 = vld [vmem:[#allocation4 + $0x40] sm:$0xff]
      %v1414 = vld [vmem:[#allocation4 + $0x48] sm:$0xff]
      %v1415 = vld [vmem:[#allocation4 + $0x50] sm:$0xff]
      %v1416 = vld [vmem:[#allocation4 + $0x58] sm:$0xff]
      %v1417 = vld [vmem:[#allocation4 + $0x60] sm:$0xff]
      %v1418 = vld [vmem:[#allocation4 + $0x68] sm:$0xff]
      %v1419 = vld [vmem:[#allocation4 + $0x70] sm:$0xff]
      %v1420 = vld [vmem:[#allocation4 + $0x78] sm:$0xff]
      %v1421 = vld [vmem:[#allocation4 + $0x80] sm:$0xff]
      %v1422 = vld [vmem:[#allocation4 + $0x88] sm:$0xff]
      %v1423 = vld [vmem:[#allocation4 + $0x90] sm:$0xff]
      %v1424 = vld [vmem:[#allocation4 + $0x98] sm:$0xff]
      %v1425 = vld [vmem:[#allocation4 + $0xa0] sm:$0xff]
      %v1426 = vld [vmem:[#allocation4 + $0xa8] sm:$0xff]
      %v1427 = vld [vmem:[#allocation4 + $0xb0] sm:$0xff]
      %v1428 = vld [vmem:[#allocation4 + $0xb8] sm:$0xff]
      %v1429 = vld [vmem:[#allocation4 + $0xc0] sm:$0xff]
      %v1430 = vld [vmem:[#allocation4 + $0xc8] sm:$0xff]
      %v1431 = vld [vmem:[#allocation4 + $0xd0] sm:$0xff]
      %v1432 = vld [vmem:[#allocation4 + $0xd8] sm:$0xff]
      %v1433 = vld [vmem:[#allocation4 + $0xe0] sm:$0xff]
      %v1434 = vld [vmem:[#allocation4 + $0xe8] sm:$0xff]
      %v1435 = vld [vmem:[#allocation4 + $0xf0] sm:$0xff]
      %v1436 = vld [vmem:[#allocation4 + $0xf8] sm:$0xff]
      %v1437 = vld [vmem:[#allocation4 + $0x100] sm:$0xff]
      %v1438 = vld [vmem:[#allocation4 + $0x108] sm:$0xff]
      %v1439 = vld [vmem:[#allocation4 + $0x110] sm:$0xff]
      %v1440 = vld [vmem:[#allocation4 + $0x118] sm:$0xff]
      %v1441 = vld [vmem:[#allocation4 + $0x120] sm:$0xff]
      %v1442 = vld [vmem:[#allocation4 + $0x128] sm:$0xff]
      %v1443 = vld [vmem:[#allocation4 + $0x130] sm:$0xff]
      %v1444 = vld [vmem:[#allocation4 + $0x138] sm:$0xff]
      %v1445 = vld [vmem:[#allocation4 + $0x140] sm:$0xff]
      %v1446 = vld [vmem:[#allocation4 + $0x148] sm:$0xff]
      %v1447 = vld [vmem:[#allocation4 + $0x150] sm:$0xff]
      %v1448 = vld [vmem:[#allocation4 + $0x158] sm:$0xff]
      %v1449 = vld [vmem:[#allocation4 + $0x160] sm:$0xff]
      %v1450 = vld [vmem:[#allocation4 + $0x168] sm:$0xff]
      %v1451 = vld [vmem:[#allocation4 + $0x170] sm:$0xff]
      %v1452 = vld [vmem:[#allocation4 + $0x178] sm:$0xff]
      %v1453 = vld [vmem:[%s1] sm:$0xf]
      %v1454 = vld [vmem:[%s1 + $0x4] sm:$0xf]
      %v1455 = vld [vmem:[%s1 + $0x8] sm:$0xf]
      %v1456 = vld [vmem:[%s1 + $0xc] sm:$0xf]
      %v1457 = vld [vmem:[%s1 + $0x10] sm:$0xf]
      %v1458 = vld [vmem:[%s1 + $0x14] sm:$0xf]
      %v1459 = vld [vmem:[%s1 + $0x18] sm:$0xf]
      %v1460 = vld [vmem:[%s1 + $0x1c] sm:$0xf]
      %v1461 = vld [vmem:[%s1 + $0x20] sm:$0xf]
      %v1462 = vld [vmem:[%s1 + $0x24] sm:$0xf]
      %v1463 = vld [vmem:[%s1 + $0x28] sm:$0xf]
      %v1464 = vld [vmem:[%s1 + $0x2c] sm:$0xf]
      %v1465 = vld [vmem:[%s1 + $0x30] sm:$0xf]
      %v1466 = vld [vmem:[%s1 + $0x34] sm:$0xf]
      %v1467 = vld [vmem:[%s1 + $0x38] sm:$0xf]
      %v1468 = vld [vmem:[%s1 + $0x3c] sm:$0xf]
      %v1469 = vld [vmem:[%s1 + $0x40] sm:$0xf]
      %v1470 = vld [vmem:[%s1 + $0x44] sm:$0xf]
      %v1471 = vld [vmem:[%s1 + $0x48] sm:$0xf]
      %v1472 = vld [vmem:[%s1 + $0x4c] sm:$0xf]
      %v1473 = vld [vmem:[%s1 + $0x50] sm:$0xf]
      %v1474 = vld [vmem:[%s1 + $0x54] sm:$0xf]
      %v1475 = vld [vmem:[%s1 + $0x58] sm:$0xf]
      %v1476 = vld [vmem:[%s1 + $0x5c] sm:$0xf]
      %v1477 = vld [vmem:[%s1 + $0x60] sm:$0xf]
      %v1478 = vld [vmem:[%s1 + $0x64] sm:$0xf]
      %v1479 = vld [vmem:[%s1 + $0x68] sm:$0xf]
      %v1480 = vld [vmem:[%s1 + $0x6c] sm:$0xf]
      %v1481 = vld [vmem:[%s1 + $0x70] sm:$0xf]
      %v1482 = vld [vmem:[%s1 + $0x74] sm:$0xf]
      %v1483 = vld [vmem:[%s1 + $0x78] sm:$0xf]
      %v1484 = vld [vmem:[%s1 + $0x7c] sm:$0xf]
      %v1485 = vld [vmem:[%s1 + $0x80] sm:$0xf]
      %v1486 = vld [vmem:[%s1 + $0x84] sm:$0xf]
      %v1487 = vld [vmem:[%s1 + $0x88] sm:$0xf]
      %v1488 = vld [vmem:[%s1 + $0x8c] sm:$0xf]
      %v1489 = vld [vmem:[%s2] sm:$0x1]
      %v1491 = vlaneseq
      %v1492 = vshrl.u32 %v1491, 7
      %v1493 = vsub.s32 0, %v1492
      %v1494 = vrot.slane %v1489, %v1493
      %v1532 = vunpack.c.l.b16 %v1453
      %v1533 = vunpack.c.l.b16 %v1454
      %v1534 = vunpack.c.l.b16 %v1455
      %v1535 = vunpack.c.l.b16 %v1456
      %v1536 = vunpack.c.l.b16 %v1457
      %v1537 = vunpack.c.l.b16 %v1458
      %v1538 = vunpack.c.l.b16 %v1459
      %v1539 = vunpack.c.l.b16 %v1460
      %v1540 = vunpack.c.l.b16 %v1461
      %v1541 = vunpack.c.l.b16 %v1462
      %v1542 = vunpack.c.l.b16 %v1463
      %v1543 = vunpack.c.l.b16 %v1464
      %v1544 = vunpack.c.l.b16 %v1465
      %v1545 = vunpack.c.l.b16 %v1466
      %v1546 = vunpack.c.l.b16 %v1467
      %v1547 = vunpack.c.l.b16 %v1468
      %v1548 = vunpack.c.l.b16 %v1469
      %v1549 = vunpack.c.l.b16 %v1470
      %v1550 = vunpack.c.l.b16 %v1471
      %v1551 = vunpack.c.l.b16 %v1472
      %v1552 = vunpack.c.l.b16 %v1473
      %v1553 = vunpack.c.l.b16 %v1474
      %v1554 = vunpack.c.l.b16 %v1475
      %v1555 = vunpack.c.l.b16 %v1476
      %v1556 = vunpack.c.l.b16 %v1477
      %v1557 = vunpack.c.l.b16 %v1478
      %v1558 = vunpack.c.l.b16 %v1479
      %v1559 = vunpack.c.l.b16 %v1480
      %v1560 = vunpack.c.l.b16 %v1481
      %v1561 = vunpack.c.l.b16 %v1482
      %v1562 = vunpack.c.l.b16 %v1483
      %v1563 = vunpack.c.l.b16 %v1484
      %v1564 = vunpack.c.l.b16 %v1485
      %v1565 = vunpack.c.l.b16 %v1486
      %v1566 = vunpack.c.l.b16 %v1487
      %v1567 = vunpack.c.l.b16 %v1488
      %v1568 = vpack.c.b16 %v1533, %v1532
      %v1569 = vpack.c.b16 %v1535, %v1534
      %v1570 = vpack.c.b16 %v1537, %v1536
      %v1571 = vpack.c.b16 %v1539, %v1538
      %v1572 = vpack.c.b16 %v1541, %v1540
      %v1573 = vpack.c.b16 %v1543, %v1542
      %v1574 = vpack.c.b16 %v1545, %v1544
      %v1575 = vpack.c.b16 %v1547, %v1546
      %v1576 = vpack.c.b16 %v1549, %v1548
      %v1577 = vpack.c.b16 %v1551, %v1550
      %v1578 = vpack.c.b16 %v1553, %v1552
      %v1579 = vpack.c.b16 %v1555, %v1554
      %v1580 = vpack.c.b16 %v1557, %v1556
      %v1581 = vpack.c.b16 %v1559, %v1558
      %v1582 = vpack.c.b16 %v1561, %v1560
      %v1583 = vpack.c.b16 %v1563, %v1562
      %v1584 = vpack.c.b16 %v1565, %v1564
      %v1585 = vpack.c.b16 %v1567, %v1566
      %v1605 = vsel %vm280, %v1407, 0
      %v1608 = vsel %vm280, %v1410, 0
      %v1611 = vsel %vm280, %v1413, 0
      %v1614 = vsel %vm280, %v1416, 0
      %v1617 = vsel %vm280, %v1419, 0
      %v1620 = vsel %vm280, %v1422, 0
      %v1623 = vsel %vm280, %v1425, 0
      %v1626 = vsel %vm280, %v1428, 0
      %v1629 = vsel %vm280, %v1431, 0
      %v1632 = vsel %vm280, %v1434, 0
      %v1635 = vsel %vm280, %v1437, 0
      %v1638 = vsel %vm280, %v1440, 0
      %v1641 = vsel %vm280, %v1443, 0
      %v1644 = vsel %vm280, %v1446, 0
      %v1647 = vsel %vm280, %v1449, 0
      %v1650 = vsel %vm280, %v1452, 0
      %1652 = vmatprep.subr.bf16.mxu0 0
      %1653 = vmatpush1.bf16.msra.mxu0 %v1568
      %1654 = vmatprep.subr.bf16.mxu0 0
      %1655 = vmatpush1.bf16.msra.mxu0 %v1569
      %1656 = vmatprep.subr.bf16.mxu0 0
      %1657 = vmatpush1.bf16.msra.mxu0 %v1570
      %1658 = vmatprep.subr.bf16.mxu0 0
      %1659 = vmatpush1.bf16.msra.mxu0 %v1571
      %1660 = vmatprep.subr.bf16.mxu0 0
      %1661 = vmatpush1.bf16.msra.mxu0 %v1572
      %1662 = vmatprep.subr.bf16.mxu0 0
      %1663 = vmatpush1.bf16.msra.mxu0 %v1573
      %1664 = vmatprep.subr.bf16.mxu0 0
      %1665 = vmatpush1.bf16.msra.mxu0 %v1574
      %1666 = vmatprep.subr.bf16.mxu0 0
      %1667 = vmatpush1.bf16.msra.mxu0 %v1575
      %1668 = vmatprep.subr.bf16.mxu0 0
      %1669 = vmatpush1.bf16.msra.mxu0 %v1576
      %1670 = vmatprep.subr.bf16.mxu0 0
      %1671 = vmatpush1.bf16.msra.mxu0 %v1577
      %1672 = vmatprep.subr.bf16.mxu0 0
      %1673 = vmatpush1.bf16.msra.mxu0 %v1578
      %1674 = vmatprep.subr.bf16.mxu0 0
      %1675 = vmatpush1.bf16.msra.mxu0 %v1579
      %1676 = vmatprep.subr.bf16.mxu0 0
      %1677 = vmatpush1.bf16.msra.mxu0 %v1580
      %1678 = vmatprep.subr.bf16.mxu0 0
      %1679 = vmatpush1.bf16.msra.mxu0 %v1581
      %1680 = vmatprep.subr.bf16.mxu0 0
      %1681 = vmatpush1.bf16.msra.mxu0 %v1582
      %1682 = vmatprep.subr.bf16.mxu0 0
      %1683 = vmatpush1.bf16.msra.mxu0 %v1583
      %1684 = vmatprep.mubr.bf16.mxu0 %v1406
      %1685 = vmatmul.mubr.bf16.gmra.mrb[0].mxu0 %v1405
      %v1686 = vpop.f32.mrb[0].mxu0
      %v1687 = vadd.f32 %v1494, %v1686
      %v1688 = vpop.f32.mrb[0].mxu0
      %v1689 = vpop.f32.mrb[0].mxu0
      %v1690 = vadd.f32 %v1494, %v1689
      %v1691 = vpop.f32.mrb[0].mxu0
      %1692 = vmatprep.mubr.bf16.mxu0 %v1409
      %1693 = vmatmul.mubr.bf16.gmra.mrb[0].mxu0 %v1408
      %v1694 = vpop.f32.mrb[0].mxu0
      %v1695 = vadd.f32 %v1494, %v1694
      %v1696 = vpop.f32.mrb[0].mxu0
      %v1697 = vpop.f32.mrb[0].mxu0
      %v1698 = vadd.f32 %v1494, %v1697
      %v1699 = vpop.f32.mrb[0].mxu0
      %1700 = vmatprep.mubr.bf16.mxu0 %v1412
      %1701 = vmatmul.mubr.bf16.gmra.mrb[0].mxu0 %v1411
      %v1702 = vpop.f32.mrb[0].mxu0
      %v1703 = vadd.f32 %v1494, %v1702
      %v1704 = vpop.f32.mrb[0].mxu0
      %v1705 = vpop.f32.mrb[0].mxu0
      %v1706 = vadd.f32 %v1494, %v1705
      %v1707 = vpop.f32.mrb[0].mxu0
      %1708 = vmatprep.mubr.bf16.mxu0 %v1415
      %1709 = vmatmul.mubr.bf16.gmra.mrb[0].mxu0 %v1414
      %v1710 = vpop.f32.mrb[0].mxu0
      %v1711 = vadd.f32 %v1494, %v1710
      %v1712 = vpop.f32.mrb[0].mxu0
      %v1713 = vpop.f32.mrb[0].mxu0
      %v1714 = vadd.f32 %v1494, %v1713
      %v1715 = vpop.f32.mrb[0].mxu0
      %1716 = vmatprep.mubr.bf16.mxu0 %v1418
      %1717 = vmatmul.mubr.bf16.gmra.mrb[0].mxu0 %v1417
      %v1718 = vpop.f32.mrb[0].mxu0
      %v1719 = vadd.f32 %v1494, %v1718
      %v1720 = vpop.f32.mrb[0].mxu0
      %v1721 = vpop.f32.mrb[0].mxu0
      %v1722 = vadd.f32 %v1494, %v1721
      %v1723 = vpop.f32.mrb[0].mxu0
      %1724 = vmatprep.mubr.bf16.mxu0 %v1421
      %1725 = vmatmul.mubr.bf16.gmra.mrb[0].mxu0 %v1420
      %v1726 = vpop.f32.mrb[0].mxu0
      %v1727 = vadd.f32 %v1494, %v1726
      %v1728 = vpop.f32.mrb[0].mxu0
      %v1729 = vpop.f32.mrb[0].mxu0
      %v1730 = vadd.f32 %v1494, %v1729
      %v1731 = vpop.f32.mrb[0].mxu0
      %1732 = vmatprep.mubr.bf16.mxu0 %v1424
      %1733 = vmatmul.mubr.bf16.gmra.mrb[0].mxu0 %v1423
      %v1734 = vpop.f32.mrb[0].mxu0
      %v1735 = vadd.f32 %v1494, %v1734
      %v1736 = vpop.f32.mrb[0].mxu0
      %v1737 = vpop.f32.mrb[0].mxu0
      %v1738 = vadd.f32 %v1494, %v1737
      %v1739 = vpop.f32.mrb[0].mxu0
      %1740 = vmatprep.mubr.bf16.mxu0 %v1427
      %1741 = vmatmul.mubr.bf16.gmra.mrb[0].mxu0 %v1426
      %v1742 = vpop.f32.mrb[0].mxu0
      %v1743 = vadd.f32 %v1494, %v1742
      %v1744 = vpop.f32.mrb[0].mxu0
      %v1745 = vpop.f32.mrb[0].mxu0
      %v1746 = vadd.f32 %v1494, %v1745
      %v1747 = vpop.f32.mrb[0].mxu0
      %1748 = vmatprep.mubr.bf16.mxu0 %v1430
      %1749 = vmatmul.mubr.bf16.gmra.mrb[0].mxu0 %v1429
      %v1750 = vpop.f32.mrb[0].mxu0
      %v1751 = vadd.f32 %v1494, %v1750
      %v1752 = vpop.f32.mrb[0].mxu0
      %v1753 = vpop.f32.mrb[0].mxu0
      %v1754 = vadd.f32 %v1494, %v1753
      %v1755 = vpop.f32.mrb[0].mxu0
      %1756 = vmatprep.mubr.bf16.mxu0 %v1433
      %1757 = vmatmul.mubr.bf16.gmra.mrb[0].mxu0 %v1432
      %v1758 = vpop.f32.mrb[0].mxu0
      %v1759 = vadd.f32 %v1494, %v1758
      %v1760 = vpop.f32.mrb[0].mxu0
      %v1761 = vpop.f32.mrb[0].mxu0
      %v1762 = vadd.f32 %v1494, %v1761
      %v1763 = vpop.f32.mrb[0].mxu0
      %1764 = vmatprep.mubr.bf16.mxu0 %v1436
      %1765 = vmatmul.mubr.bf16.gmra.mrb[0].mxu0 %v1435
      %v1766 = vpop.f32.mrb[0].mxu0
      %v1767 = vadd.f32 %v1494, %v1766
      %v1768 = vpop.f32.mrb[0].mxu0
      %v1769 = vpop.f32.mrb[0].mxu0
      %v1770 = vadd.f32 %v1494, %v1769
      %v1771 = vpop.f32.mrb[0].mxu0
      %1772 = vmatprep.mubr.bf16.mxu0 %v1439
      %1773 = vmatmul.mubr.bf16.gmra.mrb[0].mxu0 %v1438
      %v1774 = vpop.f32.mrb[0].mxu0
      %v1775 = vadd.f32 %v1494, %v1774
      %v1776 = vpop.f32.mrb[0].mxu0
      %v1777 = vpop.f32.mrb[0].mxu0
      %v1778 = vadd.f32 %v1494, %v1777
      %v1779 = vpop.f32.mrb[0].mxu0
      %1780 = vmatprep.mubr.bf16.mxu0 %v1442
      %1781 = vmatmul.mubr.bf16.gmra.mrb[0].mxu0 %v1441
      %v1782 = vpop.f32.mrb[0].mxu0
      %v1783 = vadd.f32 %v1494, %v1782
      %v1784 = vpop.f32.mrb[0].mxu0
      %v1785 = vpop.f32.mrb[0].mxu0
      %v1786 = vadd.f32 %v1494, %v1785
      %v1787 = vpop.f32.mrb[0].mxu0
      %1788 = vmatprep.mubr.bf16.mxu0 %v1445
      %1789 = vmatmul.mubr.bf16.gmra.mrb[0].mxu0 %v1444
      %v1790 = vpop.f32.mrb[0].mxu0
      %v1791 = vadd.f32 %v1494, %v1790
      %v1792 = vpop.f32.mrb[0].mxu0
      %v1793 = vpop.f32.mrb[0].mxu0
      %v1794 = vadd.f32 %v1494, %v1793
      %v1795 = vpop.f32.mrb[0].mxu0
      %1796 = vmatprep.mubr.bf16.mxu0 %v1448
      %1797 = vmatmul.mubr.bf16.gmra.mrb[0].mxu0 %v1447
      %v1798 = vpop.f32.mrb[0].mxu0
      %v1799 = vadd.f32 %v1494, %v1798
      %v1800 = vpop.f32.mrb[0].mxu0
      %v1801 = vpop.f32.mrb[0].mxu0
      %v1802 = vadd.f32 %v1494, %v1801
      %v1803 = vpop.f32.mrb[0].mxu0
      %1804 = vmatprep.mubr.bf16.mxu0 %v1451
      %1805 = vmatmul.mubr.bf16.gmra.mrb[0].mxu0 %v1450
      %v1806 = vpop.f32.mrb[0].mxu0
      %v1807 = vadd.f32 %v1494, %v1806
      %v1808 = vpop.f32.mrb[0].mxu0
      %v1809 = vpop.f32.mrb[0].mxu0
      %v1810 = vadd.f32 %v1494, %v1809
      %v1811 = vpop.f32.mrb[0].mxu0
      %1812 = vdwg.mxu0
      %1813 = vmatprep.subr.bf16.mxu0 0
      %1814 = vmatpush1.bf16.msra.mxu0 %v1584
      %1815 = vmatprep.subr.bf16.mxu0 0
      %1816 = vmatpush1.bf16.msra.mxu0 %v1585
      %1817 = vmatprep.subr.bf16.mxu0 0
      %1818 = vmatpush1.bf16.msra.mxu0 0
      %1819 = vmatprep.subr.bf16.mxu0 0
      %1820 = vmatpush1.bf16.msra.mxu0 0
      %1821 = vmatprep.subr.bf16.mxu0 0
      %1822 = vmatpush1.bf16.msra.mxu0 0
      %1823 = vmatprep.subr.bf16.mxu0 0
      %1824 = vmatpush1.bf16.msra.mxu0 0
      %1825 = vmatprep.subr.bf16.mxu0 0
      %1826 = vmatpush1.bf16.msra.mxu0 0
      %1827 = vmatprep.subr.bf16.mxu0 0
      %1828 = vmatpush1.bf16.msra.mxu0 0
      %1829 = vmatprep.subr.bf16.mxu0 0
      %1830 = vmatpush1.bf16.msra.mxu0 0
      %1831 = vmatprep.subr.bf16.mxu0 0
      %1832 = vmatpush1.bf16.msra.mxu0 0
      %1833 = vmatprep.subr.bf16.mxu0 0
      %1834 = vmatpush1.bf16.msra.mxu0 0
      %1835 = vmatprep.subr.bf16.mxu0 0
      %1836 = vmatpush1.bf16.msra.mxu0 0
      %1837 = vmatprep.subr.bf16.mxu0 0
      %1838 = vmatpush1.bf16.msra.mxu0 0
      %1839 = vmatprep.subr.bf16.mxu0 0
      %1840 = vmatpush1.bf16.msra.mxu0 0
      %1841 = vmatprep.subr.bf16.mxu0 0
      %1842 = vmatpush1.bf16.msra.mxu0 0
      %1843 = vmatprep.subr.bf16.mxu0 0
      %1844 = vmatpush1.bf16.msra.mxu0 0
      %1845 = vmatprep.mubr.bf16.mxu0 0
      %1846 = vmatmul.mubr.bf16.gmra.mrb[0].mxu0 %v1605
      %v1847 = vpop.f32.mrb[0].mxu0
      %v1848 = vadd.f32 %v1687, %v1847
      %v1849 = vpop.f32.mrb[0].mxu0
      %v1850 = vpop.f32.mrb[0].mxu0
      %v1851 = vadd.f32 %v1690, %v1850
      %v1852 = vpop.f32.mrb[0].mxu0
      %1853 = vmatprep.mubr.bf16.mxu0 0
      %1854 = vmatmul.mubr.bf16.gmra.mrb[0].mxu0 %v1608
      %v1855 = vpop.f32.mrb[0].mxu0
      %v1856 = vadd.f32 %v1695, %v1855
      %v1857 = vpop.f32.mrb[0].mxu0
      %v1858 = vpop.f32.mrb[0].mxu0
      %v1859 = vadd.f32 %v1698, %v1858
      %v1860 = vpop.f32.mrb[0].mxu0
      %1861 = vmatprep.mubr.bf16.mxu0 0
      %1862 = vmatmul.mubr.bf16.gmra.mrb[0].mxu0 %v1611
      %v1863 = vpop.f32.mrb[0].mxu0
      %v1864 = vadd.f32 %v1703, %v1863
      %v1865 = vpop.f32.mrb[0].mxu0
      %v1866 = vpop.f32.mrb[0].mxu0
      %v1867 = vadd.f32 %v1706, %v1866
      %v1868 = vpop.f32.mrb[0].mxu0
      %1869 = vmatprep.mubr.bf16.mxu0 0
      %1870 = vmatmul.mubr.bf16.gmra.mrb[0].mxu0 %v1614
      %v1871 = vpop.f32.mrb[0].mxu0
      %v1872 = vadd.f32 %v1711, %v1871
      %v1873 = vpop.f32.mrb[0].mxu0
      %v1874 = vpop.f32.mrb[0].mxu0
      %v1875 = vadd.f32 %v1714, %v1874
      %v1876 = vpop.f32.mrb[0].mxu0
      %1877 = vmatprep.mubr.bf16.mxu0 0
      %1878 = vmatmul.mubr.bf16.gmra.mrb[0].mxu0 %v1617
      %v1879 = vpop.f32.mrb[0].mxu0
      %v1880 = vadd.f32 %v1719, %v1879
      %v1881 = vpop.f32.mrb[0].mxu0
      %v1882 = vpop.f32.mrb[0].mxu0
      %v1883 = vadd.f32 %v1722, %v1882
      %v1884 = vpop.f32.mrb[0].mxu0
      %1885 = vmatprep.mubr.bf16.mxu0 0
      %1886 = vmatmul.mubr.bf16.gmra.mrb[0].mxu0 %v1620
      %v1887 = vpop.f32.mrb[0].mxu0
      %v1888 = vadd.f32 %v1727, %v1887
      %v1889 = vpop.f32.mrb[0].mxu0
      %v1890 = vpop.f32.mrb[0].mxu0
      %v1891 = vadd.f32 %v1730, %v1890
      %v1892 = vpop.f32.mrb[0].mxu0
      %1893 = vmatprep.mubr.bf16.mxu0 0
      %1894 = vmatmul.mubr.bf16.gmra.mrb[0].mxu0 %v1623
      %v1895 = vpop.f32.mrb[0].mxu0
      %v1896 = vadd.f32 %v1735, %v1895
      %v1897 = vpop.f32.mrb[0].mxu0
      %v1898 = vpop.f32.mrb[0].mxu0
      %v1899 = vadd.f32 %v1738, %v1898
      %v1900 = vpop.f32.mrb[0].mxu0
      %1901 = vmatprep.mubr.bf16.mxu0 0
      %1902 = vmatmul.mubr.bf16.gmra.mrb[0].mxu0 %v1626
      %v1903 = vpop.f32.mrb[0].mxu0
      %v1904 = vadd.f32 %v1743, %v1903
      %v1905 = vpop.f32.mrb[0].mxu0
      %v1906 = vpop.f32.mrb[0].mxu0
      %v1907 = vadd.f32 %v1746, %v1906
      %v1908 = vpop.f32.mrb[0].mxu0
      %1909 = vmatprep.mubr.bf16.mxu0 0
      %1910 = vmatmul.mubr.bf16.gmra.mrb[0].mxu0 %v1629
      %v1911 = vpop.f32.mrb[0].mxu0
      %v1912 = vadd.f32 %v1751, %v1911
      %v1913 = vpop.f32.mrb[0].mxu0
      %v1914 = vpop.f32.mrb[0].mxu0
      %v1915 = vadd.f32 %v1754, %v1914
      %v1916 = vpop.f32.mrb[0].mxu0
      %1917 = vmatprep.mubr.bf16.mxu0 0
      %1918 = vmatmul.mubr.bf16.gmra.mrb[0].mxu0 %v1632
      %v1919 = vpop.f32.mrb[0].mxu0
      %v1920 = vadd.f32 %v1759, %v1919
      %v1921 = vpop.f32.mrb[0].mxu0
      %v1922 = vpop.f32.mrb[0].mxu0
      %v1923 = vadd.f32 %v1762, %v1922
      %v1924 = vpop.f32.mrb[0].mxu0
      %1925 = vmatprep.mubr.bf16.mxu0 0
      %1926 = vmatmul.mubr.bf16.gmra.mrb[0].mxu0 %v1635
      %v1927 = vpop.f32.mrb[0].mxu0
      %v1928 = vadd.f32 %v1767, %v1927
      %v1929 = vpop.f32.mrb[0].mxu0
      %v1930 = vpop.f32.mrb[0].mxu0
      %v1931 = vadd.f32 %v1770, %v1930
      %v1932 = vpop.f32.mrb[0].mxu0
      %1933 = vmatprep.mubr.bf16.mxu0 0
      %1934 = vmatmul.mubr.bf16.gmra.mrb[0].mxu0 %v1638
      %v1935 = vpop.f32.mrb[0].mxu0
      %v1936 = vadd.f32 %v1775, %v1935
      %v1937 = vpop.f32.mrb[0].mxu0
      %v1938 = vpop.f32.mrb[0].mxu0
      %v1939 = vadd.f32 %v1778, %v1938
      %v1940 = vpop.f32.mrb[0].mxu0
      %1941 = vmatprep.mubr.bf16.mxu0 0
      %1942 = vmatmul.mubr.bf16.gmra.mrb[0].mxu0 %v1641
      %v1943 = vpop.f32.mrb[0].mxu0
      %v1944 = vadd.f32 %v1783, %v1943
      %v1945 = vpop.f32.mrb[0].mxu0
      %v1946 = vpop.f32.mrb[0].mxu0
      %v1947 = vadd.f32 %v1786, %v1946
      %v1948 = vpop.f32.mrb[0].mxu0
      %1949 = vmatprep.mubr.bf16.mxu0 0
      %1950 = vmatmul.mubr.bf16.gmra.mrb[0].mxu0 %v1644
      %v1951 = vpop.f32.mrb[0].mxu0
      %v1952 = vadd.f32 %v1791, %v1951
      %v1953 = vpop.f32.mrb[0].mxu0
      %v1954 = vpop.f32.mrb[0].mxu0
      %v1955 = vadd.f32 %v1794, %v1954
      %v1956 = vpop.f32.mrb[0].mxu0
      %1957 = vmatprep.mubr.bf16.mxu0 0
      %1958 = vmatmul.mubr.bf16.gmra.mrb[0].mxu0 %v1647
      %v1959 = vpop.f32.mrb[0].mxu0
      %v1960 = vadd.f32 %v1799, %v1959
      %v1961 = vpop.f32.mrb[0].mxu0
      %v1962 = vpop.f32.mrb[0].mxu0
      %v1963 = vadd.f32 %v1802, %v1962
      %v1964 = vpop.f32.mrb[0].mxu0
      %1965 = vmatprep.mubr.bf16.mxu0 0
      %1966 = vmatmul.mubr.bf16.gmra.mrb[0].mxu0 %v1650
      %v1967 = vpop.f32.mrb[0].mxu0
      %v1968 = vadd.f32 %v1807, %v1967
      %v1969 = vpop.f32.mrb[0].mxu0
      %v1970 = vpop.f32.mrb[0].mxu0
      %v1971 = vadd.f32 %v1810, %v1970
      %v1972 = vpop.f32.mrb[0].mxu0
      %1973 = vdwg.mxu0
      %v1974 = vmax.f32 %v1848, 0.0
      %v1975 = vmax.f32 %v1851, 0.0
      %v1976 = vmax.f32 %v1856, 0.0
      %v1977 = vmax.f32 %v1859, 0.0
      %v1978 = vmax.f32 %v1864, 0.0
      %v1979 = vmax.f32 %v1867, 0.0
      %v1980 = vmax.f32 %v1872, 0.0
      %v1981 = vmax.f32 %v1875, 0.0
      %v1982 = vmax.f32 %v1880, 0.0
      %v1983 = vmax.f32 %v1883, 0.0
      %v1984 = vmax.f32 %v1888, 0.0
      %v1985 = vmax.f32 %v1891, 0.0
      %v1986 = vmax.f32 %v1896, 0.0
      %v1987 = vmax.f32 %v1899, 0.0
      %v1988 = vmax.f32 %v1904, 0.0
      %v1989 = vmax.f32 %v1907, 0.0
      %v1990 = vmax.f32 %v1912, 0.0
      %v1991 = vmax.f32 %v1915, 0.0
      %v1992 = vmax.f32 %v1920, 0.0
      %v1993 = vmax.f32 %v1923, 0.0
      %v1994 = vmax.f32 %v1928, 0.0
      %v1995 = vmax.f32 %v1931, 0.0
      %v1996 = vmax.f32 %v1936, 0.0
      %v1997 = vmax.f32 %v1939, 0.0
      %v1998 = vmax.f32 %v1944, 0.0
      %v1999 = vmax.f32 %v1947, 0.0
      %v2000 = vmax.f32 %v1952, 0.0
      %v2001 = vmax.f32 %v1955, 0.0
      %v2002 = vmax.f32 %v1960, 0.0
      %v2003 = vmax.f32 %v1963, 0.0
      %v2004 = vmax.f32 %v1968, 0.0
      %v2005 = vmax.f32 %v1971, 0.0
      %vm2006 = vcmp.ge.f32.partialorder %v1848, 0.0
      %vm2007 = vcmp.ge.f32.partialorder %v1851, 0.0
      %vm2008 = vcmp.ge.f32.partialorder %v1856, 0.0
      %vm2009 = vcmp.ge.f32.partialorder %v1859, 0.0
      %vm2010 = vcmp.ge.f32.partialorder %v1864, 0.0
      %vm2011 = vcmp.ge.f32.partialorder %v1867, 0.0
      %vm2012 = vcmp.ge.f32.partialorder %v1872, 0.0
      %vm2013 = vcmp.ge.f32.partialorder %v1875, 0.0
      %vm2014 = vcmp.ge.f32.partialorder %v1880, 0.0
      %vm2015 = vcmp.ge.f32.partialorder %v1883, 0.0
      %vm2016 = vcmp.ge.f32.partialorder %v1888, 0.0
      %vm2017 = vcmp.ge.f32.partialorder %v1891, 0.0
      %vm2018 = vcmp.ge.f32.partialorder %v1896, 0.0
      %vm2019 = vcmp.ge.f32.partialorder %v1899, 0.0
      %vm2020 = vcmp.ge.f32.partialorder %v1904, 0.0
      %vm2021 = vcmp.ge.f32.partialorder %v1907, 0.0
      %vm2022 = vcmp.ge.f32.partialorder %v1912, 0.0
      %vm2023 = vcmp.ge.f32.partialorder %v1915, 0.0
      %vm2024 = vcmp.ge.f32.partialorder %v1920, 0.0
      %vm2025 = vcmp.ge.f32.partialorder %v1923, 0.0
      %vm2026 = vcmp.ge.f32.partialorder %v1928, 0.0
      %vm2027 = vcmp.ge.f32.partialorder %v1931, 0.0
      %vm2028 = vcmp.ge.f32.partialorder %v1936, 0.0
      %vm2029 = vcmp.ge.f32.partialorder %v1939, 0.0
      %vm2030 = vcmp.ge.f32.partialorder %v1944, 0.0
      %vm2031 = vcmp.ge.f32.partialorder %v1947, 0.0
      %vm2032 = vcmp.ge.f32.partialorder %v1952, 0.0
      %vm2033 = vcmp.ge.f32.partialorder %v1955, 0.0
      %vm2034 = vcmp.ge.f32.partialorder %v1960, 0.0
      %vm2035 = vcmp.ge.f32.partialorder %v1963, 0.0
      %vm2036 = vcmp.ge.f32.partialorder %v1968, 0.0
      %vm2037 = vcmp.ge.f32.partialorder %v1971, 0.0
      %v2038 = vmul.f32 %v1848, 0.1
      %v2039 = vmul.f32 %v1851, 0.1
      %v2040 = vmul.f32 %v1856, 0.1
      %v2041 = vmul.f32 %v1859, 0.1
      %v2042 = vmul.f32 %v1864, 0.1
      %v2043 = vmul.f32 %v1867, 0.1
      %v2044 = vmul.f32 %v1872, 0.1
      %v2045 = vmul.f32 %v1875, 0.1
      %v2046 = vmul.f32 %v1880, 0.1
      %v2047 = vmul.f32 %v1883, 0.1
      %v2048 = vmul.f32 %v1888, 0.1
      %v2049 = vmul.f32 %v1891, 0.1
      %v2050 = vmul.f32 %v1896, 0.1
      %v2051 = vmul.f32 %v1899, 0.1
      %v2052 = vmul.f32 %v1904, 0.1
      %v2053 = vmul.f32 %v1907, 0.1
      %v2054 = vmul.f32 %v1912, 0.1
      %v2055 = vmul.f32 %v1915, 0.1
      %v2056 = vmul.f32 %v1920, 0.1
      %v2057 = vmul.f32 %v1923, 0.1
      %v2058 = vmul.f32 %v1928, 0.1
      %v2059 = vmul.f32 %v1931, 0.1
      %v2060 = vmul.f32 %v1936, 0.1
      %v2061 = vmul.f32 %v1939, 0.1
      %v2062 = vmul.f32 %v1944, 0.1
      %v2063 = vmul.f32 %v1947, 0.1
      %v2064 = vmul.f32 %v1952, 0.1
      %v2065 = vmul.f32 %v1955, 0.1
      %v2066 = vmul.f32 %v1960, 0.1
      %v2067 = vmul.f32 %v1963, 0.1
      %v2068 = vmul.f32 %v1968, 0.1
      %v2069 = vmul.f32 %v1971, 0.1
      %v2070 = vsel %vm2006, %v1848, %v2038
      %v2071 = vsel %vm2007, %v1851, %v2039
      %v2072 = vsel %vm2008, %v1856, %v2040
      %v2073 = vsel %vm2009, %v1859, %v2041
      %v2074 = vsel %vm2010, %v1864, %v2042
      %v2075 = vsel %vm2011, %v1867, %v2043
      %v2076 = vsel %vm2012, %v1872, %v2044
      %v2077 = vsel %vm2013, %v1875, %v2045
      %v2078 = vsel %vm2014, %v1880, %v2046
      %v2079 = vsel %vm2015, %v1883, %v2047
      %v2080 = vsel %vm2016, %v1888, %v2048
      %v2081 = vsel %vm2017, %v1891, %v2049
      %v2082 = vsel %vm2018, %v1896, %v2050
      %v2083 = vsel %vm2019, %v1899, %v2051
      %v2084 = vsel %vm2020, %v1904, %v2052
      %v2085 = vsel %vm2021, %v1907, %v2053
      %v2086 = vsel %vm2022, %v1912, %v2054
      %v2087 = vsel %vm2023, %v1915, %v2055
      %v2088 = vsel %vm2024, %v1920, %v2056
      %v2089 = vsel %vm2025, %v1923, %v2057
      %v2090 = vsel %vm2026, %v1928, %v2058
      %v2091 = vsel %vm2027, %v1931, %v2059
      %v2092 = vsel %vm2028, %v1936, %v2060
      %v2093 = vsel %vm2029, %v1939, %v2061
      %v2094 = vsel %vm2030, %v1944, %v2062
      %v2095 = vsel %vm2031, %v1947, %v2063
      %v2096 = vsel %vm2032, %v1952, %v2064
      %v2097 = vsel %vm2033, %v1955, %v2065
      %v2098 = vsel %vm2034, %v1960, %v2066
      %v2099 = vsel %vm2035, %v1963, %v2067
      %v2100 = vsel %vm2036, %v1968, %v2068
      %v2101 = vsel %vm2037, %v1971, %v2069
      %vm2102 = vcmask 64512
      %2103 = vst.msk [vmem:[#allocation3] sm:$0xff] %vm2102, 0.0
      %2104 = vst.msk [vmem:[#allocation3 + $0x8] sm:$0xff] %vm2102, 0.0
      %vm2105 = vcmask 58368
      %2106 = vst.msk [vmem:[#allocation3 + $0x10] sm:$0x3] %vm2105, 0.0
      %2107 = vst.msk [vmem:[#allocation3 + $0x18] sm:$0xff] %vm2102, 0.0
      %2108 = vst.msk [vmem:[#allocation3 + $0x20] sm:$0xff] %vm2102, 0.0
      %2109 = vst.msk [vmem:[#allocation3 + $0x28] sm:$0x3] %vm2105, 0.0
      %2110 = vst.msk [vmem:[#allocation3 + $0x30] sm:$0xff] %vm2102, 0.0
      %2111 = vst.msk [vmem:[#allocation3 + $0x38] sm:$0xff] %vm2102, 0.0
      %2112 = vst.msk [vmem:[#allocation3 + $0x40] sm:$0x3] %vm2105, 0.0
      %2113 = vst.msk [vmem:[#allocation3 + $0x48] sm:$0xff] %vm2102, 0.0
      %2114 = vst.msk [vmem:[#allocation3 + $0x50] sm:$0xff] %vm2102, 0.0
      %2115 = vst.msk [vmem:[#allocation3 + $0x58] sm:$0x3] %vm2105, 0.0
      %2116 = vst.msk [vmem:[#allocation3 + $0x60] sm:$0xff] %vm2102, 0.0
      %2117 = vst.msk [vmem:[#allocation3 + $0x68] sm:$0xff] %vm2102, 0.0
      %2118 = vst.msk [vmem:[#allocation3 + $0x70] sm:$0x3] %vm2105, 0.0
      %2119 = vst.msk [vmem:[#allocation3 + $0x78] sm:$0xff] %vm2102, 0.0
      %2120 = vst.msk [vmem:[#allocation3 + $0x80] sm:$0xff] %vm2102, 0.0
      %2121 = vst.msk [vmem:[#allocation3 + $0x88] sm:$0x3] %vm2105, 0.0
      %2122 = vst.msk [vmem:[#allocation3 + $0x90] sm:$0xff] %vm2102, 0.0
      %2123 = vst.msk [vmem:[#allocation3 + $0x98] sm:$0xff] %vm2102, 0.0
      %2124 = vst.msk [vmem:[#allocation3 + $0xa0] sm:$0x3] %vm2105, 0.0
      %2125 = vst.msk [vmem:[#allocation3 + $0xa8] sm:$0xff] %vm2102, 0.0
      %2126 = vst.msk [vmem:[#allocation3 + $0xb0] sm:$0xff] %vm2102, 0.0
      %2127 = vst.msk [vmem:[#allocation3 + $0xb8] sm:$0x3] %vm2105, 0.0
      %2128 = vst.msk [vmem:[#allocation3 + $0xc0] sm:$0xff] %vm2102, 0.0
      %2129 = vst.msk [vmem:[#allocation3 + $0xc8] sm:$0xff] %vm2102, 0.0
      %2130 = vst.msk [vmem:[#allocation3 + $0xd0] sm:$0x3] %vm2105, 0.0
      %2131 = vst.msk [vmem:[#allocation3 + $0xd8] sm:$0xff] %vm2102, 0.0
      %2132 = vst.msk [vmem:[#allocation3 + $0xe0] sm:$0xff] %vm2102, 0.0
      %2133 = vst.msk [vmem:[#allocation3 + $0xe8] sm:$0x3] %vm2105, 0.0
      %2134 = vst.msk [vmem:[#allocation3 + $0xf0] sm:$0xff] %vm2102, 0.0
      %2135 = vst.msk [vmem:[#allocation3 + $0xf8] sm:$0xff] %vm2102, 0.0
      %2136 = vst.msk [vmem:[#allocation3 + $0x100] sm:$0x3] %vm2105, 0.0
      %2137 = vst.msk [vmem:[#allocation3 + $0x108] sm:$0xff] %vm2102, 0.0
      %2138 = vst.msk [vmem:[#allocation3 + $0x110] sm:$0xff] %vm2102, 0.0
      %2139 = vst.msk [vmem:[#allocation3 + $0x118] sm:$0x3] %vm2105, 0.0
      %2140 = vst.msk [vmem:[#allocation3 + $0x120] sm:$0xff] %vm2102, 0.0
      %2141 = vst.msk [vmem:[#allocation3 + $0x128] sm:$0xff] %vm2102, 0.0
      %2142 = vst.msk [vmem:[#allocation3 + $0x130] sm:$0x3] %vm2105, 0.0
      %2143 = vst.msk [vmem:[#allocation3 + $0x138] sm:$0xff] %vm2102, 0.0
      %2144 = vst.msk [vmem:[#allocation3 + $0x140] sm:$0xff] %vm2102, 0.0
      %2145 = vst.msk [vmem:[#allocation3 + $0x148] sm:$0x3] %vm2105, 0.0
      %2146 = vst.msk [vmem:[#allocation3 + $0x150] sm:$0xff] %vm2102, 0.0
      %2147 = vst.msk [vmem:[#allocation3 + $0x158] sm:$0xff] %vm2102, 0.0
      %2148 = vst.msk [vmem:[#allocation3 + $0x160] sm:$0x3] %vm2105, 0.0
      %2149 = vst.msk [vmem:[#allocation3 + $0x168] sm:$0xff] %vm2102, 0.0
      %2150 = vst.msk [vmem:[#allocation3 + $0x170] sm:$0xff] %vm2102, 0.0
      %2151 = vst.msk [vmem:[#allocation3 + $0x178] sm:$0x3] %vm2105, 0.0
      %2152 = vst.msk [vmem:[#allocation3 + $0x180] sm:$0xff] %vm2102, 0.0
      %2153 = vst.msk [vmem:[#allocation3 + $0x188] sm:$0xff] %vm2102, 0.0
      %2154 = vst.msk [vmem:[#allocation3 + $0x190] sm:$0x3] %vm2105, 0.0
      %2155 = vst.msk [vmem:[#allocation3 + $0x198] sm:$0xff] %vm2102, 0.0
      %2156 = vst.msk [vmem:[#allocation3 + $0x1a0] sm:$0xff] %vm2102, 0.0
      %2157 = vst.msk [vmem:[#allocation3 + $0x1a8] sm:$0x3] %vm2105, 0.0
      %2190 = vrot.lane.b32.xlu0 %v2070, 112
      %v2191 = vpop.permute.xlu0 %2190
      %2192 = vrot.lane.b32.xlu0 %v2071, 112
      %v2193 = vpop.permute.xlu0 %2192
      %2194 = vrot.lane.b32.xlu0 %v2072, 112
      %v2195 = vpop.permute.xlu0 %2194
      %2196 = vrot.lane.b32.xlu0 %v2073, 112
      %v2197 = vpop.permute.xlu0 %2196
      %2198 = vrot.lane.b32.xlu0 %v2074, 112
      %v2199 = vpop.permute.xlu0 %2198
      %2200 = vrot.lane.b32.xlu0 %v2075, 112
      %v2201 = vpop.permute.xlu0 %2200
      %2202 = vrot.lane.b32.xlu0 %v2076, 112
      %v2203 = vpop.permute.xlu0 %2202
      %2204 = vrot.lane.b32.xlu0 %v2077, 112
      %v2205 = vpop.permute.xlu0 %2204
      %2206 = vrot.lane.b32.xlu0 %v2078, 112
      %v2207 = vpop.permute.xlu0 %2206
      %2208 = vrot.lane.b32.xlu0 %v2079, 112
      %v2209 = vpop.permute.xlu0 %2208
      %2210 = vrot.lane.b32.xlu0 %v2080, 112
      %v2211 = vpop.permute.xlu0 %2210
      %2212 = vrot.lane.b32.xlu0 %v2081, 112
      %v2213 = vpop.permute.xlu0 %2212
      %2214 = vrot.lane.b32.xlu0 %v2082, 112
      %v2215 = vpop.permute.xlu0 %2214
      %2216 = vrot.lane.b32.xlu0 %v2083, 112
      %v2217 = vpop.permute.xlu0 %2216
      %2218 = vrot.lane.b32.xlu0 %v2084, 112
      %v2219 = vpop.permute.xlu0 %2218
      %2220 = vrot.lane.b32.xlu0 %v2085, 112
      %v2221 = vpop.permute.xlu0 %2220
      %2222 = vrot.lane.b32.xlu0 %v2086, 112
      %v2223 = vpop.permute.xlu0 %2222
      %2224 = vrot.lane.b32.xlu0 %v2087, 112
      %v2225 = vpop.permute.xlu0 %2224
      %2226 = vrot.lane.b32.xlu0 %v2088, 112
      %v2227 = vpop.permute.xlu0 %2226
      %2228 = vrot.lane.b32.xlu0 %v2089, 112
      %v2229 = vpop.permute.xlu0 %2228
      %2230 = vrot.lane.b32.xlu0 %v2090, 112
      %v2231 = vpop.permute.xlu0 %2230
      %2232 = vrot.lane.b32.xlu0 %v2091, 112
      %v2233 = vpop.permute.xlu0 %2232
      %2234 = vrot.lane.b32.xlu0 %v2092, 112
      %v2235 = vpop.permute.xlu0 %2234
      %2236 = vrot.lane.b32.xlu0 %v2093, 112
      %v2237 = vpop.permute.xlu0 %2236
      %2238 = vrot.lane.b32.xlu0 %v2094, 112
      %v2239 = vpop.permute.xlu0 %2238
      %2240 = vrot.lane.b32.xlu0 %v2095, 112
      %v2241 = vpop.permute.xlu0 %2240
      %2242 = vrot.lane.b32.xlu0 %v2096, 112
      %v2243 = vpop.permute.xlu0 %2242
      %2244 = vrot.lane.b32.xlu0 %v2097, 112
      %v2245 = vpop.permute.xlu0 %2244
      %2246 = vrot.lane.b32.xlu0 %v2098, 112
      %v2247 = vpop.permute.xlu0 %2246
      %2248 = vrot.lane.b32.xlu0 %v2099, 112
      %v2249 = vpop.permute.xlu0 %2248
      %2250 = vrot.lane.b32.xlu0 %v2100, 112
      %v2251 = vpop.permute.xlu0 %2250
      %2252 = vrot.lane.b32.xlu0 %v2101, 112
      %v2253 = vpop.permute.xlu0 %2252
      %s2286 = scalar_lea.vmem [#allocation3], 24
      %2287 = vst.msk [vmem:[%s2286 + $0x1] sm:$0xff] %vm2102, %v2191
      %2288 = vst.msk [vmem:[%s2286 + $0x9] sm:$0xff] %vm2102, %v2193
      %2289 = vst.msk [vmem:[%s2286 + $0x19] sm:$0xff] %vm2102, %v2195
      %2290 = vst.msk [vmem:[%s2286 + $0x21] sm:$0xff] %vm2102, %v2197
      %2291 = vst.msk [vmem:[%s2286 + $0x31] sm:$0xff] %vm2102, %v2199
      %2292 = vst.msk [vmem:[%s2286 + $0x39] sm:$0xff] %vm2102, %v2201
      %2293 = vst.msk [vmem:[%s2286 + $0x49] sm:$0xff] %vm2102, %v2203
      %2294 = vst.msk [vmem:[%s2286 + $0x51] sm:$0xff] %vm2102, %v2205
      %2295 = vst.msk [vmem:[%s2286 + $0x61] sm:$0xff] %vm2102, %v2207
      %2296 = vst.msk [vmem:[%s2286 + $0x69] sm:$0xff] %vm2102, %v2209
      %2297 = vst.msk [vmem:[%s2286 + $0x79] sm:$0xff] %vm2102, %v2211
      %2298 = vst.msk [vmem:[%s2286 + $0x81] sm:$0xff] %vm2102, %v2213
      %2299 = vst.msk [vmem:[%s2286 + $0x91] sm:$0xff] %vm2102, %v2215
      %2300 = vst.msk [vmem:[%s2286 + $0x99] sm:$0xff] %vm2102, %v2217
      %2301 = vst.msk [vmem:[%s2286 + $0xa9] sm:$0xff] %vm2102, %v2219
      %2302 = vst.msk [vmem:[%s2286 + $0xb1] sm:$0xff] %vm2102, %v2221
      %2303 = vst.msk [vmem:[%s2286 + $0xc1] sm:$0xff] %vm2102, %v2223
      %2304 = vst.msk [vmem:[%s2286 + $0xc9] sm:$0xff] %vm2102, %v2225
      %2305 = vst.msk [vmem:[%s2286 + $0xd9] sm:$0xff] %vm2102, %v2227
      %2306 = vst.msk [vmem:[%s2286 + $0xe1] sm:$0xff] %vm2102, %v2229
      %2307 = vst.msk [vmem:[%s2286 + $0xf1] sm:$0xff] %vm2102, %v2231
      %2308 = vst.msk [vmem:[%s2286 + $0xf9] sm:$0xff] %vm2102, %v2233
      %2309 = vst.msk [vmem:[%s2286 + $0x109] sm:$0xff] %vm2102, %v2235
      %2310 = vst.msk [vmem:[%s2286 + $0x111] sm:$0xff] %vm2102, %v2237
      %2311 = vst.msk [vmem:[%s2286 + $0x121] sm:$0xff] %vm2102, %v2239
      %2312 = vst.msk [vmem:[%s2286 + $0x129] sm:$0xff] %vm2102, %v2241
      %2313 = vst.msk [vmem:[%s2286 + $0x139] sm:$0xff] %vm2102, %v2243
      %2314 = vst.msk [vmem:[%s2286 + $0x141] sm:$0xff] %vm2102, %v2245
      %2315 = vst.msk [vmem:[%s2286 + $0x151] sm:$0xff] %vm2102, %v2247
      %2316 = vst.msk [vmem:[%s2286 + $0x159] sm:$0xff] %vm2102, %v2249
      %2317 = vst.msk [vmem:[%s2286 + $0x169] sm:$0xff] %vm2102, %v2251
      %2318 = vst.msk [vmem:[%s2286 + $0x171] sm:$0xff] %vm2102, %v2253
      %v2319 = vld [vmem:[#allocation3] sm:$0xff]
      %v2320 = vld [vmem:[#allocation3 + $0x8] sm:$0xff]
      %v2321 = vld [vmem:[#allocation3 + $0x18] sm:$0xff]
      %v2322 = vld [vmem:[#allocation3 + $0x20] sm:$0xff]
      %v2323 = vld [vmem:[#allocation3 + $0x30] sm:$0xff]
      %v2324 = vld [vmem:[#allocation3 + $0x38] sm:$0xff]
      %v2325 = vld [vmem:[#allocation3 + $0x48] sm:$0xff]
      %v2326 = vld [vmem:[#allocation3 + $0x50] sm:$0xff]
      %v2327 = vld [vmem:[#allocation3 + $0x60] sm:$0xff]
      %v2328 = vld [vmem:[#allocation3 + $0x68] sm:$0xff]
      %v2329 = vld [vmem:[#allocation3 + $0x78] sm:$0xff]
      %v2330 = vld [vmem:[#allocation3 + $0x80] sm:$0xff]
      %v2331 = vld [vmem:[#allocation3 + $0x90] sm:$0xff]
      %v2332 = vld [vmem:[#allocation3 + $0x98] sm:$0xff]
      %v2333 = vld [vmem:[#allocation3 + $0xa8] sm:$0xff]
      %v2334 = vld [vmem:[#allocation3 + $0xb0] sm:$0xff]
      %v2335 = vld [vmem:[#allocation3 + $0xc0] sm:$0xff]
      %v2336 = vld [vmem:[#allocation3 + $0xc8] sm:$0xff]
      %v2337 = vld [vmem:[#allocation3 + $0xd8] sm:$0xff]
      %v2338 = vld [vmem:[#allocation3 + $0xe0] sm:$0xff]
      %v2339 = vld [vmem:[#allocation3 + $0xf0] sm:$0xff]
      %v2340 = vld [vmem:[#allocation3 + $0xf8] sm:$0xff]
      %v2341 = vld [vmem:[#allocation3 + $0x108] sm:$0xff]
      %v2342 = vld [vmem:[#allocation3 + $0x110] sm:$0xff]
      %v2343 = vld [vmem:[#allocation3 + $0x120] sm:$0xff]
      %v2344 = vld [vmem:[#allocation3 + $0x128] sm:$0xff]
      %v2345 = vld [vmem:[#allocation3 + $0x138] sm:$0xff]
      %v2346 = vld [vmem:[#allocation3 + $0x140] sm:$0xff]
      %v2347 = vld [vmem:[#allocation3 + $0x150] sm:$0xff]
      %v2348 = vld [vmem:[#allocation3 + $0x158] sm:$0xff]
      %v2349 = vld [vmem:[#allocation3 + $0x168] sm:$0xff]
      %v2350 = vld [vmem:[#allocation3 + $0x170] sm:$0xff]
      %v2351 = vpack.c.bf16 %v2320, %v2319
      %v2352 = vpack.c.bf16 %v2322, %v2321
      %v2353 = vpack.c.bf16 %v2324, %v2323
      %v2354 = vpack.c.bf16 %v2326, %v2325
      %v2355 = vpack.c.bf16 %v2328, %v2327
      %v2356 = vpack.c.bf16 %v2330, %v2329
      %v2357 = vpack.c.bf16 %v2332, %v2331
      %v2358 = vpack.c.bf16 %v2334, %v2333
      %v2359 = vpack.c.bf16 %v2336, %v2335
      %v2360 = vpack.c.bf16 %v2338, %v2337
      %v2361 = vpack.c.bf16 %v2340, %v2339
      %v2362 = vpack.c.bf16 %v2342, %v2341
      %v2363 = vpack.c.bf16 %v2344, %v2343
      %v2364 = vpack.c.bf16 %v2346, %v2345
      %v2365 = vpack.c.bf16 %v2348, %v2347
      %v2366 = vpack.c.bf16 %v2350, %v2349
      %2367 = vst.msk [vmem:[#allocation5] sm:$0xff] %vm2102, %v2351
      %2368 = vst.msk [vmem:[#allocation5 + $0x8] sm:$0xff] %vm2102, %v2352
      %2369 = vst.msk [vmem:[#allocation5 + $0x10] sm:$0xff] %vm2102, %v2353
      %2370 = vst.msk [vmem:[#allocation5 + $0x18] sm:$0xff] %vm2102, %v2354
      %2371 = vst.msk [vmem:[#allocation5 + $0x20] sm:$0xff] %vm2102, %v2355
      %2372 = vst.msk [vmem:[#allocation5 + $0x28] sm:$0xff] %vm2102, %v2356
      %2373 = vst.msk [vmem:[#allocation5 + $0x30] sm:$0xff] %vm2102, %v2357
      %2374 = vst.msk [vmem:[#allocation5 + $0x38] sm:$0xff] %vm2102, %v2358
      %2375 = vst.msk [vmem:[#allocation5 + $0x40] sm:$0xff] %vm2102, %v2359
      %2376 = vst.msk [vmem:[#allocation5 + $0x48] sm:$0xff] %vm2102, %v2360
      %2377 = vst.msk [vmem:[#allocation5 + $0x50] sm:$0xff] %vm2102, %v2361
      %2378 = vst.msk [vmem:[#allocation5 + $0x58] sm:$0xff] %vm2102, %v2362
      %2379 = vst.msk [vmem:[#allocation5 + $0x60] sm:$0xff] %vm2102, %v2363
      %2380 = vst.msk [vmem:[#allocation5 + $0x68] sm:$0xff] %vm2102, %v2364
      %2381 = vst.msk [vmem:[#allocation5 + $0x70] sm:$0xff] %vm2102, %v2365
      %2382 = vst.msk [vmem:[#allocation5 + $0x78] sm:$0xff] %vm2102, %v2366
      %v2383 = vld [vmem:[#allocation3 + $0x1] sm:$0xff]
      %v2384 = vld [vmem:[#allocation3 + $0x9] sm:$0xff]
      %v2385 = vld [vmem:[#allocation3 + $0x19] sm:$0xff]
      %v2386 = vld [vmem:[#allocation3 + $0x21] sm:$0xff]
      %v2387 = vld [vmem:[#allocation3 + $0x31] sm:$0xff]
      %v2388 = vld [vmem:[#allocation3 + $0x39] sm:$0xff]
      %v2389 = vld [vmem:[#allocation3 + $0x49] sm:$0xff]
      %v2390 = vld [vmem:[#allocation3 + $0x51] sm:$0xff]
      %v2391 = vld [vmem:[#allocation3 + $0x61] sm:$0xff]
      %v2392 = vld [vmem:[#allocation3 + $0x69] sm:$0xff]
      %v2393 = vld [vmem:[#allocation3 + $0x79] sm:$0xff]
      %v2394 = vld [vmem:[#allocation3 + $0x81] sm:$0xff]
      %v2395 = vld [vmem:[#allocation3 + $0x91] sm:$0xff]
      %v2396 = vld [vmem:[#allocation3 + $0x99] sm:$0xff]
      %v2397 = vld [vmem:[#allocation3 + $0xa9] sm:$0xff]
      %v2398 = vld [vmem:[#allocation3 + $0xb1] sm:$0xff]
      %v2399 = vld [vmem:[#allocation3 + $0xc1] sm:$0xff]
      %v2400 = vld [vmem:[#allocation3 + $0xc9] sm:$0xff]
      %v2401 = vld [vmem:[#allocation3 + $0xd9] sm:$0xff]
      %v2402 = vld [vmem:[#allocation3 + $0xe1] sm:$0xff]
      %v2403 = vld [vmem:[#allocation3 + $0xf1] sm:$0xff]
      %v2404 = vld [vmem:[#allocation3 + $0xf9] sm:$0xff]
      %v2405 = vld [vmem:[#allocation3 + $0x109] sm:$0xff]
      %v2406 = vld [vmem:[#allocation3 + $0x111] sm:$0xff]
      %v2407 = vld [vmem:[#allocation3 + $0x121] sm:$0xff]
      %v2408 = vld [vmem:[#allocation3 + $0x129] sm:$0xff]
      %v2409 = vld [vmem:[#allocation3 + $0x139] sm:$0xff]
      %v2410 = vld [vmem:[#allocation3 + $0x141] sm:$0xff]
      %v2411 = vld [vmem:[#allocation3 + $0x151] sm:$0xff]
      %v2412 = vld [vmem:[#allocation3 + $0x159] sm:$0xff]
      %v2413 = vld [vmem:[#allocation3 + $0x169] sm:$0xff]
      %v2414 = vld [vmem:[#allocation3 + $0x171] sm:$0xff]
      %v2415 = vpack.c.bf16 %v2384, %v2383
      %v2416 = vpack.c.bf16 %v2386, %v2385
      %v2417 = vpack.c.bf16 %v2388, %v2387
      %v2418 = vpack.c.bf16 %v2390, %v2389
      %v2419 = vpack.c.bf16 %v2392, %v2391
      %v2420 = vpack.c.bf16 %v2394, %v2393
      %v2421 = vpack.c.bf16 %v2396, %v2395
      %v2422 = vpack.c.bf16 %v2398, %v2397
      %v2423 = vpack.c.bf16 %v2400, %v2399
      %v2424 = vpack.c.bf16 %v2402, %v2401
      %v2425 = vpack.c.bf16 %v2404, %v2403
      %v2426 = vpack.c.bf16 %v2406, %v2405
      %v2427 = vpack.c.bf16 %v2408, %v2407
      %v2428 = vpack.c.bf16 %v2410, %v2409
      %v2429 = vpack.c.bf16 %v2412, %v2411
      %v2430 = vpack.c.bf16 %v2414, %v2413
      %2447 = vrot.lane.b32.xlu0 %v2415, 8
      %v2448 = vpop.permute.xlu0 %2447
      %2449 = vrot.lane.b32.xlu0 %v2416, 8
      %v2450 = vpop.permute.xlu0 %2449
      %2451 = vrot.lane.b32.xlu0 %v2417, 8
      %v2452 = vpop.permute.xlu0 %2451
      %2453 = vrot.lane.b32.xlu0 %v2418, 8
      %v2454 = vpop.permute.xlu0 %2453
      %2455 = vrot.lane.b32.xlu0 %v2419, 8
      %v2456 = vpop.permute.xlu0 %2455
      %2457 = vrot.lane.b32.xlu0 %v2420, 8
      %v2458 = vpop.permute.xlu0 %2457
      %2459 = vrot.lane.b32.xlu0 %v2421, 8
      %v2460 = vpop.permute.xlu0 %2459
      %2461 = vrot.lane.b32.xlu0 %v2422, 8
      %v2462 = vpop.permute.xlu0 %2461
      %2463 = vrot.lane.b32.xlu0 %v2423, 8
      %v2464 = vpop.permute.xlu0 %2463
      %2465 = vrot.lane.b32.xlu0 %v2424, 8
      %v2466 = vpop.permute.xlu0 %2465
      %2467 = vrot.lane.b32.xlu0 %v2425, 8
      %v2468 = vpop.permute.xlu0 %2467
      %2469 = vrot.lane.b32.xlu0 %v2426, 8
      %v2470 = vpop.permute.xlu0 %2469
      %2471 = vrot.lane.b32.xlu0 %v2427, 8
      %v2472 = vpop.permute.xlu0 %2471
      %2473 = vrot.lane.b32.xlu0 %v2428, 8
      %v2474 = vpop.permute.xlu0 %2473
      %2475 = vrot.lane.b32.xlu0 %v2429, 8
      %v2476 = vpop.permute.xlu0 %2475
      %2477 = vrot.lane.b32.xlu0 %v2430, 8
      %v2478 = vpop.permute.xlu0 %2477
      %vm2495 = vcmask 130112
      %2496 = vst.msk [vmem:[#allocation5] sm:$0xff] %vm2495, %v2448
      %2497 = vst.msk [vmem:[#allocation5 + $0x8] sm:$0xff] %vm2495, %v2450
      %2498 = vst.msk [vmem:[#allocation5 + $0x10] sm:$0xff] %vm2495, %v2452
      %2499 = vst.msk [vmem:[#allocation5 + $0x18] sm:$0xff] %vm2495, %v2454
      %2500 = vst.msk [vmem:[#allocation5 + $0x20] sm:$0xff] %vm2495, %v2456
      %2501 = vst.msk [vmem:[#allocation5 + $0x28] sm:$0xff] %vm2495, %v2458
      %2502 = vst.msk [vmem:[#allocation5 + $0x30] sm:$0xff] %vm2495, %v2460
      %2503 = vst.msk [vmem:[#allocation5 + $0x38] sm:$0xff] %vm2495, %v2462
      %2504 = vst.msk [vmem:[#allocation5 + $0x40] sm:$0xff] %vm2495, %v2464
      %2505 = vst.msk [vmem:[#allocation5 + $0x48] sm:$0xff] %vm2495, %v2466
      %2506 = vst.msk [vmem:[#allocation5 + $0x50] sm:$0xff] %vm2495, %v2468
      %2507 = vst.msk [vmem:[#allocation5 + $0x58] sm:$0xff] %vm2495, %v2470
      %2508 = vst.msk [vmem:[#allocation5 + $0x60] sm:$0xff] %vm2495, %v2472
      %2509 = vst.msk [vmem:[#allocation5 + $0x68] sm:$0xff] %vm2495, %v2474
      %2510 = vst.msk [vmem:[#allocation5 + $0x70] sm:$0xff] %vm2495, %v2476
      %2511 = vst.msk [vmem:[#allocation5 + $0x78] sm:$0xff] %vm2495, %v2478
      %v2512 = vld [vmem:[#allocation3 + $0x2] sm:$0xff]
      %v2513 = vld [vmem:[#allocation3 + $0xa] sm:$0xff]
      %v2514 = vld [vmem:[#allocation3 + $0x1a] sm:$0xff]
      %v2515 = vld [vmem:[#allocation3 + $0x22] sm:$0xff]
      %v2516 = vld [vmem:[#allocation3 + $0x32] sm:$0xff]
      %v2517 = vld [vmem:[#allocation3 + $0x3a] sm:$0xff]
      %v2518 = vld [vmem:[#allocation3 + $0x4a] sm:$0xff]
      %v2519 = vld [vmem:[#allocation3 + $0x52] sm:$0xff]
      %v2520 = vld [vmem:[#allocation3 + $0x62] sm:$0xff]
      %v2521 = vld [vmem:[#allocation3 + $0x6a] sm:$0xff]
      %v2522 = vld [vmem:[#allocation3 + $0x7a] sm:$0xff]
      %v2523 = vld [vmem:[#allocation3 + $0x82] sm:$0xff]
      %v2524 = vld [vmem:[#allocation3 + $0x92] sm:$0xff]
      %v2525 = vld [vmem:[#allocation3 + $0x9a] sm:$0xff]
      %v2526 = vld [vmem:[#allocation3 + $0xaa] sm:$0xff]
      %v2527 = vld [vmem:[#allocation3 + $0xb2] sm:$0xff]
      %v2528 = vld [vmem:[#allocation3 + $0xc2] sm:$0xff]
      %v2529 = vld [vmem:[#allocation3 + $0xca] sm:$0xff]
      %v2530 = vld [vmem:[#allocation3 + $0xda] sm:$0xff]
      %v2531 = vld [vmem:[#allocation3 + $0xe2] sm:$0xff]
      %v2532 = vld [vmem:[#allocation3 + $0xf2] sm:$0xff]
      %v2533 = vld [vmem:[#allocation3 + $0xfa] sm:$0xff]
      %v2534 = vld [vmem:[#allocation3 + $0x10a] sm:$0xff]
      %v2535 = vld [vmem:[#allocation3 + $0x112] sm:$0xff]
      %v2536 = vld [vmem:[#allocation3 + $0x122] sm:$0xff]
      %v2537 = vld [vmem:[#allocation3 + $0x12a] sm:$0xff]
      %v2538 = vld [vmem:[#allocation3 + $0x13a] sm:$0xff]
      %v2539 = vld [vmem:[#allocation3 + $0x142] sm:$0xff]
      %v2540 = vld [vmem:[#allocation3 + $0x152] sm:$0xff]
      %v2541 = vld [vmem:[#allocation3 + $0x15a] sm:$0xff]
      %v2542 = vld [vmem:[#allocation3 + $0x16a] sm:$0xff]
      %v2543 = vld [vmem:[#allocation3 + $0x172] sm:$0xff]
      %v2544 = vpack.c.bf16 %v2513, %v2512
      %v2545 = vpack.c.bf16 %v2515, %v2514
      %v2546 = vpack.c.bf16 %v2517, %v2516
      %v2547 = vpack.c.bf16 %v2519, %v2518
      %v2548 = vpack.c.bf16 %v2521, %v2520
      %v2549 = vpack.c.bf16 %v2523, %v2522
      %v2550 = vpack.c.bf16 %v2525, %v2524
      %v2551 = vpack.c.bf16 %v2527, %v2526
      %v2552 = vpack.c.bf16 %v2529, %v2528
      %v2553 = vpack.c.bf16 %v2531, %v2530
      %v2554 = vpack.c.bf16 %v2533, %v2532
      %v2555 = vpack.c.bf16 %v2535, %v2534
      %v2556 = vpack.c.bf16 %v2537, %v2536
      %v2557 = vpack.c.bf16 %v2539, %v2538
      %v2558 = vpack.c.bf16 %v2541, %v2540
      %v2559 = vpack.c.bf16 %v2543, %v2542
      %2576 = vrot.lane.b32.xlu0 %v2544, 16
      %v2577 = vpop.permute.xlu0 %2576
      %2578 = vrot.lane.b32.xlu0 %v2545, 16
      %v2579 = vpop.permute.xlu0 %2578
      %2580 = vrot.lane.b32.xlu0 %v2546, 16
      %v2581 = vpop.permute.xlu0 %2580
      %2582 = vrot.lane.b32.xlu0 %v2547, 16
      %v2583 = vpop.permute.xlu0 %2582
      %2584 = vrot.lane.b32.xlu0 %v2548, 16
      %v2585 = vpop.permute.xlu0 %2584
      %2586 = vrot.lane.b32.xlu0 %v2549, 16
      %v2587 = vpop.permute.xlu0 %2586
      %2588 = vrot.lane.b32.xlu0 %v2550, 16
      %v2589 = vpop.permute.xlu0 %2588
      %2590 = vrot.lane.b32.xlu0 %v2551, 16
      %v2591 = vpop.permute.xlu0 %2590
      %2592 = vrot.lane.b32.xlu0 %v2552, 16
      %v2593 = vpop.permute.xlu0 %2592
      %2594 = vrot.lane.b32.xlu0 %v2553, 16
      %v2595 = vpop.permute.xlu0 %2594
      %2596 = vrot.lane.b32.xlu0 %v2554, 16
      %v2597 = vpop.permute.xlu0 %2596
      %2598 = vrot.lane.b32.xlu0 %v2555, 16
      %v2599 = vpop.permute.xlu0 %2598
      %2600 = vrot.lane.b32.xlu0 %v2556, 16
      %v2601 = vpop.permute.xlu0 %2600
      %2602 = vrot.lane.b32.xlu0 %v2557, 16
      %v2603 = vpop.permute.xlu0 %2602
      %2604 = vrot.lane.b32.xlu0 %v2558, 16
      %v2605 = vpop.permute.xlu0 %2604
      %2606 = vrot.lane.b32.xlu0 %v2559, 16
      %v2607 = vpop.permute.xlu0 %2606
      %vm2624 = vcmask 195712
      %2625 = vst.msk [vmem:[#allocation5] sm:$0xff] %vm2624, %v2577
      %2626 = vst.msk [vmem:[#allocation5 + $0x8] sm:$0xff] %vm2624, %v2579
      %2627 = vst.msk [vmem:[#allocation5 + $0x10] sm:$0xff] %vm2624, %v2581
      %2628 = vst.msk [vmem:[#allocation5 + $0x18] sm:$0xff] %vm2624, %v2583
      %2629 = vst.msk [vmem:[#allocation5 + $0x20] sm:$0xff] %vm2624, %v2585
      %2630 = vst.msk [vmem:[#allocation5 + $0x28] sm:$0xff] %vm2624, %v2587
      %2631 = vst.msk [vmem:[#allocation5 + $0x30] sm:$0xff] %vm2624, %v2589
      %2632 = vst.msk [vmem:[#allocation5 + $0x38] sm:$0xff] %vm2624, %v2591
      %2633 = vst.msk [vmem:[#allocation5 + $0x40] sm:$0xff] %vm2624, %v2593
      %2634 = vst.msk [vmem:[#allocation5 + $0x48] sm:$0xff] %vm2624, %v2595
      %2635 = vst.msk [vmem:[#allocation5 + $0x50] sm:$0xff] %vm2624, %v2597
      %2636 = vst.msk [vmem:[#allocation5 + $0x58] sm:$0xff] %vm2624, %v2599
      %2637 = vst.msk [vmem:[#allocation5 + $0x60] sm:$0xff] %vm2624, %v2601
      %2638 = vst.msk [vmem:[#allocation5 + $0x68] sm:$0xff] %vm2624, %v2603
      %2639 = vst.msk [vmem:[#allocation5 + $0x70] sm:$0xff] %vm2624, %v2605
      %2640 = vst.msk [vmem:[#allocation5 + $0x78] sm:$0xff] %vm2624, %v2607
      %v2641 = vld [vmem:[%s2286] sm:$0xff]
      %v2642 = vld [vmem:[%s2286 + $0x8] sm:$0xff]
      %v2643 = vld [vmem:[%s2286 + $0x18] sm:$0xff]
      %v2644 = vld [vmem:[%s2286 + $0x20] sm:$0xff]
      %v2645 = vld [vmem:[%s2286 + $0x30] sm:$0xff]
      %v2646 = vld [vmem:[%s2286 + $0x38] sm:$0xff]
      %v2647 = vld [vmem:[%s2286 + $0x48] sm:$0xff]
      %v2648 = vld [vmem:[%s2286 + $0x50] sm:$0xff]
      %v2649 = vld [vmem:[%s2286 + $0x60] sm:$0xff]
      %v2650 = vld [vmem:[%s2286 + $0x68] sm:$0xff]
      %v2651 = vld [vmem:[%s2286 + $0x78] sm:$0xff]
      %v2652 = vld [vmem:[%s2286 + $0x80] sm:$0xff]
      %v2653 = vld [vmem:[%s2286 + $0x90] sm:$0xff]
      %v2654 = vld [vmem:[%s2286 + $0x98] sm:$0xff]
      %v2655 = vld [vmem:[%s2286 + $0xa8] sm:$0xff]
      %v2656 = vld [vmem:[%s2286 + $0xb0] sm:$0xff]
      %v2657 = vld [vmem:[%s2286 + $0xc0] sm:$0xff]
      %v2658 = vld [vmem:[%s2286 + $0xc8] sm:$0xff]
      %v2659 = vld [vmem:[%s2286 + $0xd8] sm:$0xff]
      %v2660 = vld [vmem:[%s2286 + $0xe0] sm:$0xff]
      %v2661 = vld [vmem:[%s2286 + $0xf0] sm:$0xff]
      %v2662 = vld [vmem:[%s2286 + $0xf8] sm:$0xff]
      %v2663 = vld [vmem:[%s2286 + $0x108] sm:$0xff]
      %v2664 = vld [vmem:[%s2286 + $0x110] sm:$0xff]
      %v2665 = vld [vmem:[%s2286 + $0x120] sm:$0xff]
      %v2666 = vld [vmem:[%s2286 + $0x128] sm:$0xff]
      %v2667 = vld [vmem:[%s2286 + $0x138] sm:$0xff]
      %v2668 = vld [vmem:[%s2286 + $0x140] sm:$0xff]
      %v2669 = vld [vmem:[%s2286 + $0x150] sm:$0xff]
      %v2670 = vld [vmem:[%s2286 + $0x158] sm:$0xff]
      %v2671 = vld [vmem:[%s2286 + $0x168] sm:$0xff]
      %v2672 = vld [vmem:[%s2286 + $0x170] sm:$0xff]
      %v2673 = vpack.c.bf16 %v2642, %v2641
      %v2674 = vpack.c.bf16 %v2644, %v2643
      %v2675 = vpack.c.bf16 %v2646, %v2645
      %v2676 = vpack.c.bf16 %v2648, %v2647
      %v2677 = vpack.c.bf16 %v2650, %v2649
      %v2678 = vpack.c.bf16 %v2652, %v2651
      %v2679 = vpack.c.bf16 %v2654, %v2653
      %v2680 = vpack.c.bf16 %v2656, %v2655
      %v2681 = vpack.c.bf16 %v2658, %v2657
      %v2682 = vpack.c.bf16 %v2660, %v2659
      %v2683 = vpack.c.bf16 %v2662, %v2661
      %v2684 = vpack.c.bf16 %v2664, %v2663
      %v2685 = vpack.c.bf16 %v2666, %v2665
      %v2686 = vpack.c.bf16 %v2668, %v2667
      %v2687 = vpack.c.bf16 %v2670, %v2669
      %v2688 = vpack.c.bf16 %v2672, %v2671
      %2705 = vrot.lane.b32.xlu0 %v2673, 24
      %v2706 = vpop.permute.xlu0 %2705
      %2707 = vrot.lane.b32.xlu0 %v2674, 24
      %v2708 = vpop.permute.xlu0 %2707
      %2709 = vrot.lane.b32.xlu0 %v2675, 24
      %v2710 = vpop.permute.xlu0 %2709
      %2711 = vrot.lane.b32.xlu0 %v2676, 24
      %v2712 = vpop.permute.xlu0 %2711
      %2713 = vrot.lane.b32.xlu0 %v2677, 24
      %v2714 = vpop.permute.xlu0 %2713
      %2715 = vrot.lane.b32.xlu0 %v2678, 24
      %v2716 = vpop.permute.xlu0 %2715
      %2717 = vrot.lane.b32.xlu0 %v2679, 24
      %v2718 = vpop.permute.xlu0 %2717
      %2719 = vrot.lane.b32.xlu0 %v2680, 24
      %v2720 = vpop.permute.xlu0 %2719
      %2721 = vrot.lane.b32.xlu0 %v2681, 24
      %v2722 = vpop.permute.xlu0 %2721
      %2723 = vrot.lane.b32.xlu0 %v2682, 24
      %v2724 = vpop.permute.xlu0 %2723
      %2725 = vrot.lane.b32.xlu0 %v2683, 24
      %v2726 = vpop.permute.xlu0 %2725
      %2727 = vrot.lane.b32.xlu0 %v2684, 24
      %v2728 = vpop.permute.xlu0 %2727
      %2729 = vrot.lane.b32.xlu0 %v2685, 24
      %v2730 = vpop.permute.xlu0 %2729
      %2731 = vrot.lane.b32.xlu0 %v2686, 24
      %v2732 = vpop.permute.xlu0 %2731
      %2733 = vrot.lane.b32.xlu0 %v2687, 24
      %v2734 = vpop.permute.xlu0 %2733
      %2735 = vrot.lane.b32.xlu0 %v2688, 24
      %v2736 = vpop.permute.xlu0 %2735
      %vm2753 = vcmask 261312
      %2754 = vst.msk [vmem:[#allocation5] sm:$0xff] %vm2753, %v2706
      %2755 = vst.msk [vmem:[#allocation5 + $0x8] sm:$0xff] %vm2753, %v2708
      %2756 = vst.msk [vmem:[#allocation5 + $0x10] sm:$0xff] %vm2753, %v2710
      %2757 = vst.msk [vmem:[#allocation5 + $0x18] sm:$0xff] %vm2753, %v2712
      %2758 = vst.msk [vmem:[#allocation5 + $0x20] sm:$0xff] %vm2753, %v2714
      %2759 = vst.msk [vmem:[#allocation5 + $0x28] sm:$0xff] %vm2753, %v2716
      %2760 = vst.msk [vmem:[#allocation5 + $0x30] sm:$0xff] %vm2753, %v2718
      %2761 = vst.msk [vmem:[#allocation5 + $0x38] sm:$0xff] %vm2753, %v2720
      %2762 = vst.msk [vmem:[#allocation5 + $0x40] sm:$0xff] %vm2753, %v2722
      %2763 = vst.msk [vmem:[#allocation5 + $0x48] sm:$0xff] %vm2753, %v2724
      %2764 = vst.msk [vmem:[#allocation5 + $0x50] sm:$0xff] %vm2753, %v2726
      %2765 = vst.msk [vmem:[#allocation5 + $0x58] sm:$0xff] %vm2753, %v2728
      %2766 = vst.msk [vmem:[#allocation5 + $0x60] sm:$0xff] %vm2753, %v2730
      %2767 = vst.msk [vmem:[#allocation5 + $0x68] sm:$0xff] %vm2753, %v2732
      %2768 = vst.msk [vmem:[#allocation5 + $0x70] sm:$0xff] %vm2753, %v2734
      %2769 = vst.msk [vmem:[#allocation5 + $0x78] sm:$0xff] %vm2753, %v2736
      %v2770 = vld [vmem:[%s2286 + $0x1] sm:$0xff]
      %v2771 = vld [vmem:[%s2286 + $0x9] sm:$0xff]
      %v2772 = vld [vmem:[%s2286 + $0x19] sm:$0xff]
      %v2773 = vld [vmem:[%s2286 + $0x21] sm:$0xff]
      %v2774 = vld [vmem:[%s2286 + $0x31] sm:$0xff]
      %v2775 = vld [vmem:[%s2286 + $0x39] sm:$0xff]
      %v2776 = vld [vmem:[%s2286 + $0x49] sm:$0xff]
      %v2777 = vld [vmem:[%s2286 + $0x51] sm:$0xff]
      %v2778 = vld [vmem:[%s2286 + $0x61] sm:$0xff]
      %v2779 = vld [vmem:[%s2286 + $0x69] sm:$0xff]
      %v2780 = vld [vmem:[%s2286 + $0x79] sm:$0xff]
      %v2781 = vld [vmem:[%s2286 + $0x81] sm:$0xff]
      %v2782 = vld [vmem:[%s2286 + $0x91] sm:$0xff]
      %v2783 = vld [vmem:[%s2286 + $0x99] sm:$0xff]
      %v2784 = vld [vmem:[%s2286 + $0xa9] sm:$0xff]
      %v2785 = vld [vmem:[%s2286 + $0xb1] sm:$0xff]
      %v2786 = vld [vmem:[%s2286 + $0xc1] sm:$0xff]
      %v2787 = vld [vmem:[%s2286 + $0xc9] sm:$0xff]
      %v2788 = vld [vmem:[%s2286 + $0xd9] sm:$0xff]
      %v2789 = vld [vmem:[%s2286 + $0xe1] sm:$0xff]
      %v2790 = vld [vmem:[%s2286 + $0xf1] sm:$0xff]
      %v2791 = vld [vmem:[%s2286 + $0xf9] sm:$0xff]
      %v2792 = vld [vmem:[%s2286 + $0x109] sm:$0xff]
      %v2793 = vld [vmem:[%s2286 + $0x111] sm:$0xff]
      %v2794 = vld [vmem:[%s2286 + $0x121] sm:$0xff]
      %v2795 = vld [vmem:[%s2286 + $0x129] sm:$0xff]
      %v2796 = vld [vmem:[%s2286 + $0x139] sm:$0xff]
      %v2797 = vld [vmem:[%s2286 + $0x141] sm:$0xff]
      %v2798 = vld [vmem:[%s2286 + $0x151] sm:$0xff]
      %v2799 = vld [vmem:[%s2286 + $0x159] sm:$0xff]
      %v2800 = vld [vmem:[%s2286 + $0x169] sm:$0xff]
      %v2801 = vld [vmem:[%s2286 + $0x171] sm:$0xff]
      %v2802 = vpack.c.bf16 %v2771, %v2770
      %v2803 = vpack.c.bf16 %v2773, %v2772
      %v2804 = vpack.c.bf16 %v2775, %v2774
      %v2805 = vpack.c.bf16 %v2777, %v2776
      %v2806 = vpack.c.bf16 %v2779, %v2778
      %v2807 = vpack.c.bf16 %v2781, %v2780
      %v2808 = vpack.c.bf16 %v2783, %v2782
      %v2809 = vpack.c.bf16 %v2785, %v2784
      %v2810 = vpack.c.bf16 %v2787, %v2786
      %v2811 = vpack.c.bf16 %v2789, %v2788
      %v2812 = vpack.c.bf16 %v2791, %v2790
      %v2813 = vpack.c.bf16 %v2793, %v2792
      %v2814 = vpack.c.bf16 %v2795, %v2794
      %v2815 = vpack.c.bf16 %v2797, %v2796
      %v2816 = vpack.c.bf16 %v2799, %v2798
      %v2817 = vpack.c.bf16 %v2801, %v2800
      %2834 = vrot.lane.b32.xlu0 %v2802, 32
      %v2835 = vpop.permute.xlu0 %2834
      %2836 = vrot.lane.b32.xlu0 %v2803, 32
      %v2837 = vpop.permute.xlu0 %2836
      %2838 = vrot.lane.b32.xlu0 %v2804, 32
      %v2839 = vpop.permute.xlu0 %2838
      %2840 = vrot.lane.b32.xlu0 %v2805, 32
      %v2841 = vpop.permute.xlu0 %2840
      %2842 = vrot.lane.b32.xlu0 %v2806, 32
      %v2843 = vpop.permute.xlu0 %2842
      %2844 = vrot.lane.b32.xlu0 %v2807, 32
      %v2845 = vpop.permute.xlu0 %2844
      %2846 = vrot.lane.b32.xlu0 %v2808, 32
      %v2847 = vpop.permute.xlu0 %2846
      %2848 = vrot.lane.b32.xlu0 %v2809, 32
      %v2849 = vpop.permute.xlu0 %2848
      %2850 = vrot.lane.b32.xlu0 %v2810, 32
      %v2851 = vpop.permute.xlu0 %2850
      %2852 = vrot.lane.b32.xlu0 %v2811, 32
      %v2853 = vpop.permute.xlu0 %2852
      %2854 = vrot.lane.b32.xlu0 %v2812, 32
      %v2855 = vpop.permute.xlu0 %2854
      %2856 = vrot.lane.b32.xlu0 %v2813, 32
      %v2857 = vpop.permute.xlu0 %2856
      %2858 = vrot.lane.b32.xlu0 %v2814, 32
      %v2859 = vpop.permute.xlu0 %2858
      %2860 = vrot.lane.b32.xlu0 %v2815, 32
      %v2861 = vpop.permute.xlu0 %2860
      %2862 = vrot.lane.b32.xlu0 %v2816, 32
      %v2863 = vpop.permute.xlu0 %2862
      %2864 = vrot.lane.b32.xlu0 %v2817, 32
      %v2865 = vpop.permute.xlu0 %2864
      %vm2882 = vcmask 326912
      %2883 = vst.msk [vmem:[#allocation5] sm:$0xff] %vm2882, %v2835
      %2884 = vst.msk [vmem:[#allocation5 + $0x8] sm:$0xff] %vm2882, %v2837
      %2885 = vst.msk [vmem:[#allocation5 + $0x10] sm:$0xff] %vm2882, %v2839
      %2886 = vst.msk [vmem:[#allocation5 + $0x18] sm:$0xff] %vm2882, %v2841
      %2887 = vst.msk [vmem:[#allocation5 + $0x20] sm:$0xff] %vm2882, %v2843
      %2888 = vst.msk [vmem:[#allocation5 + $0x28] sm:$0xff] %vm2882, %v2845
      %2889 = vst.msk [vmem:[#allocation5 + $0x30] sm:$0xff] %vm2882, %v2847
      %2890 = vst.msk [vmem:[#allocation5 + $0x38] sm:$0xff] %vm2882, %v2849
      %2891 = vst.msk [vmem:[#allocation5 + $0x40] sm:$0xff] %vm2882, %v2851
      %2892 = vst.msk [vmem:[#allocation5 + $0x48] sm:$0xff] %vm2882, %v2853
      %2893 = vst.msk [vmem:[#allocation5 + $0x50] sm:$0xff] %vm2882, %v2855
      %2894 = vst.msk [vmem:[#allocation5 + $0x58] sm:$0xff] %vm2882, %v2857
      %2895 = vst.msk [vmem:[#allocation5 + $0x60] sm:$0xff] %vm2882, %v2859
      %2896 = vst.msk [vmem:[#allocation5 + $0x68] sm:$0xff] %vm2882, %v2861
      %2897 = vst.msk [vmem:[#allocation5 + $0x70] sm:$0xff] %vm2882, %v2863
      %2898 = vst.msk [vmem:[#allocation5 + $0x78] sm:$0xff] %vm2882, %v2865
      %v2899 = vld [vmem:[%s2286 + $0x2] sm:$0xff]
      %v2900 = vld [vmem:[%s2286 + $0xa] sm:$0xff]
      %v2901 = vld [vmem:[%s2286 + $0x1a] sm:$0xff]
      %v2902 = vld [vmem:[%s2286 + $0x22] sm:$0xff]
      %v2903 = vld [vmem:[%s2286 + $0x32] sm:$0xff]
      %v2904 = vld [vmem:[%s2286 + $0x3a] sm:$0xff]
      %v2905 = vld [vmem:[%s2286 + $0x4a] sm:$0xff]
      %v2906 = vld [vmem:[%s2286 + $0x52] sm:$0xff]
      %v2907 = vld [vmem:[%s2286 + $0x62] sm:$0xff]
      %v2908 = vld [vmem:[%s2286 + $0x6a] sm:$0xff]
      %v2909 = vld [vmem:[%s2286 + $0x7a] sm:$0xff]
      %v2910 = vld [vmem:[%s2286 + $0x82] sm:$0xff]
      %v2911 = vld [vmem:[%s2286 + $0x92] sm:$0xff]
      %v2912 = vld [vmem:[%s2286 + $0x9a] sm:$0xff]
      %v2913 = vld [vmem:[%s2286 + $0xaa] sm:$0xff]
      %v2914 = vld [vmem:[%s2286 + $0xb2] sm:$0xff]
      %v2915 = vld [vmem:[%s2286 + $0xc2] sm:$0xff]
      %v2916 = vld [vmem:[%s2286 + $0xca] sm:$0xff]
      %v2917 = vld [vmem:[%s2286 + $0xda] sm:$0xff]
      %v2918 = vld [vmem:[%s2286 + $0xe2] sm:$0xff]
      %v2919 = vld [vmem:[%s2286 + $0xf2] sm:$0xff]
      %v2920 = vld [vmem:[%s2286 + $0xfa] sm:$0xff]
      %v2921 = vld [vmem:[%s2286 + $0x10a] sm:$0xff]
      %v2922 = vld [vmem:[%s2286 + $0x112] sm:$0xff]
      %v2923 = vld [vmem:[%s2286 + $0x122] sm:$0xff]
      %v2924 = vld [vmem:[%s2286 + $0x12a] sm:$0xff]
      %v2925 = vld [vmem:[%s2286 + $0x13a] sm:$0xff]
      %v2926 = vld [vmem:[%s2286 + $0x142] sm:$0xff]
      %v2927 = vld [vmem:[%s2286 + $0x152] sm:$0xff]
      %v2928 = vld [vmem:[%s2286 + $0x15a] sm:$0xff]
      %v2929 = vld [vmem:[%s2286 + $0x16a] sm:$0xff]
      %v2930 = vld [vmem:[%s2286 + $0x172] sm:$0xff]
      %v2931 = vpack.c.bf16 %v2900, %v2899
      %v2932 = vpack.c.bf16 %v2902, %v2901
      %v2933 = vpack.c.bf16 %v2904, %v2903
      %v2934 = vpack.c.bf16 %v2906, %v2905
      %v2935 = vpack.c.bf16 %v2908, %v2907
      %v2936 = vpack.c.bf16 %v2910, %v2909
      %v2937 = vpack.c.bf16 %v2912, %v2911
      %v2938 = vpack.c.bf16 %v2914, %v2913
      %v2939 = vpack.c.bf16 %v2916, %v2915
      %v2940 = vpack.c.bf16 %v2918, %v2917
      %v2941 = vpack.c.bf16 %v2920, %v2919
      %v2942 = vpack.c.bf16 %v2922, %v2921
      %v2943 = vpack.c.bf16 %v2924, %v2923
      %v2944 = vpack.c.bf16 %v2926, %v2925
      %v2945 = vpack.c.bf16 %v2928, %v2927
      %v2946 = vpack.c.bf16 %v2930, %v2929
      %2963 = vrot.lane.b32.xlu0 %v2931, 40
      %v2964 = vpop.permute.xlu0 %2963
      %2965 = vrot.lane.b32.xlu0 %v2932, 40
      %v2966 = vpop.permute.xlu0 %2965
      %2967 = vrot.lane.b32.xlu0 %v2933, 40
      %v2968 = vpop.permute.xlu0 %2967
      %2969 = vrot.lane.b32.xlu0 %v2934, 40
      %v2970 = vpop.permute.xlu0 %2969
      %2971 = vrot.lane.b32.xlu0 %v2935, 40
      %v2972 = vpop.permute.xlu0 %2971
      %2973 = vrot.lane.b32.xlu0 %v2936, 40
      %v2974 = vpop.permute.xlu0 %2973
      %2975 = vrot.lane.b32.xlu0 %v2937, 40
      %v2976 = vpop.permute.xlu0 %2975
      %2977 = vrot.lane.b32.xlu0 %v2938, 40
      %v2978 = vpop.permute.xlu0 %2977
      %2979 = vrot.lane.b32.xlu0 %v2939, 40
      %v2980 = vpop.permute.xlu0 %2979
      %2981 = vrot.lane.b32.xlu0 %v2940, 40
      %v2982 = vpop.permute.xlu0 %2981
      %2983 = vrot.lane.b32.xlu0 %v2941, 40
      %v2984 = vpop.permute.xlu0 %2983
      %2985 = vrot.lane.b32.xlu0 %v2942, 40
      %v2986 = vpop.permute.xlu0 %2985
      %2987 = vrot.lane.b32.xlu0 %v2943, 40
      %v2988 = vpop.permute.xlu0 %2987
      %2989 = vrot.lane.b32.xlu0 %v2944, 40
      %v2990 = vpop.permute.xlu0 %2989
      %2991 = vrot.lane.b32.xlu0 %v2945, 40
      %v2992 = vpop.permute.xlu0 %2991
      %2993 = vrot.lane.b32.xlu0 %v2946, 40
      %v2994 = vpop.permute.xlu0 %2993
      %vm3011 = vcmask 392512
      %3012 = vst.msk [vmem:[#allocation5] sm:$0xff] %vm3011, %v2964
      %3013 = vst.msk [vmem:[#allocation5 + $0x8] sm:$0xff] %vm3011, %v2966
      %3014 = vst.msk [vmem:[#allocation5 + $0x10] sm:$0xff] %vm3011, %v2968
      %3015 = vst.msk [vmem:[#allocation5 + $0x18] sm:$0xff] %vm3011, %v2970
      %3016 = vst.msk [vmem:[#allocation5 + $0x20] sm:$0xff] %vm3011, %v2972
      %3017 = vst.msk [vmem:[#allocation5 + $0x28] sm:$0xff] %vm3011, %v2974
      %3018 = vst.msk [vmem:[#allocation5 + $0x30] sm:$0xff] %vm3011, %v2976
      %3019 = vst.msk [vmem:[#allocation5 + $0x38] sm:$0xff] %vm3011, %v2978
      %3020 = vst.msk [vmem:[#allocation5 + $0x40] sm:$0xff] %vm3011, %v2980
      %3021 = vst.msk [vmem:[#allocation5 + $0x48] sm:$0xff] %vm3011, %v2982
      %3022 = vst.msk [vmem:[#allocation5 + $0x50] sm:$0xff] %vm3011, %v2984
      %3023 = vst.msk [vmem:[#allocation5 + $0x58] sm:$0xff] %vm3011, %v2986
      %3024 = vst.msk [vmem:[#allocation5 + $0x60] sm:$0xff] %vm3011, %v2988
      %3025 = vst.msk [vmem:[#allocation5 + $0x68] sm:$0xff] %vm3011, %v2990
      %3026 = vst.msk [vmem:[#allocation5 + $0x70] sm:$0xff] %vm3011, %v2992
      %3027 = vst.msk [vmem:[#allocation5 + $0x78] sm:$0xff] %vm3011, %v2994
      %s3028 = scalar_lea.vmem [#allocation3], 48
      %v3029 = vld [vmem:[%s3028] sm:$0xff]
      %v3030 = vld [vmem:[%s3028 + $0x8] sm:$0xff]
      %v3031 = vld [vmem:[%s3028 + $0x18] sm:$0xff]
      %v3032 = vld [vmem:[%s3028 + $0x20] sm:$0xff]
      %v3033 = vld [vmem:[%s3028 + $0x30] sm:$0xff]
      %v3034 = vld [vmem:[%s3028 + $0x38] sm:$0xff]
      %v3035 = vld [vmem:[%s3028 + $0x48] sm:$0xff]
      %v3036 = vld [vmem:[%s3028 + $0x50] sm:$0xff]
      %v3037 = vld [vmem:[%s3028 + $0x60] sm:$0xff]
      %v3038 = vld [vmem:[%s3028 + $0x68] sm:$0xff]
      %v3039 = vld [vmem:[%s3028 + $0x78] sm:$0xff]
      %v3040 = vld [vmem:[%s3028 + $0x80] sm:$0xff]
      %v3041 = vld [vmem:[%s3028 + $0x90] sm:$0xff]
      %v3042 = vld [vmem:[%s3028 + $0x98] sm:$0xff]
      %v3043 = vld [vmem:[%s3028 + $0xa8] sm:$0xff]
      %v3044 = vld [vmem:[%s3028 + $0xb0] sm:$0xff]
      %v3045 = vld [vmem:[%s3028 + $0xc0] sm:$0xff]
      %v3046 = vld [vmem:[%s3028 + $0xc8] sm:$0xff]
      %v3047 = vld [vmem:[%s3028 + $0xd8] sm:$0xff]
      %v3048 = vld [vmem:[%s3028 + $0xe0] sm:$0xff]
      %v3049 = vld [vmem:[%s3028 + $0xf0] sm:$0xff]
      %v3050 = vld [vmem:[%s3028 + $0xf8] sm:$0xff]
      %v3051 = vld [vmem:[%s3028 + $0x108] sm:$0xff]
      %v3052 = vld [vmem:[%s3028 + $0x110] sm:$0xff]
      %v3053 = vld [vmem:[%s3028 + $0x120] sm:$0xff]
      %v3054 = vld [vmem:[%s3028 + $0x128] sm:$0xff]
      %v3055 = vld [vmem:[%s3028 + $0x138] sm:$0xff]
      %v3056 = vld [vmem:[%s3028 + $0x140] sm:$0xff]
      %v3057 = vld [vmem:[%s3028 + $0x150] sm:$0xff]
      %v3058 = vld [vmem:[%s3028 + $0x158] sm:$0xff]
      %v3059 = vld [vmem:[%s3028 + $0x168] sm:$0xff]
      %v3060 = vld [vmem:[%s3028 + $0x170] sm:$0xff]
      %v3061 = vpack.c.bf16 %v3030, %v3029
      %v3062 = vpack.c.bf16 %v3032, %v3031
      %v3063 = vpack.c.bf16 %v3034, %v3033
      %v3064 = vpack.c.bf16 %v3036, %v3035
      %v3065 = vpack.c.bf16 %v3038, %v3037
      %v3066 = vpack.c.bf16 %v3040, %v3039
      %v3067 = vpack.c.bf16 %v3042, %v3041
      %v3068 = vpack.c.bf16 %v3044, %v3043
      %v3069 = vpack.c.bf16 %v3046, %v3045
      %v3070 = vpack.c.bf16 %v3048, %v3047
      %v3071 = vpack.c.bf16 %v3050, %v3049
      %v3072 = vpack.c.bf16 %v3052, %v3051
      %v3073 = vpack.c.bf16 %v3054, %v3053
      %v3074 = vpack.c.bf16 %v3056, %v3055
      %v3075 = vpack.c.bf16 %v3058, %v3057
      %v3076 = vpack.c.bf16 %v3060, %v3059
      %3093 = vrot.lane.b32.xlu0 %v3061, 48
      %v3094 = vpop.permute.xlu0 %3093
      %3095 = vrot.lane.b32.xlu0 %v3062, 48
      %v3096 = vpop.permute.xlu0 %3095
      %3097 = vrot.lane.b32.xlu0 %v3063, 48
      %v3098 = vpop.permute.xlu0 %3097
      %3099 = vrot.lane.b32.xlu0 %v3064, 48
      %v3100 = vpop.permute.xlu0 %3099
      %3101 = vrot.lane.b32.xlu0 %v3065, 48
      %v3102 = vpop.permute.xlu0 %3101
      %3103 = vrot.lane.b32.xlu0 %v3066, 48
      %v3104 = vpop.permute.xlu0 %3103
      %3105 = vrot.lane.b32.xlu0 %v3067, 48
      %v3106 = vpop.permute.xlu0 %3105
      %3107 = vrot.lane.b32.xlu0 %v3068, 48
      %v3108 = vpop.permute.xlu0 %3107
      %3109 = vrot.lane.b32.xlu0 %v3069, 48
      %v3110 = vpop.permute.xlu0 %3109
      %3111 = vrot.lane.b32.xlu0 %v3070, 48
      %v3112 = vpop.permute.xlu0 %3111
      %3113 = vrot.lane.b32.xlu0 %v3071, 48
      %v3114 = vpop.permute.xlu0 %3113
      %3115 = vrot.lane.b32.xlu0 %v3072, 48
      %v3116 = vpop.permute.xlu0 %3115
      %3117 = vrot.lane.b32.xlu0 %v3073, 48
      %v3118 = vpop.permute.xlu0 %3117
      %3119 = vrot.lane.b32.xlu0 %v3074, 48
      %v3120 = vpop.permute.xlu0 %3119
      %3121 = vrot.lane.b32.xlu0 %v3075, 48
      %v3122 = vpop.permute.xlu0 %3121
      %3123 = vrot.lane.b32.xlu0 %v3076, 48
      %v3124 = vpop.permute.xlu0 %3123
      %vm3141 = vcmask 458112
      %3142 = vst.msk [vmem:[#allocation5] sm:$0xff] %vm3141, %v3094
      %3143 = vst.msk [vmem:[#allocation5 + $0x8] sm:$0xff] %vm3141, %v3096
      %3144 = vst.msk [vmem:[#allocation5 + $0x10] sm:$0xff] %vm3141, %v3098
      %3145 = vst.msk [vmem:[#allocation5 + $0x18] sm:$0xff] %vm3141, %v3100
      %3146 = vst.msk [vmem:[#allocation5 + $0x20] sm:$0xff] %vm3141, %v3102
      %3147 = vst.msk [vmem:[#allocation5 + $0x28] sm:$0xff] %vm3141, %v3104
      %3148 = vst.msk [vmem:[#allocation5 + $0x30] sm:$0xff] %vm3141, %v3106
      %3149 = vst.msk [vmem:[#allocation5 + $0x38] sm:$0xff] %vm3141, %v3108
      %3150 = vst.msk [vmem:[#allocation5 + $0x40] sm:$0xff] %vm3141, %v3110
      %3151 = vst.msk [vmem:[#allocation5 + $0x48] sm:$0xff] %vm3141, %v3112
      %3152 = vst.msk [vmem:[#allocation5 + $0x50] sm:$0xff] %vm3141, %v3114
      %3153 = vst.msk [vmem:[#allocation5 + $0x58] sm:$0xff] %vm3141, %v3116
      %3154 = vst.msk [vmem:[#allocation5 + $0x60] sm:$0xff] %vm3141, %v3118
      %3155 = vst.msk [vmem:[#allocation5 + $0x68] sm:$0xff] %vm3141, %v3120
      %3156 = vst.msk [vmem:[#allocation5 + $0x70] sm:$0xff] %vm3141, %v3122
      %3157 = vst.msk [vmem:[#allocation5 + $0x78] sm:$0xff] %vm3141, %v3124
      %v3158 = vld [vmem:[%s3028 + $0x1] sm:$0xff]
      %v3159 = vld [vmem:[%s3028 + $0x9] sm:$0xff]
      %v3160 = vld [vmem:[%s3028 + $0x19] sm:$0xff]
      %v3161 = vld [vmem:[%s3028 + $0x21] sm:$0xff]
      %v3162 = vld [vmem:[%s3028 + $0x31] sm:$0xff]
      %v3163 = vld [vmem:[%s3028 + $0x39] sm:$0xff]
      %v3164 = vld [vmem:[%s3028 + $0x49] sm:$0xff]
      %v3165 = vld [vmem:[%s3028 + $0x51] sm:$0xff]
      %v3166 = vld [vmem:[%s3028 + $0x61] sm:$0xff]
      %v3167 = vld [vmem:[%s3028 + $0x69] sm:$0xff]
      %v3168 = vld [vmem:[%s3028 + $0x79] sm:$0xff]
      %v3169 = vld [vmem:[%s3028 + $0x81] sm:$0xff]
      %v3170 = vld [vmem:[%s3028 + $0x91] sm:$0xff]
      %v3171 = vld [vmem:[%s3028 + $0x99] sm:$0xff]
      %v3172 = vld [vmem:[%s3028 + $0xa9] sm:$0xff]
      %v3173 = vld [vmem:[%s3028 + $0xb1] sm:$0xff]
      %v3174 = vld [vmem:[%s3028 + $0xc1] sm:$0xff]
      %v3175 = vld [vmem:[%s3028 + $0xc9] sm:$0xff]
      %v3176 = vld [vmem:[%s3028 + $0xd9] sm:$0xff]
      %v3177 = vld [vmem:[%s3028 + $0xe1] sm:$0xff]
      %v3178 = vld [vmem:[%s3028 + $0xf1] sm:$0xff]
      %v3179 = vld [vmem:[%s3028 + $0xf9] sm:$0xff]
      %v3180 = vld [vmem:[%s3028 + $0x109] sm:$0xff]
      %v3181 = vld [vmem:[%s3028 + $0x111] sm:$0xff]
      %v3182 = vld [vmem:[%s3028 + $0x121] sm:$0xff]
      %v3183 = vld [vmem:[%s3028 + $0x129] sm:$0xff]
      %v3184 = vld [vmem:[%s3028 + $0x139] sm:$0xff]
      %v3185 = vld [vmem:[%s3028 + $0x141] sm:$0xff]
      %v3186 = vld [vmem:[%s3028 + $0x151] sm:$0xff]
      %v3187 = vld [vmem:[%s3028 + $0x159] sm:$0xff]
      %v3188 = vld [vmem:[%s3028 + $0x169] sm:$0xff]
      %v3189 = vld [vmem:[%s3028 + $0x171] sm:$0xff]
      %v3190 = vpack.c.bf16 %v3159, %v3158
      %v3191 = vpack.c.bf16 %v3161, %v3160
      %v3192 = vpack.c.bf16 %v3163, %v3162
      %v3193 = vpack.c.bf16 %v3165, %v3164
      %v3194 = vpack.c.bf16 %v3167, %v3166
      %v3195 = vpack.c.bf16 %v3169, %v3168
      %v3196 = vpack.c.bf16 %v3171, %v3170
      %v3197 = vpack.c.bf16 %v3173, %v3172
      %v3198 = vpack.c.bf16 %v3175, %v3174
      %v3199 = vpack.c.bf16 %v3177, %v3176
      %v3200 = vpack.c.bf16 %v3179, %v3178
      %v3201 = vpack.c.bf16 %v3181, %v3180
      %v3202 = vpack.c.bf16 %v3183, %v3182
      %v3203 = vpack.c.bf16 %v3185, %v3184
      %v3204 = vpack.c.bf16 %v3187, %v3186
      %v3205 = vpack.c.bf16 %v3189, %v3188
      %3222 = vrot.lane.b32.xlu0 %v3190, 56
      %v3223 = vpop.permute.xlu0 %3222
      %3224 = vrot.lane.b32.xlu0 %v3191, 56
      %v3225 = vpop.permute.xlu0 %3224
      %3226 = vrot.lane.b32.xlu0 %v3192, 56
      %v3227 = vpop.permute.xlu0 %3226
      %3228 = vrot.lane.b32.xlu0 %v3193, 56
      %v3229 = vpop.permute.xlu0 %3228
      %3230 = vrot.lane.b32.xlu0 %v3194, 56
      %v3231 = vpop.permute.xlu0 %3230
      %3232 = vrot.lane.b32.xlu0 %v3195, 56
      %v3233 = vpop.permute.xlu0 %3232
      %3234 = vrot.lane.b32.xlu0 %v3196, 56
      %v3235 = vpop.permute.xlu0 %3234
      %3236 = vrot.lane.b32.xlu0 %v3197, 56
      %v3237 = vpop.permute.xlu0 %3236
      %3238 = vrot.lane.b32.xlu0 %v3198, 56
      %v3239 = vpop.permute.xlu0 %3238
      %3240 = vrot.lane.b32.xlu0 %v3199, 56
      %v3241 = vpop.permute.xlu0 %3240
      %3242 = vrot.lane.b32.xlu0 %v3200, 56
      %v3243 = vpop.permute.xlu0 %3242
      %3244 = vrot.lane.b32.xlu0 %v3201, 56
      %v3245 = vpop.permute.xlu0 %3244
      %3246 = vrot.lane.b32.xlu0 %v3202, 56
      %v3247 = vpop.permute.xlu0 %3246
      %3248 = vrot.lane.b32.xlu0 %v3203, 56
      %v3249 = vpop.permute.xlu0 %3248
      %3250 = vrot.lane.b32.xlu0 %v3204, 56
      %v3251 = vpop.permute.xlu0 %3250
      %3252 = vrot.lane.b32.xlu0 %v3205, 56
      %v3253 = vpop.permute.xlu0 %3252
      %vm3270 = vcmask 523712
      %3271 = vst.msk [vmem:[#allocation5] sm:$0xff] %vm3270, %v3223
      %3272 = vst.msk [vmem:[#allocation5 + $0x8] sm:$0xff] %vm3270, %v3225
      %3273 = vst.msk [vmem:[#allocation5 + $0x10] sm:$0xff] %vm3270, %v3227
      %3274 = vst.msk [vmem:[#allocation5 + $0x18] sm:$0xff] %vm3270, %v3229
      %3275 = vst.msk [vmem:[#allocation5 + $0x20] sm:$0xff] %vm3270, %v3231
      %3276 = vst.msk [vmem:[#allocation5 + $0x28] sm:$0xff] %vm3270, %v3233
      %3277 = vst.msk [vmem:[#allocation5 + $0x30] sm:$0xff] %vm3270, %v3235
      %3278 = vst.msk [vmem:[#allocation5 + $0x38] sm:$0xff] %vm3270, %v3237
      %3279 = vst.msk [vmem:[#allocation5 + $0x40] sm:$0xff] %vm3270, %v3239
      %3280 = vst.msk [vmem:[#allocation5 + $0x48] sm:$0xff] %vm3270, %v3241
      %3281 = vst.msk [vmem:[#allocation5 + $0x50] sm:$0xff] %vm3270, %v3243
      %3282 = vst.msk [vmem:[#allocation5 + $0x58] sm:$0xff] %vm3270, %v3245
      %3283 = vst.msk [vmem:[#allocation5 + $0x60] sm:$0xff] %vm3270, %v3247
      %3284 = vst.msk [vmem:[#allocation5 + $0x68] sm:$0xff] %vm3270, %v3249
      %3285 = vst.msk [vmem:[#allocation5 + $0x70] sm:$0xff] %vm3270, %v3251
      %3286 = vst.msk [vmem:[#allocation5 + $0x78] sm:$0xff] %vm3270, %v3253
      %v3287 = vld [vmem:[%s3028 + $0x2] sm:$0xff]
      %v3288 = vld [vmem:[%s3028 + $0xa] sm:$0xff]
      %v3289 = vld [vmem:[%s3028 + $0x1a] sm:$0xff]
      %v3290 = vld [vmem:[%s3028 + $0x22] sm:$0xff]
      %v3291 = vld [vmem:[%s3028 + $0x32] sm:$0xff]
      %v3292 = vld [vmem:[%s3028 + $0x3a] sm:$0xff]
      %v3293 = vld [vmem:[%s3028 + $0x4a] sm:$0xff]
      %v3294 = vld [vmem:[%s3028 + $0x52] sm:$0xff]
      %v3295 = vld [vmem:[%s3028 + $0x62] sm:$0xff]
      %v3296 = vld [vmem:[%s3028 + $0x6a] sm:$0xff]
      %v3297 = vld [vmem:[%s3028 + $0x7a] sm:$0xff]
      %v3298 = vld [vmem:[%s3028 + $0x82] sm:$0xff]
      %v3299 = vld [vmem:[%s3028 + $0x92] sm:$0xff]
      %v3300 = vld [vmem:[%s3028 + $0x9a] sm:$0xff]
      %v3301 = vld [vmem:[%s3028 + $0xaa] sm:$0xff]
      %v3302 = vld [vmem:[%s3028 + $0xb2] sm:$0xff]
      %v3303 = vld [vmem:[%s3028 + $0xc2] sm:$0xff]
      %v3304 = vld [vmem:[%s3028 + $0xca] sm:$0xff]
      %v3305 = vld [vmem:[%s3028 + $0xda] sm:$0xff]
      %v3306 = vld [vmem:[%s3028 + $0xe2] sm:$0xff]
      %v3307 = vld [vmem:[%s3028 + $0xf2] sm:$0xff]
      %v3308 = vld [vmem:[%s3028 + $0xfa] sm:$0xff]
      %v3309 = vld [vmem:[%s3028 + $0x10a] sm:$0xff]
      %v3310 = vld [vmem:[%s3028 + $0x112] sm:$0xff]
      %v3311 = vld [vmem:[%s3028 + $0x122] sm:$0xff]
      %v3312 = vld [vmem:[%s3028 + $0x12a] sm:$0xff]
      %v3313 = vld [vmem:[%s3028 + $0x13a] sm:$0xff]
      %v3314 = vld [vmem:[%s3028 + $0x142] sm:$0xff]
      %v3315 = vld [vmem:[%s3028 + $0x152] sm:$0xff]
      %v3316 = vld [vmem:[%s3028 + $0x15a] sm:$0xff]
      %v3317 = vld [vmem:[%s3028 + $0x16a] sm:$0xff]
      %v3318 = vld [vmem:[%s3028 + $0x172] sm:$0xff]
      %v3319 = vpack.c.bf16 %v3288, %v3287
      %v3320 = vpack.c.bf16 %v3290, %v3289
      %v3321 = vpack.c.bf16 %v3292, %v3291
      %v3322 = vpack.c.bf16 %v3294, %v3293
      %v3323 = vpack.c.bf16 %v3296, %v3295
      %v3324 = vpack.c.bf16 %v3298, %v3297
      %v3325 = vpack.c.bf16 %v3300, %v3299
      %v3326 = vpack.c.bf16 %v3302, %v3301
      %v3327 = vpack.c.bf16 %v3304, %v3303
      %v3328 = vpack.c.bf16 %v3306, %v3305
      %v3329 = vpack.c.bf16 %v3308, %v3307
      %v3330 = vpack.c.bf16 %v3310, %v3309
      %v3331 = vpack.c.bf16 %v3312, %v3311
      %v3332 = vpack.c.bf16 %v3314, %v3313
      %v3333 = vpack.c.bf16 %v3316, %v3315
      %v3334 = vpack.c.bf16 %v3318, %v3317
      %3351 = vrot.lane.b32.xlu0 %v3319, 64
      %v3352 = vpop.permute.xlu0 %3351
      %3353 = vrot.lane.b32.xlu0 %v3320, 64
      %v3354 = vpop.permute.xlu0 %3353
      %3355 = vrot.lane.b32.xlu0 %v3321, 64
      %v3356 = vpop.permute.xlu0 %3355
      %3357 = vrot.lane.b32.xlu0 %v3322, 64
      %v3358 = vpop.permute.xlu0 %3357
      %3359 = vrot.lane.b32.xlu0 %v3323, 64
      %v3360 = vpop.permute.xlu0 %3359
      %3361 = vrot.lane.b32.xlu0 %v3324, 64
      %v3362 = vpop.permute.xlu0 %3361
      %3363 = vrot.lane.b32.xlu0 %v3325, 64
      %v3364 = vpop.permute.xlu0 %3363
      %3365 = vrot.lane.b32.xlu0 %v3326, 64
      %v3366 = vpop.permute.xlu0 %3365
      %3367 = vrot.lane.b32.xlu0 %v3327, 64
      %v3368 = vpop.permute.xlu0 %3367
      %3369 = vrot.lane.b32.xlu0 %v3328, 64
      %v3370 = vpop.permute.xlu0 %3369
      %3371 = vrot.lane.b32.xlu0 %v3329, 64
      %v3372 = vpop.permute.xlu0 %3371
      %3373 = vrot.lane.b32.xlu0 %v3330, 64
      %v3374 = vpop.permute.xlu0 %3373
      %3375 = vrot.lane.b32.xlu0 %v3331, 64
      %v3376 = vpop.permute.xlu0 %3375
      %3377 = vrot.lane.b32.xlu0 %v3332, 64
      %v3378 = vpop.permute.xlu0 %3377
      %3379 = vrot.lane.b32.xlu0 %v3333, 64
      %v3380 = vpop.permute.xlu0 %3379
      %3381 = vrot.lane.b32.xlu0 %v3334, 64
      %v3382 = vpop.permute.xlu0 %3381
      %vm3399 = vcmask 589312
      %3400 = vst.msk [vmem:[#allocation5] sm:$0xff] %vm3399, %v3352
      %3401 = vst.msk [vmem:[#allocation5 + $0x8] sm:$0xff] %vm3399, %v3354
      %3402 = vst.msk [vmem:[#allocation5 + $0x10] sm:$0xff] %vm3399, %v3356
      %3403 = vst.msk [vmem:[#allocation5 + $0x18] sm:$0xff] %vm3399, %v3358
      %3404 = vst.msk [vmem:[#allocation5 + $0x20] sm:$0xff] %vm3399, %v3360
      %3405 = vst.msk [vmem:[#allocation5 + $0x28] sm:$0xff] %vm3399, %v3362
      %3406 = vst.msk [vmem:[#allocation5 + $0x30] sm:$0xff] %vm3399, %v3364
      %3407 = vst.msk [vmem:[#allocation5 + $0x38] sm:$0xff] %vm3399, %v3366
      %3408 = vst.msk [vmem:[#allocation5 + $0x40] sm:$0xff] %vm3399, %v3368
      %3409 = vst.msk [vmem:[#allocation5 + $0x48] sm:$0xff] %vm3399, %v3370
      %3410 = vst.msk [vmem:[#allocation5 + $0x50] sm:$0xff] %vm3399, %v3372
      %3411 = vst.msk [vmem:[#allocation5 + $0x58] sm:$0xff] %vm3399, %v3374
      %3412 = vst.msk [vmem:[#allocation5 + $0x60] sm:$0xff] %vm3399, %v3376
      %3413 = vst.msk [vmem:[#allocation5 + $0x68] sm:$0xff] %vm3399, %v3378
      %3414 = vst.msk [vmem:[#allocation5 + $0x70] sm:$0xff] %vm3399, %v3380
      %3415 = vst.msk [vmem:[#allocation5 + $0x78] sm:$0xff] %vm3399, %v3382
      %v3416 = vld [vmem:[#allocation5] sm:$0xff]
      %v3417 = vld [vmem:[#allocation5 + $0x8] sm:$0xff]
      %v3418 = vld [vmem:[#allocation5 + $0x10] sm:$0xff]
      %v3419 = vld [vmem:[#allocation5 + $0x18] sm:$0xff]
      %v3420 = vld [vmem:[#allocation5 + $0x20] sm:$0xff]
      %v3421 = vld [vmem:[#allocation5 + $0x28] sm:$0xff]
      %v3422 = vld [vmem:[#allocation5 + $0x30] sm:$0xff]
      %v3423 = vld [vmem:[#allocation5 + $0x38] sm:$0xff]
      %v3424 = vld [vmem:[#allocation5 + $0x40] sm:$0xff]
      %v3425 = vld [vmem:[#allocation5 + $0x48] sm:$0xff]
      %v3426 = vld [vmem:[#allocation5 + $0x50] sm:$0xff]
      %v3427 = vld [vmem:[#allocation5 + $0x58] sm:$0xff]
      %v3428 = vld [vmem:[#allocation5 + $0x60] sm:$0xff]
      %v3429 = vld [vmem:[#allocation5 + $0x68] sm:$0xff]
      %v3430 = vld [vmem:[#allocation5 + $0x70] sm:$0xff]
      %v3431 = vld [vmem:[#allocation5 + $0x78] sm:$0xff]
      %v3432 = vld [vmem:[%s3] sm:$0xf]
      %v3433 = vld [vmem:[%s3 + $0x4] sm:$0xf]
      %v3434 = vld [vmem:[%s3 + $0x8] sm:$0xf]
      %v3435 = vld [vmem:[%s3 + $0xc] sm:$0xf]
      %v3436 = vld [vmem:[%s3 + $0x10] sm:$0xf]
      %v3437 = vld [vmem:[%s3 + $0x14] sm:$0xf]
      %v3438 = vld [vmem:[%s3 + $0x18] sm:$0xf]
      %v3439 = vld [vmem:[%s3 + $0x1c] sm:$0xf]
      %v3440 = vld [vmem:[%s3 + $0x20] sm:$0xf]
      %v3441 = vld [vmem:[%s4] sm:$0x1]
      %v3443 = vlaneseq
      %v3444 = vshrl.u32 %v3443, 7
      %v3445 = vsub.s32 0, %v3444
      %v3446 = vrot.slane %v3441, %v3445
      %v3457 = vunpack.c.l.b16 %v3432
      %v3458 = vunpack.c.l.b16 %v3433
      %v3459 = vunpack.c.l.b16 %v3434
      %v3460 = vunpack.c.l.b16 %v3435
      %v3461 = vunpack.c.l.b16 %v3436
      %v3462 = vunpack.c.l.b16 %v3437
      %v3463 = vunpack.c.l.b16 %v3438
      %v3464 = vunpack.c.l.b16 %v3439
      %v3465 = vunpack.c.l.b16 %v3440
      %v3466 = vpack.c.b16 %v3458, %v3457
      %v3467 = vpack.c.b16 %v3460, %v3459
      %v3468 = vpack.c.b16 %v3462, %v3461
      %v3469 = vpack.c.b16 %v3464, %v3463
      %v3470 = vpack.c.b16 %v3465, %v3465
      %vm3475 = vcmask 588800
      %v3477 = vsel %vm3475, %v3416, 0
      %v3480 = vsel %vm3475, %v3417, 0
      %v3483 = vsel %vm3475, %v3418, 0
      %v3486 = vsel %vm3475, %v3419, 0
      %v3489 = vsel %vm3475, %v3420, 0
      %v3492 = vsel %vm3475, %v3421, 0
      %v3495 = vsel %vm3475, %v3422, 0
      %v3498 = vsel %vm3475, %v3423, 0
      %v3501 = vsel %vm3475, %v3424, 0
      %v3504 = vsel %vm3475, %v3425, 0
      %v3507 = vsel %vm3475, %v3426, 0
      %v3510 = vsel %vm3475, %v3427, 0
      %v3513 = vsel %vm3475, %v3428, 0
      %v3516 = vsel %vm3475, %v3429, 0
      %v3519 = vsel %vm3475, %v3430, 0
      %v3522 = vsel %vm3475, %v3431, 0
      %vm3524 = vcmask 1043456
      %v3526 = vsel %vm3524, %v3470, 0
      %3528 = vmatprep.subr.bf16.mxu0 0
      %3529 = vmatpush1.bf16.msra.mxu0 %v3466
      %3530 = vmatprep.subr.bf16.mxu0 0
      %3531 = vmatpush1.bf16.msra.mxu0 %v3467
      %3532 = vmatprep.subr.bf16.mxu0 0
      %3533 = vmatpush1.bf16.msra.mxu0 %v3468
      %3534 = vmatprep.subr.bf16.mxu0 0
      %3535 = vmatpush1.bf16.msra.mxu0 %v3469
      %3536 = vmatprep.subr.bf16.mxu0 0
      %3537 = vmatpush1.bf16.msra.mxu0 %v3526
      %3538 = vmatprep.subr.bf16.mxu0 0
      %3539 = vmatpush1.bf16.msra.mxu0 0
      %3540 = vmatprep.subr.bf16.mxu0 0
      %3541 = vmatpush1.bf16.msra.mxu0 0
      %3542 = vmatprep.subr.bf16.mxu0 0
      %3543 = vmatpush1.bf16.msra.mxu0 0
      %3544 = vmatprep.subr.bf16.mxu0 0
      %3545 = vmatpush1.bf16.msra.mxu0 0
      %3546 = vmatprep.subr.bf16.mxu0 0
      %3547 = vmatpush1.bf16.msra.mxu0 0
      %3548 = vmatprep.subr.bf16.mxu0 0
      %3549 = vmatpush1.bf16.msra.mxu0 0
      %3550 = vmatprep.subr.bf16.mxu0 0
      %3551 = vmatpush1.bf16.msra.mxu0 0
      %3552 = vmatprep.subr.bf16.mxu0 0
      %3553 = vmatpush1.bf16.msra.mxu0 0
      %3554 = vmatprep.subr.bf16.mxu0 0
      %3555 = vmatpush1.bf16.msra.mxu0 0
      %3556 = vmatprep.subr.bf16.mxu0 0
      %3557 = vmatpush1.bf16.msra.mxu0 0
      %3558 = vmatprep.subr.bf16.mxu0 0
      %3559 = vmatpush1.bf16.msra.mxu0 0
      %3560 = vmatprep.mubr.bf16.mxu0 0
      %3561 = vmatmul.mubr.bf16.gmra.mrb[0].mxu0 %v3477
      %v3562 = vpop.f32.mrb[0].mxu0
      %v3563 = vadd.f32 %v3446, %v3562
      %v3564 = vpop.f32.mrb[0].mxu0
      %v3565 = vpop.f32.mrb[0].mxu0
      %v3566 = vadd.f32 %v3446, %v3565
      %v3567 = vpop.f32.mrb[0].mxu0
      %3568 = vmatprep.mubr.bf16.mxu0 0
      %3569 = vmatmul.mubr.bf16.gmra.mrb[0].mxu0 %v3480
      %v3570 = vpop.f32.mrb[0].mxu0
      %v3571 = vadd.f32 %v3446, %v3570
      %v3572 = vpop.f32.mrb[0].mxu0
      %v3573 = vpop.f32.mrb[0].mxu0
      %v3574 = vadd.f32 %v3446, %v3573
      %v3575 = vpop.f32.mrb[0].mxu0
      %3576 = vmatprep.mubr.bf16.mxu0 0
      %3577 = vmatmul.mubr.bf16.gmra.mrb[0].mxu0 %v3483
      %v3578 = vpop.f32.mrb[0].mxu0
      %v3579 = vadd.f32 %v3446, %v3578
      %v3580 = vpop.f32.mrb[0].mxu0
      %v3581 = vpop.f32.mrb[0].mxu0
      %v3582 = vadd.f32 %v3446, %v3581
      %v3583 = vpop.f32.mrb[0].mxu0
      %3584 = vmatprep.mubr.bf16.mxu0 0
      %3585 = vmatmul.mubr.bf16.gmra.mrb[0].mxu0 %v3486
      %v3586 = vpop.f32.mrb[0].mxu0
      %v3587 = vadd.f32 %v3446, %v3586
      %v3588 = vpop.f32.mrb[0].mxu0
      %v3589 = vpop.f32.mrb[0].mxu0
      %v3590 = vadd.f32 %v3446, %v3589
      %v3591 = vpop.f32.mrb[0].mxu0
      %3592 = vmatprep.mubr.bf16.mxu0 0
      %3593 = vmatmul.mubr.bf16.gmra.mrb[0].mxu0 %v3489
      %v3594 = vpop.f32.mrb[0].mxu0
      %v3595 = vadd.f32 %v3446, %v3594
      %v3596 = vpop.f32.mrb[0].mxu0
      %v3597 = vpop.f32.mrb[0].mxu0
      %v3598 = vadd.f32 %v3446, %v3597
      %v3599 = vpop.f32.mrb[0].mxu0
      %3600 = vmatprep.mubr.bf16.mxu0 0
      %3601 = vmatmul.mubr.bf16.gmra.mrb[0].mxu0 %v3492
      %v3602 = vpop.f32.mrb[0].mxu0
      %v3603 = vadd.f32 %v3446, %v3602
      %v3604 = vpop.f32.mrb[0].mxu0
      %v3605 = vpop.f32.mrb[0].mxu0
      %v3606 = vadd.f32 %v3446, %v3605
      %v3607 = vpop.f32.mrb[0].mxu0
      %3608 = vmatprep.mubr.bf16.mxu0 0
      %3609 = vmatmul.mubr.bf16.gmra.mrb[0].mxu0 %v3495
      %v3610 = vpop.f32.mrb[0].mxu0
      %v3611 = vadd.f32 %v3446, %v3610
      %v3612 = vpop.f32.mrb[0].mxu0
      %v3613 = vpop.f32.mrb[0].mxu0
      %v3614 = vadd.f32 %v3446, %v3613
      %v3615 = vpop.f32.mrb[0].mxu0
      %3616 = vmatprep.mubr.bf16.mxu0 0
      %3617 = vmatmul.mubr.bf16.gmra.mrb[0].mxu0 %v3498
      %v3618 = vpop.f32.mrb[0].mxu0
      %v3619 = vadd.f32 %v3446, %v3618
      %v3620 = vpop.f32.mrb[0].mxu0
      %v3621 = vpop.f32.mrb[0].mxu0
      %v3622 = vadd.f32 %v3446, %v3621
      %v3623 = vpop.f32.mrb[0].mxu0
      %3624 = vmatprep.mubr.bf16.mxu0 0
      %3625 = vmatmul.mubr.bf16.gmra.mrb[0].mxu0 %v3501
      %v3626 = vpop.f32.mrb[0].mxu0
      %v3627 = vadd.f32 %v3446, %v3626
      %v3628 = vpop.f32.mrb[0].mxu0
      %v3629 = vpop.f32.mrb[0].mxu0
      %v3630 = vadd.f32 %v3446, %v3629
      %v3631 = vpop.f32.mrb[0].mxu0
      %3632 = vmatprep.mubr.bf16.mxu0 0
      %3633 = vmatmul.mubr.bf16.gmra.mrb[0].mxu0 %v3504
      %v3634 = vpop.f32.mrb[0].mxu0
      %v3635 = vadd.f32 %v3446, %v3634
      %v3636 = vpop.f32.mrb[0].mxu0
      %v3637 = vpop.f32.mrb[0].mxu0
      %v3638 = vadd.f32 %v3446, %v3637
      %v3639 = vpop.f32.mrb[0].mxu0
      %3640 = vmatprep.mubr.bf16.mxu0 0
      %3641 = vmatmul.mubr.bf16.gmra.mrb[0].mxu0 %v3507
      %v3642 = vpop.f32.mrb[0].mxu0
      %v3643 = vadd.f32 %v3446, %v3642
      %v3644 = vpop.f32.mrb[0].mxu0
      %v3645 = vpop.f32.mrb[0].mxu0
      %v3646 = vadd.f32 %v3446, %v3645
      %v3647 = vpop.f32.mrb[0].mxu0
      %3648 = vmatprep.mubr.bf16.mxu0 0
      %3649 = vmatmul.mubr.bf16.gmra.mrb[0].mxu0 %v3510
      %v3650 = vpop.f32.mrb[0].mxu0
      %v3651 = vadd.f32 %v3446, %v3650
      %v3652 = vpop.f32.mrb[0].mxu0
      %v3653 = vpop.f32.mrb[0].mxu0
      %v3654 = vadd.f32 %v3446, %v3653
      %v3655 = vpop.f32.mrb[0].mxu0
      %3656 = vmatprep.mubr.bf16.mxu0 0
      %3657 = vmatmul.mubr.bf16.gmra.mrb[0].mxu0 %v3513
      %v3658 = vpop.f32.mrb[0].mxu0
      %v3659 = vadd.f32 %v3446, %v3658
      %v3660 = vpop.f32.mrb[0].mxu0
      %v3661 = vpop.f32.mrb[0].mxu0
      %v3662 = vadd.f32 %v3446, %v3661
      %v3663 = vpop.f32.mrb[0].mxu0
      %3664 = vmatprep.mubr.bf16.mxu0 0
      %3665 = vmatmul.mubr.bf16.gmra.mrb[0].mxu0 %v3516
      %v3666 = vpop.f32.mrb[0].mxu0
      %v3667 = vadd.f32 %v3446, %v3666
      %v3668 = vpop.f32.mrb[0].mxu0
      %v3669 = vpop.f32.mrb[0].mxu0
      %v3670 = vadd.f32 %v3446, %v3669
      %v3671 = vpop.f32.mrb[0].mxu0
      %3672 = vmatprep.mubr.bf16.mxu0 0
      %3673 = vmatmul.mubr.bf16.gmra.mrb[0].mxu0 %v3519
      %v3674 = vpop.f32.mrb[0].mxu0
      %v3675 = vadd.f32 %v3446, %v3674
      %v3676 = vpop.f32.mrb[0].mxu0
      %v3677 = vpop.f32.mrb[0].mxu0
      %v3678 = vadd.f32 %v3446, %v3677
      %v3679 = vpop.f32.mrb[0].mxu0
      %3680 = vmatprep.mubr.bf16.mxu0 0
      %3681 = vmatmul.mubr.bf16.gmra.mrb[0].mxu0 %v3522
      %v3682 = vpop.f32.mrb[0].mxu0
      %v3683 = vadd.f32 %v3446, %v3682
      %v3684 = vpop.f32.mrb[0].mxu0
      %v3685 = vpop.f32.mrb[0].mxu0
      %v3686 = vadd.f32 %v3446, %v3685
      %v3687 = vpop.f32.mrb[0].mxu0
      %3688 = vdwg.mxu0
      %v3689 = vmax.f32 %v3563, 0.0
      %v3690 = vmax.f32 %v3566, 0.0
      %v3691 = vmax.f32 %v3571, 0.0
      %v3692 = vmax.f32 %v3574, 0.0
      %v3693 = vmax.f32 %v3579, 0.0
      %v3694 = vmax.f32 %v3582, 0.0
      %v3695 = vmax.f32 %v3587, 0.0
      %v3696 = vmax.f32 %v3590, 0.0
      %v3697 = vmax.f32 %v3595, 0.0
      %v3698 = vmax.f32 %v3598, 0.0
      %v3699 = vmax.f32 %v3603, 0.0
      %v3700 = vmax.f32 %v3606, 0.0
      %v3701 = vmax.f32 %v3611, 0.0
      %v3702 = vmax.f32 %v3614, 0.0
      %v3703 = vmax.f32 %v3619, 0.0
      %v3704 = vmax.f32 %v3622, 0.0
      %v3705 = vmax.f32 %v3627, 0.0
      %v3706 = vmax.f32 %v3630, 0.0
      %v3707 = vmax.f32 %v3635, 0.0
      %v3708 = vmax.f32 %v3638, 0.0
      %v3709 = vmax.f32 %v3643, 0.0
      %v3710 = vmax.f32 %v3646, 0.0
      %v3711 = vmax.f32 %v3651, 0.0
      %v3712 = vmax.f32 %v3654, 0.0
      %v3713 = vmax.f32 %v3659, 0.0
      %v3714 = vmax.f32 %v3662, 0.0
      %v3715 = vmax.f32 %v3667, 0.0
      %v3716 = vmax.f32 %v3670, 0.0
      %v3717 = vmax.f32 %v3675, 0.0
      %v3718 = vmax.f32 %v3678, 0.0
      %v3719 = vmax.f32 %v3683, 0.0
      %v3720 = vmax.f32 %v3686, 0.0
      %vm3721 = vcmp.ge.f32.partialorder %v3563, 0.0
      %vm3722 = vcmp.ge.f32.partialorder %v3566, 0.0
      %vm3723 = vcmp.ge.f32.partialorder %v3571, 0.0
      %vm3724 = vcmp.ge.f32.partialorder %v3574, 0.0
      %vm3725 = vcmp.ge.f32.partialorder %v3579, 0.0
      %vm3726 = vcmp.ge.f32.partialorder %v3582, 0.0
      %vm3727 = vcmp.ge.f32.partialorder %v3587, 0.0
      %vm3728 = vcmp.ge.f32.partialorder %v3590, 0.0
      %vm3729 = vcmp.ge.f32.partialorder %v3595, 0.0
      %vm3730 = vcmp.ge.f32.partialorder %v3598, 0.0
      %vm3731 = vcmp.ge.f32.partialorder %v3603, 0.0
      %vm3732 = vcmp.ge.f32.partialorder %v3606, 0.0
      %vm3733 = vcmp.ge.f32.partialorder %v3611, 0.0
      %vm3734 = vcmp.ge.f32.partialorder %v3614, 0.0
      %vm3735 = vcmp.ge.f32.partialorder %v3619, 0.0
      %vm3736 = vcmp.ge.f32.partialorder %v3622, 0.0
      %vm3737 = vcmp.ge.f32.partialorder %v3627, 0.0
      %vm3738 = vcmp.ge.f32.partialorder %v3630, 0.0
      %vm3739 = vcmp.ge.f32.partialorder %v3635, 0.0
      %vm3740 = vcmp.ge.f32.partialorder %v3638, 0.0
      %vm3741 = vcmp.ge.f32.partialorder %v3643, 0.0
      %vm3742 = vcmp.ge.f32.partialorder %v3646, 0.0
      %vm3743 = vcmp.ge.f32.partialorder %v3651, 0.0
      %vm3744 = vcmp.ge.f32.partialorder %v3654, 0.0
      %vm3745 = vcmp.ge.f32.partialorder %v3659, 0.0
      %vm3746 = vcmp.ge.f32.partialorder %v3662, 0.0
      %vm3747 = vcmp.ge.f32.partialorder %v3667, 0.0
      %vm3748 = vcmp.ge.f32.partialorder %v3670, 0.0
      %vm3749 = vcmp.ge.f32.partialorder %v3675, 0.0
      %vm3750 = vcmp.ge.f32.partialorder %v3678, 0.0
      %vm3751 = vcmp.ge.f32.partialorder %v3683, 0.0
      %vm3752 = vcmp.ge.f32.partialorder %v3686, 0.0
      %v3753 = vmul.f32 %v3563, 0.1
      %v3754 = vmul.f32 %v3566, 0.1
      %v3755 = vmul.f32 %v3571, 0.1
      %v3756 = vmul.f32 %v3574, 0.1
      %v3757 = vmul.f32 %v3579, 0.1
      %v3758 = vmul.f32 %v3582, 0.1
      %v3759 = vmul.f32 %v3587, 0.1
      %v3760 = vmul.f32 %v3590, 0.1
      %v3761 = vmul.f32 %v3595, 0.1
      %v3762 = vmul.f32 %v3598, 0.1
      %v3763 = vmul.f32 %v3603, 0.1
      %v3764 = vmul.f32 %v3606, 0.1
      %v3765 = vmul.f32 %v3611, 0.1
      %v3766 = vmul.f32 %v3614, 0.1
      %v3767 = vmul.f32 %v3619, 0.1
      %v3768 = vmul.f32 %v3622, 0.1
      %v3769 = vmul.f32 %v3627, 0.1
      %v3770 = vmul.f32 %v3630, 0.1
      %v3771 = vmul.f32 %v3635, 0.1
      %v3772 = vmul.f32 %v3638, 0.1
      %v3773 = vmul.f32 %v3643, 0.1
      %v3774 = vmul.f32 %v3646, 0.1
      %v3775 = vmul.f32 %v3651, 0.1
      %v3776 = vmul.f32 %v3654, 0.1
      %v3777 = vmul.f32 %v3659, 0.1
      %v3778 = vmul.f32 %v3662, 0.1
      %v3779 = vmul.f32 %v3667, 0.1
      %v3780 = vmul.f32 %v3670, 0.1
      %v3781 = vmul.f32 %v3675, 0.1
      %v3782 = vmul.f32 %v3678, 0.1
      %v3783 = vmul.f32 %v3683, 0.1
      %v3784 = vmul.f32 %v3686, 0.1
      %v3785 = vsel %vm3721, %v3563, %v3753
      %v3786 = vsel %vm3722, %v3566, %v3754
      %v3787 = vsel %vm3723, %v3571, %v3755
      %v3788 = vsel %vm3724, %v3574, %v3756
      %v3789 = vsel %vm3725, %v3579, %v3757
      %v3790 = vsel %vm3726, %v3582, %v3758
      %v3791 = vsel %vm3727, %v3587, %v3759
      %v3792 = vsel %vm3728, %v3590, %v3760
      %v3793 = vsel %vm3729, %v3595, %v3761
      %v3794 = vsel %vm3730, %v3598, %v3762
      %v3795 = vsel %vm3731, %v3603, %v3763
      %v3796 = vsel %vm3732, %v3606, %v3764
      %v3797 = vsel %vm3733, %v3611, %v3765
      %v3798 = vsel %vm3734, %v3614, %v3766
      %v3799 = vsel %vm3735, %v3619, %v3767
      %v3800 = vsel %vm3736, %v3622, %v3768
      %v3801 = vsel %vm3737, %v3627, %v3769
      %v3802 = vsel %vm3738, %v3630, %v3770
      %v3803 = vsel %vm3739, %v3635, %v3771
      %v3804 = vsel %vm3740, %v3638, %v3772
      %v3805 = vsel %vm3741, %v3643, %v3773
      %v3806 = vsel %vm3742, %v3646, %v3774
      %v3807 = vsel %vm3743, %v3651, %v3775
      %v3808 = vsel %vm3744, %v3654, %v3776
      %v3809 = vsel %vm3745, %v3659, %v3777
      %v3810 = vsel %vm3746, %v3662, %v3778
      %v3811 = vsel %vm3747, %v3667, %v3779
      %v3812 = vsel %vm3748, %v3670, %v3780
      %v3813 = vsel %vm3749, %v3675, %v3781
      %v3814 = vsel %vm3750, %v3678, %v3782
      %v3815 = vsel %vm3751, %v3683, %v3783
      %v3816 = vsel %vm3752, %v3686, %v3784
      %3849 = vrot.lane.b32.xlu0 %v3785, 120
      %v3850 = vpop.permute.xlu0 %3849
      %3851 = vrot.lane.b32.xlu0 %v3786, 120
      %v3852 = vpop.permute.xlu0 %3851
      %3853 = vrot.lane.b32.xlu0 %v3787, 120
      %v3854 = vpop.permute.xlu0 %3853
      %3855 = vrot.lane.b32.xlu0 %v3788, 120
      %v3856 = vpop.permute.xlu0 %3855
      %3857 = vrot.lane.b32.xlu0 %v3789, 120
      %v3858 = vpop.permute.xlu0 %3857
      %3859 = vrot.lane.b32.xlu0 %v3790, 120
      %v3860 = vpop.permute.xlu0 %3859
      %3861 = vrot.lane.b32.xlu0 %v3791, 120
      %v3862 = vpop.permute.xlu0 %3861
      %3863 = vrot.lane.b32.xlu0 %v3792, 120
      %v3864 = vpop.permute.xlu0 %3863
      %3865 = vrot.lane.b32.xlu0 %v3793, 120
      %v3866 = vpop.permute.xlu0 %3865
      %3867 = vrot.lane.b32.xlu0 %v3794, 120
      %v3868 = vpop.permute.xlu0 %3867
      %3869 = vrot.lane.b32.xlu0 %v3795, 120
      %v3870 = vpop.permute.xlu0 %3869
      %3871 = vrot.lane.b32.xlu0 %v3796, 120
      %v3872 = vpop.permute.xlu0 %3871
      %3873 = vrot.lane.b32.xlu0 %v3797, 120
      %v3874 = vpop.permute.xlu0 %3873
      %3875 = vrot.lane.b32.xlu0 %v3798, 120
      %v3876 = vpop.permute.xlu0 %3875
      %3877 = vrot.lane.b32.xlu0 %v3799, 120
      %v3878 = vpop.permute.xlu0 %3877
      %3879 = vrot.lane.b32.xlu0 %v3800, 120
      %v3880 = vpop.permute.xlu0 %3879
      %3881 = vrot.lane.b32.xlu0 %v3801, 120
      %v3882 = vpop.permute.xlu0 %3881
      %3883 = vrot.lane.b32.xlu0 %v3802, 120
      %v3884 = vpop.permute.xlu0 %3883
      %3885 = vrot.lane.b32.xlu0 %v3803, 120
      %v3886 = vpop.permute.xlu0 %3885
      %3887 = vrot.lane.b32.xlu0 %v3804, 120
      %v3888 = vpop.permute.xlu0 %3887
      %3889 = vrot.lane.b32.xlu0 %v3805, 120
      %v3890 = vpop.permute.xlu0 %3889
      %3891 = vrot.lane.b32.xlu0 %v3806, 120
      %v3892 = vpop.permute.xlu0 %3891
      %3893 = vrot.lane.b32.xlu0 %v3807, 120
      %v3894 = vpop.permute.xlu0 %3893
      %3895 = vrot.lane.b32.xlu0 %v3808, 120
      %v3896 = vpop.permute.xlu0 %3895
      %3897 = vrot.lane.b32.xlu0 %v3809, 120
      %v3898 = vpop.permute.xlu0 %3897
      %3899 = vrot.lane.b32.xlu0 %v3810, 120
      %v3900 = vpop.permute.xlu0 %3899
      %3901 = vrot.lane.b32.xlu0 %v3811, 120
      %v3902 = vpop.permute.xlu0 %3901
      %3903 = vrot.lane.b32.xlu0 %v3812, 120
      %v3904 = vpop.permute.xlu0 %3903
      %3905 = vrot.lane.b32.xlu0 %v3813, 120
      %v3906 = vpop.permute.xlu0 %3905
      %3907 = vrot.lane.b32.xlu0 %v3814, 120
      %v3908 = vpop.permute.xlu0 %3907
      %3909 = vrot.lane.b32.xlu0 %v3815, 120
      %v3910 = vpop.permute.xlu0 %3909
      %3911 = vrot.lane.b32.xlu0 %v3816, 120
      %v3912 = vpop.permute.xlu0 %3911
      %3945 = vst.msk [vmem:[%s2286 + $0x1] sm:$0xff] %vm2102, %v3850
      %3946 = vst.msk [vmem:[%s2286 + $0x9] sm:$0xff] %vm2102, %v3852
      %3947 = vst.msk [vmem:[%s2286 + $0x19] sm:$0xff] %vm2102, %v3854
      %3948 = vst.msk [vmem:[%s2286 + $0x21] sm:$0xff] %vm2102, %v3856
      %3949 = vst.msk [vmem:[%s2286 + $0x31] sm:$0xff] %vm2102, %v3858
      %3950 = vst.msk [vmem:[%s2286 + $0x39] sm:$0xff] %vm2102, %v3860
      %3951 = vst.msk [vmem:[%s2286 + $0x49] sm:$0xff] %vm2102, %v3862
      %3952 = vst.msk [vmem:[%s2286 + $0x51] sm:$0xff] %vm2102, %v3864
      %3953 = vst.msk [vmem:[%s2286 + $0x61] sm:$0xff] %vm2102, %v3866
      %3954 = vst.msk [vmem:[%s2286 + $0x69] sm:$0xff] %vm2102, %v3868
      %3955 = vst.msk [vmem:[%s2286 + $0x79] sm:$0xff] %vm2102, %v3870
      %3956 = vst.msk [vmem:[%s2286 + $0x81] sm:$0xff] %vm2102, %v3872
      %3957 = vst.msk [vmem:[%s2286 + $0x91] sm:$0xff] %vm2102, %v3874
      %3958 = vst.msk [vmem:[%s2286 + $0x99] sm:$0xff] %vm2102, %v3876
      %3959 = vst.msk [vmem:[%s2286 + $0xa9] sm:$0xff] %vm2102, %v3878
      %3960 = vst.msk [vmem:[%s2286 + $0xb1] sm:$0xff] %vm2102, %v3880
      %3961 = vst.msk [vmem:[%s2286 + $0xc1] sm:$0xff] %vm2102, %v3882
      %3962 = vst.msk [vmem:[%s2286 + $0xc9] sm:$0xff] %vm2102, %v3884
      %3963 = vst.msk [vmem:[%s2286 + $0xd9] sm:$0xff] %vm2102, %v3886
      %3964 = vst.msk [vmem:[%s2286 + $0xe1] sm:$0xff] %vm2102, %v3888
      %3965 = vst.msk [vmem:[%s2286 + $0xf1] sm:$0xff] %vm2102, %v3890
      %3966 = vst.msk [vmem:[%s2286 + $0xf9] sm:$0xff] %vm2102, %v3892
      %3967 = vst.msk [vmem:[%s2286 + $0x109] sm:$0xff] %vm2102, %v3894
      %3968 = vst.msk [vmem:[%s2286 + $0x111] sm:$0xff] %vm2102, %v3896
      %3969 = vst.msk [vmem:[%s2286 + $0x121] sm:$0xff] %vm2102, %v3898
      %3970 = vst.msk [vmem:[%s2286 + $0x129] sm:$0xff] %vm2102, %v3900
      %3971 = vst.msk [vmem:[%s2286 + $0x139] sm:$0xff] %vm2102, %v3902
      %3972 = vst.msk [vmem:[%s2286 + $0x141] sm:$0xff] %vm2102, %v3904
      %3973 = vst.msk [vmem:[%s2286 + $0x151] sm:$0xff] %vm2102, %v3906
      %3974 = vst.msk [vmem:[%s2286 + $0x159] sm:$0xff] %vm2102, %v3908
      %3975 = vst.msk [vmem:[%s2286 + $0x169] sm:$0xff] %vm2102, %v3910
      %3976 = vst.msk [vmem:[%s2286 + $0x171] sm:$0xff] %vm2102, %v3912
      %v3977 = vld [vmem:[#allocation3] sm:$0xff]
      %v3978 = vld [vmem:[#allocation3 + $0x8] sm:$0xff]
      %v3979 = vld [vmem:[#allocation3 + $0x18] sm:$0xff]
      %v3980 = vld [vmem:[#allocation3 + $0x20] sm:$0xff]
      %v3981 = vld [vmem:[#allocation3 + $0x30] sm:$0xff]
      %v3982 = vld [vmem:[#allocation3 + $0x38] sm:$0xff]
      %v3983 = vld [vmem:[#allocation3 + $0x48] sm:$0xff]
      %v3984 = vld [vmem:[#allocation3 + $0x50] sm:$0xff]
      %v3985 = vld [vmem:[#allocation3 + $0x60] sm:$0xff]
      %v3986 = vld [vmem:[#allocation3 + $0x68] sm:$0xff]
      %v3987 = vld [vmem:[#allocation3 + $0x78] sm:$0xff]
      %v3988 = vld [vmem:[#allocation3 + $0x80] sm:$0xff]
      %v3989 = vld [vmem:[#allocation3 + $0x90] sm:$0xff]
      %v3990 = vld [vmem:[#allocation3 + $0x98] sm:$0xff]
      %v3991 = vld [vmem:[#allocation3 + $0xa8] sm:$0xff]
      %v3992 = vld [vmem:[#allocation3 + $0xb0] sm:$0xff]
      %v3993 = vld [vmem:[#allocation3 + $0xc0] sm:$0xff]
      %v3994 = vld [vmem:[#allocation3 + $0xc8] sm:$0xff]
      %v3995 = vld [vmem:[#allocation3 + $0xd8] sm:$0xff]
      %v3996 = vld [vmem:[#allocation3 + $0xe0] sm:$0xff]
      %v3997 = vld [vmem:[#allocation3 + $0xf0] sm:$0xff]
      %v3998 = vld [vmem:[#allocation3 + $0xf8] sm:$0xff]
      %v3999 = vld [vmem:[#allocation3 + $0x108] sm:$0xff]
      %v4000 = vld [vmem:[#allocation3 + $0x110] sm:$0xff]
      %v4001 = vld [vmem:[#allocation3 + $0x120] sm:$0xff]
      %v4002 = vld [vmem:[#allocation3 + $0x128] sm:$0xff]
      %v4003 = vld [vmem:[#allocation3 + $0x138] sm:$0xff]
      %v4004 = vld [vmem:[#allocation3 + $0x140] sm:$0xff]
      %v4005 = vld [vmem:[#allocation3 + $0x150] sm:$0xff]
      %v4006 = vld [vmem:[#allocation3 + $0x158] sm:$0xff]
      %v4007 = vld [vmem:[#allocation3 + $0x168] sm:$0xff]
      %v4008 = vld [vmem:[#allocation3 + $0x170] sm:$0xff]
      %v4009 = vpack.c.bf16 %v3978, %v3977
      %v4010 = vpack.c.bf16 %v3980, %v3979
      %v4011 = vpack.c.bf16 %v3982, %v3981
      %v4012 = vpack.c.bf16 %v3984, %v3983
      %v4013 = vpack.c.bf16 %v3986, %v3985
      %v4014 = vpack.c.bf16 %v3988, %v3987
      %v4015 = vpack.c.bf16 %v3990, %v3989
      %v4016 = vpack.c.bf16 %v3992, %v3991
      %v4017 = vpack.c.bf16 %v3994, %v3993
      %v4018 = vpack.c.bf16 %v3996, %v3995
      %v4019 = vpack.c.bf16 %v3998, %v3997
      %v4020 = vpack.c.bf16 %v4000, %v3999
      %v4021 = vpack.c.bf16 %v4002, %v4001
      %v4022 = vpack.c.bf16 %v4004, %v4003
      %v4023 = vpack.c.bf16 %v4006, %v4005
      %v4024 = vpack.c.bf16 %v4008, %v4007
      %4025 = vst.msk [vmem:[#allocation5] sm:$0xff] %vm2102, %v4009
      %4026 = vst.msk [vmem:[#allocation5 + $0x8] sm:$0xff] %vm2102, %v4010
      %4027 = vst.msk [vmem:[#allocation5 + $0x10] sm:$0xff] %vm2102, %v4011
      %4028 = vst.msk [vmem:[#allocation5 + $0x18] sm:$0xff] %vm2102, %v4012
      %4029 = vst.msk [vmem:[#allocation5 + $0x20] sm:$0xff] %vm2102, %v4013
      %4030 = vst.msk [vmem:[#allocation5 + $0x28] sm:$0xff] %vm2102, %v4014
      %4031 = vst.msk [vmem:[#allocation5 + $0x30] sm:$0xff] %vm2102, %v4015
      %4032 = vst.msk [vmem:[#allocation5 + $0x38] sm:$0xff] %vm2102, %v4016
      %4033 = vst.msk [vmem:[#allocation5 + $0x40] sm:$0xff] %vm2102, %v4017
      %4034 = vst.msk [vmem:[#allocation5 + $0x48] sm:$0xff] %vm2102, %v4018
      %4035 = vst.msk [vmem:[#allocation5 + $0x50] sm:$0xff] %vm2102, %v4019
      %4036 = vst.msk [vmem:[#allocation5 + $0x58] sm:$0xff] %vm2102, %v4020
      %4037 = vst.msk [vmem:[#allocation5 + $0x60] sm:$0xff] %vm2102, %v4021
      %4038 = vst.msk [vmem:[#allocation5 + $0x68] sm:$0xff] %vm2102, %v4022
      %4039 = vst.msk [vmem:[#allocation5 + $0x70] sm:$0xff] %vm2102, %v4023
      %4040 = vst.msk [vmem:[#allocation5 + $0x78] sm:$0xff] %vm2102, %v4024
      %v4041 = vld [vmem:[#allocation3 + $0x1] sm:$0xff]
      %v4042 = vld [vmem:[#allocation3 + $0x9] sm:$0xff]
      %v4043 = vld [vmem:[#allocation3 + $0x19] sm:$0xff]
      %v4044 = vld [vmem:[#allocation3 + $0x21] sm:$0xff]
      %v4045 = vld [vmem:[#allocation3 + $0x31] sm:$0xff]
      %v4046 = vld [vmem:[#allocation3 + $0x39] sm:$0xff]
      %v4047 = vld [vmem:[#allocation3 + $0x49] sm:$0xff]
      %v4048 = vld [vmem:[#allocation3 + $0x51] sm:$0xff]
      %v4049 = vld [vmem:[#allocation3 + $0x61] sm:$0xff]
      %v4050 = vld [vmem:[#allocation3 + $0x69] sm:$0xff]
      %v4051 = vld [vmem:[#allocation3 + $0x79] sm:$0xff]
      %v4052 = vld [vmem:[#allocation3 + $0x81] sm:$0xff]
      %v4053 = vld [vmem:[#allocation3 + $0x91] sm:$0xff]
      %v4054 = vld [vmem:[#allocation3 + $0x99] sm:$0xff]
      %v4055 = vld [vmem:[#allocation3 + $0xa9] sm:$0xff]
      %v4056 = vld [vmem:[#allocation3 + $0xb1] sm:$0xff]
      %v4057 = vld [vmem:[#allocation3 + $0xc1] sm:$0xff]
      %v4058 = vld [vmem:[#allocation3 + $0xc9] sm:$0xff]
      %v4059 = vld [vmem:[#allocation3 + $0xd9] sm:$0xff]
      %v4060 = vld [vmem:[#allocation3 + $0xe1] sm:$0xff]
      %v4061 = vld [vmem:[#allocation3 + $0xf1] sm:$0xff]
      %v4062 = vld [vmem:[#allocation3 + $0xf9] sm:$0xff]
      %v4063 = vld [vmem:[#allocation3 + $0x109] sm:$0xff]
      %v4064 = vld [vmem:[#allocation3 + $0x111] sm:$0xff]
      %v4065 = vld [vmem:[#allocation3 + $0x121] sm:$0xff]
      %v4066 = vld [vmem:[#allocation3 + $0x129] sm:$0xff]
      %v4067 = vld [vmem:[#allocation3 + $0x139] sm:$0xff]
      %v4068 = vld [vmem:[#allocation3 + $0x141] sm:$0xff]
      %v4069 = vld [vmem:[#allocation3 + $0x151] sm:$0xff]
      %v4070 = vld [vmem:[#allocation3 + $0x159] sm:$0xff]
      %v4071 = vld [vmem:[#allocation3 + $0x169] sm:$0xff]
      %v4072 = vld [vmem:[#allocation3 + $0x171] sm:$0xff]
      %v4073 = vpack.c.bf16 %v4042, %v4041
      %v4074 = vpack.c.bf16 %v4044, %v4043
      %v4075 = vpack.c.bf16 %v4046, %v4045
      %v4076 = vpack.c.bf16 %v4048, %v4047
      %v4077 = vpack.c.bf16 %v4050, %v4049
      %v4078 = vpack.c.bf16 %v4052, %v4051
      %v4079 = vpack.c.bf16 %v4054, %v4053
      %v4080 = vpack.c.bf16 %v4056, %v4055
      %v4081 = vpack.c.bf16 %v4058, %v4057
      %v4082 = vpack.c.bf16 %v4060, %v4059
      %v4083 = vpack.c.bf16 %v4062, %v4061
      %v4084 = vpack.c.bf16 %v4064, %v4063
      %v4085 = vpack.c.bf16 %v4066, %v4065
      %v4086 = vpack.c.bf16 %v4068, %v4067
      %v4087 = vpack.c.bf16 %v4070, %v4069
      %v4088 = vpack.c.bf16 %v4072, %v4071
      %4105 = vrot.lane.b32.xlu0 %v4073, 8
      %v4106 = vpop.permute.xlu0 %4105
      %4107 = vrot.lane.b32.xlu0 %v4074, 8
      %v4108 = vpop.permute.xlu0 %4107
      %4109 = vrot.lane.b32.xlu0 %v4075, 8
      %v4110 = vpop.permute.xlu0 %4109
      %4111 = vrot.lane.b32.xlu0 %v4076, 8
      %v4112 = vpop.permute.xlu0 %4111
      %4113 = vrot.lane.b32.xlu0 %v4077, 8
      %v4114 = vpop.permute.xlu0 %4113
      %4115 = vrot.lane.b32.xlu0 %v4078, 8
      %v4116 = vpop.permute.xlu0 %4115
      %4117 = vrot.lane.b32.xlu0 %v4079, 8
      %v4118 = vpop.permute.xlu0 %4117
      %4119 = vrot.lane.b32.xlu0 %v4080, 8
      %v4120 = vpop.permute.xlu0 %4119
      %4121 = vrot.lane.b32.xlu0 %v4081, 8
      %v4122 = vpop.permute.xlu0 %4121
      %4123 = vrot.lane.b32.xlu0 %v4082, 8
      %v4124 = vpop.permute.xlu0 %4123
      %4125 = vrot.lane.b32.xlu0 %v4083, 8
      %v4126 = vpop.permute.xlu0 %4125
      %4127 = vrot.lane.b32.xlu0 %v4084, 8
      %v4128 = vpop.permute.xlu0 %4127
      %4129 = vrot.lane.b32.xlu0 %v4085, 8
      %v4130 = vpop.permute.xlu0 %4129
      %4131 = vrot.lane.b32.xlu0 %v4086, 8
      %v4132 = vpop.permute.xlu0 %4131
      %4133 = vrot.lane.b32.xlu0 %v4087, 8
      %v4134 = vpop.permute.xlu0 %4133
      %4135 = vrot.lane.b32.xlu0 %v4088, 8
      %v4136 = vpop.permute.xlu0 %4135
      %4153 = vst.msk [vmem:[#allocation5] sm:$0xff] %vm2495, %v4106
      %4154 = vst.msk [vmem:[#allocation5 + $0x8] sm:$0xff] %vm2495, %v4108
      %4155 = vst.msk [vmem:[#allocation5 + $0x10] sm:$0xff] %vm2495, %v4110
      %4156 = vst.msk [vmem:[#allocation5 + $0x18] sm:$0xff] %vm2495, %v4112
      %4157 = vst.msk [vmem:[#allocation5 + $0x20] sm:$0xff] %vm2495, %v4114
      %4158 = vst.msk [vmem:[#allocation5 + $0x28] sm:$0xff] %vm2495, %v4116
      %4159 = vst.msk [vmem:[#allocation5 + $0x30] sm:$0xff] %vm2495, %v4118
      %4160 = vst.msk [vmem:[#allocation5 + $0x38] sm:$0xff] %vm2495, %v4120
      %4161 = vst.msk [vmem:[#allocation5 + $0x40] sm:$0xff] %vm2495, %v4122
      %4162 = vst.msk [vmem:[#allocation5 + $0x48] sm:$0xff] %vm2495, %v4124
      %4163 = vst.msk [vmem:[#allocation5 + $0x50] sm:$0xff] %vm2495, %v4126
      %4164 = vst.msk [vmem:[#allocation5 + $0x58] sm:$0xff] %vm2495, %v4128
      %4165 = vst.msk [vmem:[#allocation5 + $0x60] sm:$0xff] %vm2495, %v4130
      %4166 = vst.msk [vmem:[#allocation5 + $0x68] sm:$0xff] %vm2495, %v4132
      %4167 = vst.msk [vmem:[#allocation5 + $0x70] sm:$0xff] %vm2495, %v4134
      %4168 = vst.msk [vmem:[#allocation5 + $0x78] sm:$0xff] %vm2495, %v4136
      %v4169 = vld [vmem:[#allocation3 + $0x2] sm:$0xff]
      %v4170 = vld [vmem:[#allocation3 + $0xa] sm:$0xff]
      %v4171 = vld [vmem:[#allocation3 + $0x1a] sm:$0xff]
      %v4172 = vld [vmem:[#allocation3 + $0x22] sm:$0xff]
      %v4173 = vld [vmem:[#allocation3 + $0x32] sm:$0xff]
      %v4174 = vld [vmem:[#allocation3 + $0x3a] sm:$0xff]
      %v4175 = vld [vmem:[#allocation3 + $0x4a] sm:$0xff]
      %v4176 = vld [vmem:[#allocation3 + $0x52] sm:$0xff]
      %v4177 = vld [vmem:[#allocation3 + $0x62] sm:$0xff]
      %v4178 = vld [vmem:[#allocation3 + $0x6a] sm:$0xff]
      %v4179 = vld [vmem:[#allocation3 + $0x7a] sm:$0xff]
      %v4180 = vld [vmem:[#allocation3 + $0x82] sm:$0xff]
      %v4181 = vld [vmem:[#allocation3 + $0x92] sm:$0xff]
      %v4182 = vld [vmem:[#allocation3 + $0x9a] sm:$0xff]
      %v4183 = vld [vmem:[#allocation3 + $0xaa] sm:$0xff]
      %v4184 = vld [vmem:[#allocation3 + $0xb2] sm:$0xff]
      %v4185 = vld [vmem:[#allocation3 + $0xc2] sm:$0xff]
      %v4186 = vld [vmem:[#allocation3 + $0xca] sm:$0xff]
      %v4187 = vld [vmem:[#allocation3 + $0xda] sm:$0xff]
      %v4188 = vld [vmem:[#allocation3 + $0xe2] sm:$0xff]
      %v4189 = vld [vmem:[#allocation3 + $0xf2] sm:$0xff]
      %v4190 = vld [vmem:[#allocation3 + $0xfa] sm:$0xff]
      %v4191 = vld [vmem:[#allocation3 + $0x10a] sm:$0xff]
      %v4192 = vld [vmem:[#allocation3 + $0x112] sm:$0xff]
      %v4193 = vld [vmem:[#allocation3 + $0x122] sm:$0xff]
      %v4194 = vld [vmem:[#allocation3 + $0x12a] sm:$0xff]
      %v4195 = vld [vmem:[#allocation3 + $0x13a] sm:$0xff]
      %v4196 = vld [vmem:[#allocation3 + $0x142] sm:$0xff]
      %v4197 = vld [vmem:[#allocation3 + $0x152] sm:$0xff]
      %v4198 = vld [vmem:[#allocation3 + $0x15a] sm:$0xff]
      %v4199 = vld [vmem:[#allocation3 + $0x16a] sm:$0xff]
      %v4200 = vld [vmem:[#allocation3 + $0x172] sm:$0xff]
      %v4201 = vpack.c.bf16 %v4170, %v4169
      %v4202 = vpack.c.bf16 %v4172, %v4171
      %v4203 = vpack.c.bf16 %v4174, %v4173
      %v4204 = vpack.c.bf16 %v4176, %v4175
      %v4205 = vpack.c.bf16 %v4178, %v4177
      %v4206 = vpack.c.bf16 %v4180, %v4179
      %v4207 = vpack.c.bf16 %v4182, %v4181
      %v4208 = vpack.c.bf16 %v4184, %v4183
      %v4209 = vpack.c.bf16 %v4186, %v4185
      %v4210 = vpack.c.bf16 %v4188, %v4187
      %v4211 = vpack.c.bf16 %v4190, %v4189
      %v4212 = vpack.c.bf16 %v4192, %v4191
      %v4213 = vpack.c.bf16 %v4194, %v4193
      %v4214 = vpack.c.bf16 %v4196, %v4195
      %v4215 = vpack.c.bf16 %v4198, %v4197
      %v4216 = vpack.c.bf16 %v4200, %v4199
      %4233 = vrot.lane.b32.xlu0 %v4201, 16
      %v4234 = vpop.permute.xlu0 %4233
      %4235 = vrot.lane.b32.xlu0 %v4202, 16
      %v4236 = vpop.permute.xlu0 %4235
      %4237 = vrot.lane.b32.xlu0 %v4203, 16
      %v4238 = vpop.permute.xlu0 %4237
      %4239 = vrot.lane.b32.xlu0 %v4204, 16
      %v4240 = vpop.permute.xlu0 %4239
      %4241 = vrot.lane.b32.xlu0 %v4205, 16
      %v4242 = vpop.permute.xlu0 %4241
      %4243 = vrot.lane.b32.xlu0 %v4206, 16
      %v4244 = vpop.permute.xlu0 %4243
      %4245 = vrot.lane.b32.xlu0 %v4207, 16
      %v4246 = vpop.permute.xlu0 %4245
      %4247 = vrot.lane.b32.xlu0 %v4208, 16
      %v4248 = vpop.permute.xlu0 %4247
      %4249 = vrot.lane.b32.xlu0 %v4209, 16
      %v4250 = vpop.permute.xlu0 %4249
      %4251 = vrot.lane.b32.xlu0 %v4210, 16
      %v4252 = vpop.permute.xlu0 %4251
      %4253 = vrot.lane.b32.xlu0 %v4211, 16
      %v4254 = vpop.permute.xlu0 %4253
      %4255 = vrot.lane.b32.xlu0 %v4212, 16
      %v4256 = vpop.permute.xlu0 %4255
      %4257 = vrot.lane.b32.xlu0 %v4213, 16
      %v4258 = vpop.permute.xlu0 %4257
      %4259 = vrot.lane.b32.xlu0 %v4214, 16
      %v4260 = vpop.permute.xlu0 %4259
      %4261 = vrot.lane.b32.xlu0 %v4215, 16
      %v4262 = vpop.permute.xlu0 %4261
      %4263 = vrot.lane.b32.xlu0 %v4216, 16
      %v4264 = vpop.permute.xlu0 %4263
      %4281 = vst.msk [vmem:[#allocation5] sm:$0xff] %vm2624, %v4234
      %4282 = vst.msk [vmem:[#allocation5 + $0x8] sm:$0xff] %vm2624, %v4236
      %4283 = vst.msk [vmem:[#allocation5 + $0x10] sm:$0xff] %vm2624, %v4238
      %4284 = vst.msk [vmem:[#allocation5 + $0x18] sm:$0xff] %vm2624, %v4240
      %4285 = vst.msk [vmem:[#allocation5 + $0x20] sm:$0xff] %vm2624, %v4242
      %4286 = vst.msk [vmem:[#allocation5 + $0x28] sm:$0xff] %vm2624, %v4244
      %4287 = vst.msk [vmem:[#allocation5 + $0x30] sm:$0xff] %vm2624, %v4246
      %4288 = vst.msk [vmem:[#allocation5 + $0x38] sm:$0xff] %vm2624, %v4248
      %4289 = vst.msk [vmem:[#allocation5 + $0x40] sm:$0xff] %vm2624, %v4250
      %4290 = vst.msk [vmem:[#allocation5 + $0x48] sm:$0xff] %vm2624, %v4252
      %4291 = vst.msk [vmem:[#allocation5 + $0x50] sm:$0xff] %vm2624, %v4254
      %4292 = vst.msk [vmem:[#allocation5 + $0x58] sm:$0xff] %vm2624, %v4256
      %4293 = vst.msk [vmem:[#allocation5 + $0x60] sm:$0xff] %vm2624, %v4258
      %4294 = vst.msk [vmem:[#allocation5 + $0x68] sm:$0xff] %vm2624, %v4260
      %4295 = vst.msk [vmem:[#allocation5 + $0x70] sm:$0xff] %vm2624, %v4262
      %4296 = vst.msk [vmem:[#allocation5 + $0x78] sm:$0xff] %vm2624, %v4264
      %v4297 = vld [vmem:[%s2286] sm:$0xff]
      %v4298 = vld [vmem:[%s2286 + $0x8] sm:$0xff]
      %v4299 = vld [vmem:[%s2286 + $0x18] sm:$0xff]
      %v4300 = vld [vmem:[%s2286 + $0x20] sm:$0xff]
      %v4301 = vld [vmem:[%s2286 + $0x30] sm:$0xff]
      %v4302 = vld [vmem:[%s2286 + $0x38] sm:$0xff]
      %v4303 = vld [vmem:[%s2286 + $0x48] sm:$0xff]
      %v4304 = vld [vmem:[%s2286 + $0x50] sm:$0xff]
      %v4305 = vld [vmem:[%s2286 + $0x60] sm:$0xff]
      %v4306 = vld [vmem:[%s2286 + $0x68] sm:$0xff]
      %v4307 = vld [vmem:[%s2286 + $0x78] sm:$0xff]
      %v4308 = vld [vmem:[%s2286 + $0x80] sm:$0xff]
      %v4309 = vld [vmem:[%s2286 + $0x90] sm:$0xff]
      %v4310 = vld [vmem:[%s2286 + $0x98] sm:$0xff]
      %v4311 = vld [vmem:[%s2286 + $0xa8] sm:$0xff]
      %v4312 = vld [vmem:[%s2286 + $0xb0] sm:$0xff]
      %v4313 = vld [vmem:[%s2286 + $0xc0] sm:$0xff]
      %v4314 = vld [vmem:[%s2286 + $0xc8] sm:$0xff]
      %v4315 = vld [vmem:[%s2286 + $0xd8] sm:$0xff]
      %v4316 = vld [vmem:[%s2286 + $0xe0] sm:$0xff]
      %v4317 = vld [vmem:[%s2286 + $0xf0] sm:$0xff]
      %v4318 = vld [vmem:[%s2286 + $0xf8] sm:$0xff]
      %v4319 = vld [vmem:[%s2286 + $0x108] sm:$0xff]
      %v4320 = vld [vmem:[%s2286 + $0x110] sm:$0xff]
      %v4321 = vld [vmem:[%s2286 + $0x120] sm:$0xff]
      %v4322 = vld [vmem:[%s2286 + $0x128] sm:$0xff]
      %v4323 = vld [vmem:[%s2286 + $0x138] sm:$0xff]
      %v4324 = vld [vmem:[%s2286 + $0x140] sm:$0xff]
      %v4325 = vld [vmem:[%s2286 + $0x150] sm:$0xff]
      %v4326 = vld [vmem:[%s2286 + $0x158] sm:$0xff]
      %v4327 = vld [vmem:[%s2286 + $0x168] sm:$0xff]
      %v4328 = vld [vmem:[%s2286 + $0x170] sm:$0xff]
      %v4329 = vpack.c.bf16 %v4298, %v4297
      %v4330 = vpack.c.bf16 %v4300, %v4299
      %v4331 = vpack.c.bf16 %v4302, %v4301
      %v4332 = vpack.c.bf16 %v4304, %v4303
      %v4333 = vpack.c.bf16 %v4306, %v4305
      %v4334 = vpack.c.bf16 %v4308, %v4307
      %v4335 = vpack.c.bf16 %v4310, %v4309
      %v4336 = vpack.c.bf16 %v4312, %v4311
      %v4337 = vpack.c.bf16 %v4314, %v4313
      %v4338 = vpack.c.bf16 %v4316, %v4315
      %v4339 = vpack.c.bf16 %v4318, %v4317
      %v4340 = vpack.c.bf16 %v4320, %v4319
      %v4341 = vpack.c.bf16 %v4322, %v4321
      %v4342 = vpack.c.bf16 %v4324, %v4323
      %v4343 = vpack.c.bf16 %v4326, %v4325
      %v4344 = vpack.c.bf16 %v4328, %v4327
      %4361 = vrot.lane.b32.xlu0 %v4329, 24
      %v4362 = vpop.permute.xlu0 %4361
      %4363 = vrot.lane.b32.xlu0 %v4330, 24
      %v4364 = vpop.permute.xlu0 %4363
      %4365 = vrot.lane.b32.xlu0 %v4331, 24
      %v4366 = vpop.permute.xlu0 %4365
      %4367 = vrot.lane.b32.xlu0 %v4332, 24
      %v4368 = vpop.permute.xlu0 %4367
      %4369 = vrot.lane.b32.xlu0 %v4333, 24
      %v4370 = vpop.permute.xlu0 %4369
      %4371 = vrot.lane.b32.xlu0 %v4334, 24
      %v4372 = vpop.permute.xlu0 %4371
      %4373 = vrot.lane.b32.xlu0 %v4335, 24
      %v4374 = vpop.permute.xlu0 %4373
      %4375 = vrot.lane.b32.xlu0 %v4336, 24
      %v4376 = vpop.permute.xlu0 %4375
      %4377 = vrot.lane.b32.xlu0 %v4337, 24
      %v4378 = vpop.permute.xlu0 %4377
      %4379 = vrot.lane.b32.xlu0 %v4338, 24
      %v4380 = vpop.permute.xlu0 %4379
      %4381 = vrot.lane.b32.xlu0 %v4339, 24
      %v4382 = vpop.permute.xlu0 %4381
      %4383 = vrot.lane.b32.xlu0 %v4340, 24
      %v4384 = vpop.permute.xlu0 %4383
      %4385 = vrot.lane.b32.xlu0 %v4341, 24
      %v4386 = vpop.permute.xlu0 %4385
      %4387 = vrot.lane.b32.xlu0 %v4342, 24
      %v4388 = vpop.permute.xlu0 %4387
      %4389 = vrot.lane.b32.xlu0 %v4343, 24
      %v4390 = vpop.permute.xlu0 %4389
      %4391 = vrot.lane.b32.xlu0 %v4344, 24
      %v4392 = vpop.permute.xlu0 %4391
      %4409 = vst.msk [vmem:[#allocation5] sm:$0xff] %vm2753, %v4362
      %4410 = vst.msk [vmem:[#allocation5 + $0x8] sm:$0xff] %vm2753, %v4364
      %4411 = vst.msk [vmem:[#allocation5 + $0x10] sm:$0xff] %vm2753, %v4366
      %4412 = vst.msk [vmem:[#allocation5 + $0x18] sm:$0xff] %vm2753, %v4368
      %4413 = vst.msk [vmem:[#allocation5 + $0x20] sm:$0xff] %vm2753, %v4370
      %4414 = vst.msk [vmem:[#allocation5 + $0x28] sm:$0xff] %vm2753, %v4372
      %4415 = vst.msk [vmem:[#allocation5 + $0x30] sm:$0xff] %vm2753, %v4374
      %4416 = vst.msk [vmem:[#allocation5 + $0x38] sm:$0xff] %vm2753, %v4376
      %4417 = vst.msk [vmem:[#allocation5 + $0x40] sm:$0xff] %vm2753, %v4378
      %4418 = vst.msk [vmem:[#allocation5 + $0x48] sm:$0xff] %vm2753, %v4380
      %4419 = vst.msk [vmem:[#allocation5 + $0x50] sm:$0xff] %vm2753, %v4382
      %4420 = vst.msk [vmem:[#allocation5 + $0x58] sm:$0xff] %vm2753, %v4384
      %4421 = vst.msk [vmem:[#allocation5 + $0x60] sm:$0xff] %vm2753, %v4386
      %4422 = vst.msk [vmem:[#allocation5 + $0x68] sm:$0xff] %vm2753, %v4388
      %4423 = vst.msk [vmem:[#allocation5 + $0x70] sm:$0xff] %vm2753, %v4390
      %4424 = vst.msk [vmem:[#allocation5 + $0x78] sm:$0xff] %vm2753, %v4392
      %v4425 = vld [vmem:[%s2286 + $0x1] sm:$0xff]
      %v4426 = vld [vmem:[%s2286 + $0x9] sm:$0xff]
      %v4427 = vld [vmem:[%s2286 + $0x19] sm:$0xff]
      %v4428 = vld [vmem:[%s2286 + $0x21] sm:$0xff]
      %v4429 = vld [vmem:[%s2286 + $0x31] sm:$0xff]
      %v4430 = vld [vmem:[%s2286 + $0x39] sm:$0xff]
      %v4431 = vld [vmem:[%s2286 + $0x49] sm:$0xff]
      %v4432 = vld [vmem:[%s2286 + $0x51] sm:$0xff]
      %v4433 = vld [vmem:[%s2286 + $0x61] sm:$0xff]
      %v4434 = vld [vmem:[%s2286 + $0x69] sm:$0xff]
      %v4435 = vld [vmem:[%s2286 + $0x79] sm:$0xff]
      %v4436 = vld [vmem:[%s2286 + $0x81] sm:$0xff]
      %v4437 = vld [vmem:[%s2286 + $0x91] sm:$0xff]
      %v4438 = vld [vmem:[%s2286 + $0x99] sm:$0xff]
      %v4439 = vld [vmem:[%s2286 + $0xa9] sm:$0xff]
      %v4440 = vld [vmem:[%s2286 + $0xb1] sm:$0xff]
      %v4441 = vld [vmem:[%s2286 + $0xc1] sm:$0xff]
      %v4442 = vld [vmem:[%s2286 + $0xc9] sm:$0xff]
      %v4443 = vld [vmem:[%s2286 + $0xd9] sm:$0xff]
      %v4444 = vld [vmem:[%s2286 + $0xe1] sm:$0xff]
      %v4445 = vld [vmem:[%s2286 + $0xf1] sm:$0xff]
      %v4446 = vld [vmem:[%s2286 + $0xf9] sm:$0xff]
      %v4447 = vld [vmem:[%s2286 + $0x109] sm:$0xff]
      %v4448 = vld [vmem:[%s2286 + $0x111] sm:$0xff]
      %v4449 = vld [vmem:[%s2286 + $0x121] sm:$0xff]
      %v4450 = vld [vmem:[%s2286 + $0x129] sm:$0xff]
      %v4451 = vld [vmem:[%s2286 + $0x139] sm:$0xff]
      %v4452 = vld [vmem:[%s2286 + $0x141] sm:$0xff]
      %v4453 = vld [vmem:[%s2286 + $0x151] sm:$0xff]
      %v4454 = vld [vmem:[%s2286 + $0x159] sm:$0xff]
      %v4455 = vld [vmem:[%s2286 + $0x169] sm:$0xff]
      %v4456 = vld [vmem:[%s2286 + $0x171] sm:$0xff]
      %v4457 = vpack.c.bf16 %v4426, %v4425
      %v4458 = vpack.c.bf16 %v4428, %v4427
      %v4459 = vpack.c.bf16 %v4430, %v4429
      %v4460 = vpack.c.bf16 %v4432, %v4431
      %v4461 = vpack.c.bf16 %v4434, %v4433
      %v4462 = vpack.c.bf16 %v4436, %v4435
      %v4463 = vpack.c.bf16 %v4438, %v4437
      %v4464 = vpack.c.bf16 %v4440, %v4439
      %v4465 = vpack.c.bf16 %v4442, %v4441
      %v4466 = vpack.c.bf16 %v4444, %v4443
      %v4467 = vpack.c.bf16 %v4446, %v4445
      %v4468 = vpack.c.bf16 %v4448, %v4447
      %v4469 = vpack.c.bf16 %v4450, %v4449
      %v4470 = vpack.c.bf16 %v4452, %v4451
      %v4471 = vpack.c.bf16 %v4454, %v4453
      %v4472 = vpack.c.bf16 %v4456, %v4455
      %4489 = vrot.lane.b32.xlu0 %v4457, 32
      %v4490 = vpop.permute.xlu0 %4489
      %4491 = vrot.lane.b32.xlu0 %v4458, 32
      %v4492 = vpop.permute.xlu0 %4491
      %4493 = vrot.lane.b32.xlu0 %v4459, 32
      %v4494 = vpop.permute.xlu0 %4493
      %4495 = vrot.lane.b32.xlu0 %v4460, 32
      %v4496 = vpop.permute.xlu0 %4495
      %4497 = vrot.lane.b32.xlu0 %v4461, 32
      %v4498 = vpop.permute.xlu0 %4497
      %4499 = vrot.lane.b32.xlu0 %v4462, 32
      %v4500 = vpop.permute.xlu0 %4499
      %4501 = vrot.lane.b32.xlu0 %v4463, 32
      %v4502 = vpop.permute.xlu0 %4501
      %4503 = vrot.lane.b32.xlu0 %v4464, 32
      %v4504 = vpop.permute.xlu0 %4503
      %4505 = vrot.lane.b32.xlu0 %v4465, 32
      %v4506 = vpop.permute.xlu0 %4505
      %4507 = vrot.lane.b32.xlu0 %v4466, 32
      %v4508 = vpop.permute.xlu0 %4507
      %4509 = vrot.lane.b32.xlu0 %v4467, 32
      %v4510 = vpop.permute.xlu0 %4509
      %4511 = vrot.lane.b32.xlu0 %v4468, 32
      %v4512 = vpop.permute.xlu0 %4511
      %4513 = vrot.lane.b32.xlu0 %v4469, 32
      %v4514 = vpop.permute.xlu0 %4513
      %4515 = vrot.lane.b32.xlu0 %v4470, 32
      %v4516 = vpop.permute.xlu0 %4515
      %4517 = vrot.lane.b32.xlu0 %v4471, 32
      %v4518 = vpop.permute.xlu0 %4517
      %4519 = vrot.lane.b32.xlu0 %v4472, 32
      %v4520 = vpop.permute.xlu0 %4519
      %4537 = vst.msk [vmem:[#allocation5] sm:$0xff] %vm2882, %v4490
      %4538 = vst.msk [vmem:[#allocation5 + $0x8] sm:$0xff] %vm2882, %v4492
      %4539 = vst.msk [vmem:[#allocation5 + $0x10] sm:$0xff] %vm2882, %v4494
      %4540 = vst.msk [vmem:[#allocation5 + $0x18] sm:$0xff] %vm2882, %v4496
      %4541 = vst.msk [vmem:[#allocation5 + $0x20] sm:$0xff] %vm2882, %v4498
      %4542 = vst.msk [vmem:[#allocation5 + $0x28] sm:$0xff] %vm2882, %v4500
      %4543 = vst.msk [vmem:[#allocation5 + $0x30] sm:$0xff] %vm2882, %v4502
      %4544 = vst.msk [vmem:[#allocation5 + $0x38] sm:$0xff] %vm2882, %v4504
      %4545 = vst.msk [vmem:[#allocation5 + $0x40] sm:$0xff] %vm2882, %v4506
      %4546 = vst.msk [vmem:[#allocation5 + $0x48] sm:$0xff] %vm2882, %v4508
      %4547 = vst.msk [vmem:[#allocation5 + $0x50] sm:$0xff] %vm2882, %v4510
      %4548 = vst.msk [vmem:[#allocation5 + $0x58] sm:$0xff] %vm2882, %v4512
      %4549 = vst.msk [vmem:[#allocation5 + $0x60] sm:$0xff] %vm2882, %v4514
      %4550 = vst.msk [vmem:[#allocation5 + $0x68] sm:$0xff] %vm2882, %v4516
      %4551 = vst.msk [vmem:[#allocation5 + $0x70] sm:$0xff] %vm2882, %v4518
      %4552 = vst.msk [vmem:[#allocation5 + $0x78] sm:$0xff] %vm2882, %v4520
      %v4553 = vld [vmem:[%s2286 + $0x2] sm:$0xff]
      %v4554 = vld [vmem:[%s2286 + $0xa] sm:$0xff]
      %v4555 = vld [vmem:[%s2286 + $0x1a] sm:$0xff]
      %v4556 = vld [vmem:[%s2286 + $0x22] sm:$0xff]
      %v4557 = vld [vmem:[%s2286 + $0x32] sm:$0xff]
      %v4558 = vld [vmem:[%s2286 + $0x3a] sm:$0xff]
      %v4559 = vld [vmem:[%s2286 + $0x4a] sm:$0xff]
      %v4560 = vld [vmem:[%s2286 + $0x52] sm:$0xff]
      %v4561 = vld [vmem:[%s2286 + $0x62] sm:$0xff]
      %v4562 = vld [vmem:[%s2286 + $0x6a] sm:$0xff]
      %v4563 = vld [vmem:[%s2286 + $0x7a] sm:$0xff]
      %v4564 = vld [vmem:[%s2286 + $0x82] sm:$0xff]
      %v4565 = vld [vmem:[%s2286 + $0x92] sm:$0xff]
      %v4566 = vld [vmem:[%s2286 + $0x9a] sm:$0xff]
      %v4567 = vld [vmem:[%s2286 + $0xaa] sm:$0xff]
      %v4568 = vld [vmem:[%s2286 + $0xb2] sm:$0xff]
      %v4569 = vld [vmem:[%s2286 + $0xc2] sm:$0xff]
      %v4570 = vld [vmem:[%s2286 + $0xca] sm:$0xff]
      %v4571 = vld [vmem:[%s2286 + $0xda] sm:$0xff]
      %v4572 = vld [vmem:[%s2286 + $0xe2] sm:$0xff]
      %v4573 = vld [vmem:[%s2286 + $0xf2] sm:$0xff]
      %v4574 = vld [vmem:[%s2286 + $0xfa] sm:$0xff]
      %v4575 = vld [vmem:[%s2286 + $0x10a] sm:$0xff]
      %v4576 = vld [vmem:[%s2286 + $0x112] sm:$0xff]
      %v4577 = vld [vmem:[%s2286 + $0x122] sm:$0xff]
      %v4578 = vld [vmem:[%s2286 + $0x12a] sm:$0xff]
      %v4579 = vld [vmem:[%s2286 + $0x13a] sm:$0xff]
      %v4580 = vld [vmem:[%s2286 + $0x142] sm:$0xff]
      %v4581 = vld [vmem:[%s2286 + $0x152] sm:$0xff]
      %v4582 = vld [vmem:[%s2286 + $0x15a] sm:$0xff]
      %v4583 = vld [vmem:[%s2286 + $0x16a] sm:$0xff]
      %v4584 = vld [vmem:[%s2286 + $0x172] sm:$0xff]
      %v4585 = vpack.c.bf16 %v4554, %v4553
      %v4586 = vpack.c.bf16 %v4556, %v4555
      %v4587 = vpack.c.bf16 %v4558, %v4557
      %v4588 = vpack.c.bf16 %v4560, %v4559
      %v4589 = vpack.c.bf16 %v4562, %v4561
      %v4590 = vpack.c.bf16 %v4564, %v4563
      %v4591 = vpack.c.bf16 %v4566, %v4565
      %v4592 = vpack.c.bf16 %v4568, %v4567
      %v4593 = vpack.c.bf16 %v4570, %v4569
      %v4594 = vpack.c.bf16 %v4572, %v4571
      %v4595 = vpack.c.bf16 %v4574, %v4573
      %v4596 = vpack.c.bf16 %v4576, %v4575
      %v4597 = vpack.c.bf16 %v4578, %v4577
      %v4598 = vpack.c.bf16 %v4580, %v4579
      %v4599 = vpack.c.bf16 %v4582, %v4581
      %v4600 = vpack.c.bf16 %v4584, %v4583
      %4617 = vrot.lane.b32.xlu0 %v4585, 40
      %v4618 = vpop.permute.xlu0 %4617
      %4619 = vrot.lane.b32.xlu0 %v4586, 40
      %v4620 = vpop.permute.xlu0 %4619
      %4621 = vrot.lane.b32.xlu0 %v4587, 40
      %v4622 = vpop.permute.xlu0 %4621
      %4623 = vrot.lane.b32.xlu0 %v4588, 40
      %v4624 = vpop.permute.xlu0 %4623
      %4625 = vrot.lane.b32.xlu0 %v4589, 40
      %v4626 = vpop.permute.xlu0 %4625
      %4627 = vrot.lane.b32.xlu0 %v4590, 40
      %v4628 = vpop.permute.xlu0 %4627
      %4629 = vrot.lane.b32.xlu0 %v4591, 40
      %v4630 = vpop.permute.xlu0 %4629
      %4631 = vrot.lane.b32.xlu0 %v4592, 40
      %v4632 = vpop.permute.xlu0 %4631
      %4633 = vrot.lane.b32.xlu0 %v4593, 40
      %v4634 = vpop.permute.xlu0 %4633
      %4635 = vrot.lane.b32.xlu0 %v4594, 40
      %v4636 = vpop.permute.xlu0 %4635
      %4637 = vrot.lane.b32.xlu0 %v4595, 40
      %v4638 = vpop.permute.xlu0 %4637
      %4639 = vrot.lane.b32.xlu0 %v4596, 40
      %v4640 = vpop.permute.xlu0 %4639
      %4641 = vrot.lane.b32.xlu0 %v4597, 40
      %v4642 = vpop.permute.xlu0 %4641
      %4643 = vrot.lane.b32.xlu0 %v4598, 40
      %v4644 = vpop.permute.xlu0 %4643
      %4645 = vrot.lane.b32.xlu0 %v4599, 40
      %v4646 = vpop.permute.xlu0 %4645
      %4647 = vrot.lane.b32.xlu0 %v4600, 40
      %v4648 = vpop.permute.xlu0 %4647
      %4665 = vst.msk [vmem:[#allocation5] sm:$0xff] %vm3011, %v4618
      %4666 = vst.msk [vmem:[#allocation5 + $0x8] sm:$0xff] %vm3011, %v4620
      %4667 = vst.msk [vmem:[#allocation5 + $0x10] sm:$0xff] %vm3011, %v4622
      %4668 = vst.msk [vmem:[#allocation5 + $0x18] sm:$0xff] %vm3011, %v4624
      %4669 = vst.msk [vmem:[#allocation5 + $0x20] sm:$0xff] %vm3011, %v4626
      %4670 = vst.msk [vmem:[#allocation5 + $0x28] sm:$0xff] %vm3011, %v4628
      %4671 = vst.msk [vmem:[#allocation5 + $0x30] sm:$0xff] %vm3011, %v4630
      %4672 = vst.msk [vmem:[#allocation5 + $0x38] sm:$0xff] %vm3011, %v4632
      %4673 = vst.msk [vmem:[#allocation5 + $0x40] sm:$0xff] %vm3011, %v4634
      %4674 = vst.msk [vmem:[#allocation5 + $0x48] sm:$0xff] %vm3011, %v4636
      %4675 = vst.msk [vmem:[#allocation5 + $0x50] sm:$0xff] %vm3011, %v4638
      %4676 = vst.msk [vmem:[#allocation5 + $0x58] sm:$0xff] %vm3011, %v4640
      %4677 = vst.msk [vmem:[#allocation5 + $0x60] sm:$0xff] %vm3011, %v4642
      %4678 = vst.msk [vmem:[#allocation5 + $0x68] sm:$0xff] %vm3011, %v4644
      %4679 = vst.msk [vmem:[#allocation5 + $0x70] sm:$0xff] %vm3011, %v4646
      %4680 = vst.msk [vmem:[#allocation5 + $0x78] sm:$0xff] %vm3011, %v4648
      %v4681 = vld [vmem:[%s3028] sm:$0xff]
      %v4682 = vld [vmem:[%s3028 + $0x8] sm:$0xff]
      %v4683 = vld [vmem:[%s3028 + $0x18] sm:$0xff]
      %v4684 = vld [vmem:[%s3028 + $0x20] sm:$0xff]
      %v4685 = vld [vmem:[%s3028 + $0x30] sm:$0xff]
      %v4686 = vld [vmem:[%s3028 + $0x38] sm:$0xff]
      %v4687 = vld [vmem:[%s3028 + $0x48] sm:$0xff]
      %v4688 = vld [vmem:[%s3028 + $0x50] sm:$0xff]
      %v4689 = vld [vmem:[%s3028 + $0x60] sm:$0xff]
      %v4690 = vld [vmem:[%s3028 + $0x68] sm:$0xff]
      %v4691 = vld [vmem:[%s3028 + $0x78] sm:$0xff]
      %v4692 = vld [vmem:[%s3028 + $0x80] sm:$0xff]
      %v4693 = vld [vmem:[%s3028 + $0x90] sm:$0xff]
      %v4694 = vld [vmem:[%s3028 + $0x98] sm:$0xff]
      %v4695 = vld [vmem:[%s3028 + $0xa8] sm:$0xff]
      %v4696 = vld [vmem:[%s3028 + $0xb0] sm:$0xff]
      %v4697 = vld [vmem:[%s3028 + $0xc0] sm:$0xff]
      %v4698 = vld [vmem:[%s3028 + $0xc8] sm:$0xff]
      %v4699 = vld [vmem:[%s3028 + $0xd8] sm:$0xff]
      %v4700 = vld [vmem:[%s3028 + $0xe0] sm:$0xff]
      %v4701 = vld [vmem:[%s3028 + $0xf0] sm:$0xff]
      %v4702 = vld [vmem:[%s3028 + $0xf8] sm:$0xff]
      %v4703 = vld [vmem:[%s3028 + $0x108] sm:$0xff]
      %v4704 = vld [vmem:[%s3028 + $0x110] sm:$0xff]
      %v4705 = vld [vmem:[%s3028 + $0x120] sm:$0xff]
      %v4706 = vld [vmem:[%s3028 + $0x128] sm:$0xff]
      %v4707 = vld [vmem:[%s3028 + $0x138] sm:$0xff]
      %v4708 = vld [vmem:[%s3028 + $0x140] sm:$0xff]
      %v4709 = vld [vmem:[%s3028 + $0x150] sm:$0xff]
      %v4710 = vld [vmem:[%s3028 + $0x158] sm:$0xff]
      %v4711 = vld [vmem:[%s3028 + $0x168] sm:$0xff]
      %v4712 = vld [vmem:[%s3028 + $0x170] sm:$0xff]
      %v4713 = vpack.c.bf16 %v4682, %v4681
      %v4714 = vpack.c.bf16 %v4684, %v4683
      %v4715 = vpack.c.bf16 %v4686, %v4685
      %v4716 = vpack.c.bf16 %v4688, %v4687
      %v4717 = vpack.c.bf16 %v4690, %v4689
      %v4718 = vpack.c.bf16 %v4692, %v4691
      %v4719 = vpack.c.bf16 %v4694, %v4693
      %v4720 = vpack.c.bf16 %v4696, %v4695
      %v4721 = vpack.c.bf16 %v4698, %v4697
      %v4722 = vpack.c.bf16 %v4700, %v4699
      %v4723 = vpack.c.bf16 %v4702, %v4701
      %v4724 = vpack.c.bf16 %v4704, %v4703
      %v4725 = vpack.c.bf16 %v4706, %v4705
      %v4726 = vpack.c.bf16 %v4708, %v4707
      %v4727 = vpack.c.bf16 %v4710, %v4709
      %v4728 = vpack.c.bf16 %v4712, %v4711
      %4745 = vrot.lane.b32.xlu0 %v4713, 48
      %v4746 = vpop.permute.xlu0 %4745
      %4747 = vrot.lane.b32.xlu0 %v4714, 48
      %v4748 = vpop.permute.xlu0 %4747
      %4749 = vrot.lane.b32.xlu0 %v4715, 48
      %v4750 = vpop.permute.xlu0 %4749
      %4751 = vrot.lane.b32.xlu0 %v4716, 48
      %v4752 = vpop.permute.xlu0 %4751
      %4753 = vrot.lane.b32.xlu0 %v4717, 48
      %v4754 = vpop.permute.xlu0 %4753
      %4755 = vrot.lane.b32.xlu0 %v4718, 48
      %v4756 = vpop.permute.xlu0 %4755
      %4757 = vrot.lane.b32.xlu0 %v4719, 48
      %v4758 = vpop.permute.xlu0 %4757
      %4759 = vrot.lane.b32.xlu0 %v4720, 48
      %v4760 = vpop.permute.xlu0 %4759
      %4761 = vrot.lane.b32.xlu0 %v4721, 48
      %v4762 = vpop.permute.xlu0 %4761
      %4763 = vrot.lane.b32.xlu0 %v4722, 48
      %v4764 = vpop.permute.xlu0 %4763
      %4765 = vrot.lane.b32.xlu0 %v4723, 48
      %v4766 = vpop.permute.xlu0 %4765
      %4767 = vrot.lane.b32.xlu0 %v4724, 48
      %v4768 = vpop.permute.xlu0 %4767
      %4769 = vrot.lane.b32.xlu0 %v4725, 48
      %v4770 = vpop.permute.xlu0 %4769
      %4771 = vrot.lane.b32.xlu0 %v4726, 48
      %v4772 = vpop.permute.xlu0 %4771
      %4773 = vrot.lane.b32.xlu0 %v4727, 48
      %v4774 = vpop.permute.xlu0 %4773
      %4775 = vrot.lane.b32.xlu0 %v4728, 48
      %v4776 = vpop.permute.xlu0 %4775
      %4793 = vst.msk [vmem:[#allocation5] sm:$0xff] %vm3141, %v4746
      %4794 = vst.msk [vmem:[#allocation5 + $0x8] sm:$0xff] %vm3141, %v4748
      %4795 = vst.msk [vmem:[#allocation5 + $0x10] sm:$0xff] %vm3141, %v4750
      %4796 = vst.msk [vmem:[#allocation5 + $0x18] sm:$0xff] %vm3141, %v4752
      %4797 = vst.msk [vmem:[#allocation5 + $0x20] sm:$0xff] %vm3141, %v4754
      %4798 = vst.msk [vmem:[#allocation5 + $0x28] sm:$0xff] %vm3141, %v4756
      %4799 = vst.msk [vmem:[#allocation5 + $0x30] sm:$0xff] %vm3141, %v4758
      %4800 = vst.msk [vmem:[#allocation5 + $0x38] sm:$0xff] %vm3141, %v4760
      %4801 = vst.msk [vmem:[#allocation5 + $0x40] sm:$0xff] %vm3141, %v4762
      %4802 = vst.msk [vmem:[#allocation5 + $0x48] sm:$0xff] %vm3141, %v4764
      %4803 = vst.msk [vmem:[#allocation5 + $0x50] sm:$0xff] %vm3141, %v4766
      %4804 = vst.msk [vmem:[#allocation5 + $0x58] sm:$0xff] %vm3141, %v4768
      %4805 = vst.msk [vmem:[#allocation5 + $0x60] sm:$0xff] %vm3141, %v4770
      %4806 = vst.msk [vmem:[#allocation5 + $0x68] sm:$0xff] %vm3141, %v4772
      %4807 = vst.msk [vmem:[#allocation5 + $0x70] sm:$0xff] %vm3141, %v4774
      %4808 = vst.msk [vmem:[#allocation5 + $0x78] sm:$0xff] %vm3141, %v4776
      %v4809 = vld [vmem:[%s3028 + $0x1] sm:$0xff]
      %v4810 = vld [vmem:[%s3028 + $0x9] sm:$0xff]
      %v4811 = vld [vmem:[%s3028 + $0x19] sm:$0xff]
      %v4812 = vld [vmem:[%s3028 + $0x21] sm:$0xff]
      %v4813 = vld [vmem:[%s3028 + $0x31] sm:$0xff]
      %v4814 = vld [vmem:[%s3028 + $0x39] sm:$0xff]
      %v4815 = vld [vmem:[%s3028 + $0x49] sm:$0xff]
      %v4816 = vld [vmem:[%s3028 + $0x51] sm:$0xff]
      %v4817 = vld [vmem:[%s3028 + $0x61] sm:$0xff]
      %v4818 = vld [vmem:[%s3028 + $0x69] sm:$0xff]
      %v4819 = vld [vmem:[%s3028 + $0x79] sm:$0xff]
      %v4820 = vld [vmem:[%s3028 + $0x81] sm:$0xff]
      %v4821 = vld [vmem:[%s3028 + $0x91] sm:$0xff]
      %v4822 = vld [vmem:[%s3028 + $0x99] sm:$0xff]
      %v4823 = vld [vmem:[%s3028 + $0xa9] sm:$0xff]
      %v4824 = vld [vmem:[%s3028 + $0xb1] sm:$0xff]
      %v4825 = vld [vmem:[%s3028 + $0xc1] sm:$0xff]
      %v4826 = vld [vmem:[%s3028 + $0xc9] sm:$0xff]
      %v4827 = vld [vmem:[%s3028 + $0xd9] sm:$0xff]
      %v4828 = vld [vmem:[%s3028 + $0xe1] sm:$0xff]
      %v4829 = vld [vmem:[%s3028 + $0xf1] sm:$0xff]
      %v4830 = vld [vmem:[%s3028 + $0xf9] sm:$0xff]
      %v4831 = vld [vmem:[%s3028 + $0x109] sm:$0xff]
      %v4832 = vld [vmem:[%s3028 + $0x111] sm:$0xff]
      %v4833 = vld [vmem:[%s3028 + $0x121] sm:$0xff]
      %v4834 = vld [vmem:[%s3028 + $0x129] sm:$0xff]
      %v4835 = vld [vmem:[%s3028 + $0x139] sm:$0xff]
      %v4836 = vld [vmem:[%s3028 + $0x141] sm:$0xff]
      %v4837 = vld [vmem:[%s3028 + $0x151] sm:$0xff]
      %v4838 = vld [vmem:[%s3028 + $0x159] sm:$0xff]
      %v4839 = vld [vmem:[%s3028 + $0x169] sm:$0xff]
      %v4840 = vld [vmem:[%s3028 + $0x171] sm:$0xff]
      %v4841 = vpack.c.bf16 %v4810, %v4809
      %v4842 = vpack.c.bf16 %v4812, %v4811
      %v4843 = vpack.c.bf16 %v4814, %v4813
      %v4844 = vpack.c.bf16 %v4816, %v4815
      %v4845 = vpack.c.bf16 %v4818, %v4817
      %v4846 = vpack.c.bf16 %v4820, %v4819
      %v4847 = vpack.c.bf16 %v4822, %v4821
      %v4848 = vpack.c.bf16 %v4824, %v4823
      %v4849 = vpack.c.bf16 %v4826, %v4825
      %v4850 = vpack.c.bf16 %v4828, %v4827
      %v4851 = vpack.c.bf16 %v4830, %v4829
      %v4852 = vpack.c.bf16 %v4832, %v4831
      %v4853 = vpack.c.bf16 %v4834, %v4833
      %v4854 = vpack.c.bf16 %v4836, %v4835
      %v4855 = vpack.c.bf16 %v4838, %v4837
      %v4856 = vpack.c.bf16 %v4840, %v4839
      %4873 = vrot.lane.b32.xlu0 %v4841, 56
      %v4874 = vpop.permute.xlu0 %4873
      %4875 = vrot.lane.b32.xlu0 %v4842, 56
      %v4876 = vpop.permute.xlu0 %4875
      %4877 = vrot.lane.b32.xlu0 %v4843, 56
      %v4878 = vpop.permute.xlu0 %4877
      %4879 = vrot.lane.b32.xlu0 %v4844, 56
      %v4880 = vpop.permute.xlu0 %4879
      %4881 = vrot.lane.b32.xlu0 %v4845, 56
      %v4882 = vpop.permute.xlu0 %4881
      %4883 = vrot.lane.b32.xlu0 %v4846, 56
      %v4884 = vpop.permute.xlu0 %4883
      %4885 = vrot.lane.b32.xlu0 %v4847, 56
      %v4886 = vpop.permute.xlu0 %4885
      %4887 = vrot.lane.b32.xlu0 %v4848, 56
      %v4888 = vpop.permute.xlu0 %4887
      %4889 = vrot.lane.b32.xlu0 %v4849, 56
      %v4890 = vpop.permute.xlu0 %4889
      %4891 = vrot.lane.b32.xlu0 %v4850, 56
      %v4892 = vpop.permute.xlu0 %4891
      %4893 = vrot.lane.b32.xlu0 %v4851, 56
      %v4894 = vpop.permute.xlu0 %4893
      %4895 = vrot.lane.b32.xlu0 %v4852, 56
      %v4896 = vpop.permute.xlu0 %4895
      %4897 = vrot.lane.b32.xlu0 %v4853, 56
      %v4898 = vpop.permute.xlu0 %4897
      %4899 = vrot.lane.b32.xlu0 %v4854, 56
      %v4900 = vpop.permute.xlu0 %4899
      %4901 = vrot.lane.b32.xlu0 %v4855, 56
      %v4902 = vpop.permute.xlu0 %4901
      %4903 = vrot.lane.b32.xlu0 %v4856, 56
      %v4904 = vpop.permute.xlu0 %4903
      %4921 = vst.msk [vmem:[#allocation5] sm:$0xff] %vm3270, %v4874
      %4922 = vst.msk [vmem:[#allocation5 + $0x8] sm:$0xff] %vm3270, %v4876
      %4923 = vst.msk [vmem:[#allocation5 + $0x10] sm:$0xff] %vm3270, %v4878
      %4924 = vst.msk [vmem:[#allocation5 + $0x18] sm:$0xff] %vm3270, %v4880
      %4925 = vst.msk [vmem:[#allocation5 + $0x20] sm:$0xff] %vm3270, %v4882
      %4926 = vst.msk [vmem:[#allocation5 + $0x28] sm:$0xff] %vm3270, %v4884
      %4927 = vst.msk [vmem:[#allocation5 + $0x30] sm:$0xff] %vm3270, %v4886
      %4928 = vst.msk [vmem:[#allocation5 + $0x38] sm:$0xff] %vm3270, %v4888
      %4929 = vst.msk [vmem:[#allocation5 + $0x40] sm:$0xff] %vm3270, %v4890
      %4930 = vst.msk [vmem:[#allocation5 + $0x48] sm:$0xff] %vm3270, %v4892
      %4931 = vst.msk [vmem:[#allocation5 + $0x50] sm:$0xff] %vm3270, %v4894
      %4932 = vst.msk [vmem:[#allocation5 + $0x58] sm:$0xff] %vm3270, %v4896
      %4933 = vst.msk [vmem:[#allocation5 + $0x60] sm:$0xff] %vm3270, %v4898
      %4934 = vst.msk [vmem:[#allocation5 + $0x68] sm:$0xff] %vm3270, %v4900
      %4935 = vst.msk [vmem:[#allocation5 + $0x70] sm:$0xff] %vm3270, %v4902
      %4936 = vst.msk [vmem:[#allocation5 + $0x78] sm:$0xff] %vm3270, %v4904
      %v4937 = vld [vmem:[%s3028 + $0x2] sm:$0xff]
      %v4938 = vld [vmem:[%s3028 + $0xa] sm:$0xff]
      %v4939 = vld [vmem:[%s3028 + $0x1a] sm:$0xff]
      %v4940 = vld [vmem:[%s3028 + $0x22] sm:$0xff]
      %v4941 = vld [vmem:[%s3028 + $0x32] sm:$0xff]
      %v4942 = vld [vmem:[%s3028 + $0x3a] sm:$0xff]
      %v4943 = vld [vmem:[%s3028 + $0x4a] sm:$0xff]
      %v4944 = vld [vmem:[%s3028 + $0x52] sm:$0xff]
      %v4945 = vld [vmem:[%s3028 + $0x62] sm:$0xff]
      %v4946 = vld [vmem:[%s3028 + $0x6a] sm:$0xff]
      %v4947 = vld [vmem:[%s3028 + $0x7a] sm:$0xff]
      %v4948 = vld [vmem:[%s3028 + $0x82] sm:$0xff]
      %v4949 = vld [vmem:[%s3028 + $0x92] sm:$0xff]
      %v4950 = vld [vmem:[%s3028 + $0x9a] sm:$0xff]
      %v4951 = vld [vmem:[%s3028 + $0xaa] sm:$0xff]
      %v4952 = vld [vmem:[%s3028 + $0xb2] sm:$0xff]
      %v4953 = vld [vmem:[%s3028 + $0xc2] sm:$0xff]
      %v4954 = vld [vmem:[%s3028 + $0xca] sm:$0xff]
      %v4955 = vld [vmem:[%s3028 + $0xda] sm:$0xff]
      %v4956 = vld [vmem:[%s3028 + $0xe2] sm:$0xff]
      %v4957 = vld [vmem:[%s3028 + $0xf2] sm:$0xff]
      %v4958 = vld [vmem:[%s3028 + $0xfa] sm:$0xff]
      %v4959 = vld [vmem:[%s3028 + $0x10a] sm:$0xff]
      %v4960 = vld [vmem:[%s3028 + $0x112] sm:$0xff]
      %v4961 = vld [vmem:[%s3028 + $0x122] sm:$0xff]
      %v4962 = vld [vmem:[%s3028 + $0x12a] sm:$0xff]
      %v4963 = vld [vmem:[%s3028 + $0x13a] sm:$0xff]
      %v4964 = vld [vmem:[%s3028 + $0x142] sm:$0xff]
      %v4965 = vld [vmem:[%s3028 + $0x152] sm:$0xff]
      %v4966 = vld [vmem:[%s3028 + $0x15a] sm:$0xff]
      %v4967 = vld [vmem:[%s3028 + $0x16a] sm:$0xff]
      %v4968 = vld [vmem:[%s3028 + $0x172] sm:$0xff]
      %v4969 = vpack.c.bf16 %v4938, %v4937
      %v4970 = vpack.c.bf16 %v4940, %v4939
      %v4971 = vpack.c.bf16 %v4942, %v4941
      %v4972 = vpack.c.bf16 %v4944, %v4943
      %v4973 = vpack.c.bf16 %v4946, %v4945
      %v4974 = vpack.c.bf16 %v4948, %v4947
      %v4975 = vpack.c.bf16 %v4950, %v4949
      %v4976 = vpack.c.bf16 %v4952, %v4951
      %v4977 = vpack.c.bf16 %v4954, %v4953
      %v4978 = vpack.c.bf16 %v4956, %v4955
      %v4979 = vpack.c.bf16 %v4958, %v4957
      %v4980 = vpack.c.bf16 %v4960, %v4959
      %v4981 = vpack.c.bf16 %v4962, %v4961
      %v4982 = vpack.c.bf16 %v4964, %v4963
      %v4983 = vpack.c.bf16 %v4966, %v4965
      %v4984 = vpack.c.bf16 %v4968, %v4967
      %5001 = vrot.lane.b32.xlu0 %v4969, 64
      %v5002 = vpop.permute.xlu0 %5001
      %5003 = vrot.lane.b32.xlu0 %v4970, 64
      %v5004 = vpop.permute.xlu0 %5003
      %5005 = vrot.lane.b32.xlu0 %v4971, 64
      %v5006 = vpop.permute.xlu0 %5005
      %5007 = vrot.lane.b32.xlu0 %v4972, 64
      %v5008 = vpop.permute.xlu0 %5007
      %5009 = vrot.lane.b32.xlu0 %v4973, 64
      %v5010 = vpop.permute.xlu0 %5009
      %5011 = vrot.lane.b32.xlu0 %v4974, 64
      %v5012 = vpop.permute.xlu0 %5011
      %5013 = vrot.lane.b32.xlu0 %v4975, 64
      %v5014 = vpop.permute.xlu0 %5013
      %5015 = vrot.lane.b32.xlu0 %v4976, 64
      %v5016 = vpop.permute.xlu0 %5015
      %5017 = vrot.lane.b32.xlu0 %v4977, 64
      %v5018 = vpop.permute.xlu0 %5017
      %5019 = vrot.lane.b32.xlu0 %v4978, 64
      %v5020 = vpop.permute.xlu0 %5019
      %5021 = vrot.lane.b32.xlu0 %v4979, 64
      %v5022 = vpop.permute.xlu0 %5021
      %5023 = vrot.lane.b32.xlu0 %v4980, 64
      %v5024 = vpop.permute.xlu0 %5023
      %5025 = vrot.lane.b32.xlu0 %v4981, 64
      %v5026 = vpop.permute.xlu0 %5025
      %5027 = vrot.lane.b32.xlu0 %v4982, 64
      %v5028 = vpop.permute.xlu0 %5027
      %5029 = vrot.lane.b32.xlu0 %v4983, 64
      %v5030 = vpop.permute.xlu0 %5029
      %5031 = vrot.lane.b32.xlu0 %v4984, 64
      %v5032 = vpop.permute.xlu0 %5031
      %5049 = vst.msk [vmem:[#allocation5] sm:$0xff] %vm3399, %v5002
      %5050 = vst.msk [vmem:[#allocation5 + $0x8] sm:$0xff] %vm3399, %v5004
      %5051 = vst.msk [vmem:[#allocation5 + $0x10] sm:$0xff] %vm3399, %v5006
      %5052 = vst.msk [vmem:[#allocation5 + $0x18] sm:$0xff] %vm3399, %v5008
      %5053 = vst.msk [vmem:[#allocation5 + $0x20] sm:$0xff] %vm3399, %v5010
      %5054 = vst.msk [vmem:[#allocation5 + $0x28] sm:$0xff] %vm3399, %v5012
      %5055 = vst.msk [vmem:[#allocation5 + $0x30] sm:$0xff] %vm3399, %v5014
      %5056 = vst.msk [vmem:[#allocation5 + $0x38] sm:$0xff] %vm3399, %v5016
      %5057 = vst.msk [vmem:[#allocation5 + $0x40] sm:$0xff] %vm3399, %v5018
      %5058 = vst.msk [vmem:[#allocation5 + $0x48] sm:$0xff] %vm3399, %v5020
      %5059 = vst.msk [vmem:[#allocation5 + $0x50] sm:$0xff] %vm3399, %v5022
      %5060 = vst.msk [vmem:[#allocation5 + $0x58] sm:$0xff] %vm3399, %v5024
      %5061 = vst.msk [vmem:[#allocation5 + $0x60] sm:$0xff] %vm3399, %v5026
      %5062 = vst.msk [vmem:[#allocation5 + $0x68] sm:$0xff] %vm3399, %v5028
      %5063 = vst.msk [vmem:[#allocation5 + $0x70] sm:$0xff] %vm3399, %v5030
      %5064 = vst.msk [vmem:[#allocation5 + $0x78] sm:$0xff] %vm3399, %v5032
      %v5065 = vld [vmem:[#allocation5] sm:$0xff]
      %v5066 = vld [vmem:[#allocation5 + $0x8] sm:$0xff]
      %v5067 = vld [vmem:[#allocation5 + $0x10] sm:$0xff]
      %v5068 = vld [vmem:[#allocation5 + $0x18] sm:$0xff]
      %v5069 = vld [vmem:[#allocation5 + $0x20] sm:$0xff]
      %v5070 = vld [vmem:[#allocation5 + $0x28] sm:$0xff]
      %v5071 = vld [vmem:[#allocation5 + $0x30] sm:$0xff]
      %v5072 = vld [vmem:[#allocation5 + $0x38] sm:$0xff]
      %v5073 = vld [vmem:[#allocation5 + $0x40] sm:$0xff]
      %v5074 = vld [vmem:[#allocation5 + $0x48] sm:$0xff]
      %v5075 = vld [vmem:[#allocation5 + $0x50] sm:$0xff]
      %v5076 = vld [vmem:[#allocation5 + $0x58] sm:$0xff]
      %v5077 = vld [vmem:[#allocation5 + $0x60] sm:$0xff]
      %v5078 = vld [vmem:[#allocation5 + $0x68] sm:$0xff]
      %v5079 = vld [vmem:[#allocation5 + $0x70] sm:$0xff]
      %v5080 = vld [vmem:[#allocation5 + $0x78] sm:$0xff]
      %v5081 = vld [vmem:[%s5] sm:$0xf]
      %v5082 = vld [vmem:[%s5 + $0x4] sm:$0xf]
      %v5083 = vld [vmem:[%s5 + $0x8] sm:$0xf]
      %v5084 = vld [vmem:[%s5 + $0xc] sm:$0xf]
      %v5085 = vld [vmem:[%s5 + $0x10] sm:$0xf]
      %v5086 = vld [vmem:[%s5 + $0x14] sm:$0xf]
      %v5087 = vld [vmem:[%s5 + $0x18] sm:$0xf]
      %v5088 = vld [vmem:[%s5 + $0x1c] sm:$0xf]
      %v5089 = vld [vmem:[%s5 + $0x20] sm:$0xf]
      %v5090 = vld [vmem:[%s6] sm:$0x1]
      %v5092 = vlaneseq
      %v5093 = vshrl.u32 %v5092, 7
      %v5094 = vsub.s32 0, %v5093
      %v5095 = vrot.slane %v5090, %v5094
      %v5106 = vunpack.c.l.b16 %v5081
      %v5107 = vunpack.c.l.b16 %v5082
      %v5108 = vunpack.c.l.b16 %v5083
      %v5109 = vunpack.c.l.b16 %v5084
      %v5110 = vunpack.c.l.b16 %v5085
      %v5111 = vunpack.c.l.b16 %v5086
      %v5112 = vunpack.c.l.b16 %v5087
      %v5113 = vunpack.c.l.b16 %v5088
      %v5114 = vunpack.c.l.b16 %v5089
      %v5115 = vpack.c.b16 %v5107, %v5106
      %v5116 = vpack.c.b16 %v5109, %v5108
      %v5117 = vpack.c.b16 %v5111, %v5110
      %v5118 = vpack.c.b16 %v5113, %v5112
      %v5119 = vpack.c.b16 %v5114, %v5114
      %v5125 = vsel %vm3475, %v5065, 0
      %v5128 = vsel %vm3475, %v5066, 0
      %v5131 = vsel %vm3475, %v5067, 0
      %v5134 = vsel %vm3475, %v5068, 0
      %v5137 = vsel %vm3475, %v5069, 0
      %v5140 = vsel %vm3475, %v5070, 0
      %v5143 = vsel %vm3475, %v5071, 0
      %v5146 = vsel %vm3475, %v5072, 0
      %v5149 = vsel %vm3475, %v5073, 0
      %v5152 = vsel %vm3475, %v5074, 0
      %v5155 = vsel %vm3475, %v5075, 0
      %v5158 = vsel %vm3475, %v5076, 0
      %v5161 = vsel %vm3475, %v5077, 0
      %v5164 = vsel %vm3475, %v5078, 0
      %v5167 = vsel %vm3475, %v5079, 0
      %v5170 = vsel %vm3475, %v5080, 0
      %v5173 = vsel %vm3524, %v5119, 0
      %5175 = vmatprep.subr.bf16.mxu0 0
      %5176 = vmatpush1.bf16.msra.mxu0 %v5115
      %5177 = vmatprep.subr.bf16.mxu0 0
      %5178 = vmatpush1.bf16.msra.mxu0 %v5116
      %5179 = vmatprep.subr.bf16.mxu0 0
      %5180 = vmatpush1.bf16.msra.mxu0 %v5117
      %5181 = vmatprep.subr.bf16.mxu0 0
      %5182 = vmatpush1.bf16.msra.mxu0 %v5118
      %5183 = vmatprep.subr.bf16.mxu0 0
      %5184 = vmatpush1.bf16.msra.mxu0 %v5173
      %5185 = vmatprep.subr.bf16.mxu0 0
      %5186 = vmatpush1.bf16.msra.mxu0 0
      %5187 = vmatprep.subr.bf16.mxu0 0
      %5188 = vmatpush1.bf16.msra.mxu0 0
      %5189 = vmatprep.subr.bf16.mxu0 0
      %5190 = vmatpush1.bf16.msra.mxu0 0
      %5191 = vmatprep.subr.bf16.mxu0 0
      %5192 = vmatpush1.bf16.msra.mxu0 0
      %5193 = vmatprep.subr.bf16.mxu0 0
      %5194 = vmatpush1.bf16.msra.mxu0 0
      %5195 = vmatprep.subr.bf16.mxu0 0
      %5196 = vmatpush1.bf16.msra.mxu0 0
      %5197 = vmatprep.subr.bf16.mxu0 0
      %5198 = vmatpush1.bf16.msra.mxu0 0
      %5199 = vmatprep.subr.bf16.mxu0 0
      %5200 = vmatpush1.bf16.msra.mxu0 0
      %5201 = vmatprep.subr.bf16.mxu0 0
      %5202 = vmatpush1.bf16.msra.mxu0 0
      %5203 = vmatprep.subr.bf16.mxu0 0
      %5204 = vmatpush1.bf16.msra.mxu0 0
      %5205 = vmatprep.subr.bf16.mxu0 0
      %5206 = vmatpush1.bf16.msra.mxu0 0
      %5207 = vmatprep.mubr.bf16.mxu0 0
      %5208 = vmatmul.mubr.bf16.gmra.mrb[0].mxu0 %v5125
      %v5209 = vpop.f32.mrb[0].mxu0
      %v5210 = vadd.f32 %v5095, %v5209
      %v5211 = vpop.f32.mrb[0].mxu0
      %v5212 = vpop.f32.mrb[0].mxu0
      %v5213 = vadd.f32 %v5095, %v5212
      %v5214 = vpop.f32.mrb[0].mxu0
      %5215 = vmatprep.mubr.bf16.mxu0 0
      %5216 = vmatmul.mubr.bf16.gmra.mrb[0].mxu0 %v5128
      %v5217 = vpop.f32.mrb[0].mxu0
      %v5218 = vadd.f32 %v5095, %v5217
      %v5219 = vpop.f32.mrb[0].mxu0
      %v5220 = vpop.f32.mrb[0].mxu0
      %v5221 = vadd.f32 %v5095, %v5220
      %v5222 = vpop.f32.mrb[0].mxu0
      %5223 = vmatprep.mubr.bf16.mxu0 0
      %5224 = vmatmul.mubr.bf16.gmra.mrb[0].mxu0 %v5131
      %v5225 = vpop.f32.mrb[0].mxu0
      %v5226 = vadd.f32 %v5095, %v5225
      %v5227 = vpop.f32.mrb[0].mxu0
      %v5228 = vpop.f32.mrb[0].mxu0
      %v5229 = vadd.f32 %v5095, %v5228
      %v5230 = vpop.f32.mrb[0].mxu0
      %5231 = vmatprep.mubr.bf16.mxu0 0
      %5232 = vmatmul.mubr.bf16.gmra.mrb[0].mxu0 %v5134
      %v5233 = vpop.f32.mrb[0].mxu0
      %v5234 = vadd.f32 %v5095, %v5233
      %v5235 = vpop.f32.mrb[0].mxu0
      %v5236 = vpop.f32.mrb[0].mxu0
      %v5237 = vadd.f32 %v5095, %v5236
      %v5238 = vpop.f32.mrb[0].mxu0
      %5239 = vmatprep.mubr.bf16.mxu0 0
      %5240 = vmatmul.mubr.bf16.gmra.mrb[0].mxu0 %v5137
      %v5241 = vpop.f32.mrb[0].mxu0
      %v5242 = vadd.f32 %v5095, %v5241
      %v5243 = vpop.f32.mrb[0].mxu0
      %v5244 = vpop.f32.mrb[0].mxu0
      %v5245 = vadd.f32 %v5095, %v5244
      %v5246 = vpop.f32.mrb[0].mxu0
      %5247 = vmatprep.mubr.bf16.mxu0 0
      %5248 = vmatmul.mubr.bf16.gmra.mrb[0].mxu0 %v5140
      %v5249 = vpop.f32.mrb[0].mxu0
      %v5250 = vadd.f32 %v5095, %v5249
      %v5251 = vpop.f32.mrb[0].mxu0
      %v5252 = vpop.f32.mrb[0].mxu0
      %v5253 = vadd.f32 %v5095, %v5252
      %v5254 = vpop.f32.mrb[0].mxu0
      %5255 = vmatprep.mubr.bf16.mxu0 0
      %5256 = vmatmul.mubr.bf16.gmra.mrb[0].mxu0 %v5143
      %v5257 = vpop.f32.mrb[0].mxu0
      %v5258 = vadd.f32 %v5095, %v5257
      %v5259 = vpop.f32.mrb[0].mxu0
      %v5260 = vpop.f32.mrb[0].mxu0
      %v5261 = vadd.f32 %v5095, %v5260
      %v5262 = vpop.f32.mrb[0].mxu0
      %5263 = vmatprep.mubr.bf16.mxu0 0
      %5264 = vmatmul.mubr.bf16.gmra.mrb[0].mxu0 %v5146
      %v5265 = vpop.f32.mrb[0].mxu0
      %v5266 = vadd.f32 %v5095, %v5265
      %v5267 = vpop.f32.mrb[0].mxu0
      %v5268 = vpop.f32.mrb[0].mxu0
      %v5269 = vadd.f32 %v5095, %v5268
      %v5270 = vpop.f32.mrb[0].mxu0
      %5271 = vmatprep.mubr.bf16.mxu0 0
      %5272 = vmatmul.mubr.bf16.gmra.mrb[0].mxu0 %v5149
      %v5273 = vpop.f32.mrb[0].mxu0
      %v5274 = vadd.f32 %v5095, %v5273
      %v5275 = vpop.f32.mrb[0].mxu0
      %v5276 = vpop.f32.mrb[0].mxu0
      %v5277 = vadd.f32 %v5095, %v5276
      %v5278 = vpop.f32.mrb[0].mxu0
      %5279 = vmatprep.mubr.bf16.mxu0 0
      %5280 = vmatmul.mubr.bf16.gmra.mrb[0].mxu0 %v5152
      %v5281 = vpop.f32.mrb[0].mxu0
      %v5282 = vadd.f32 %v5095, %v5281
      %v5283 = vpop.f32.mrb[0].mxu0
      %v5284 = vpop.f32.mrb[0].mxu0
      %v5285 = vadd.f32 %v5095, %v5284
      %v5286 = vpop.f32.mrb[0].mxu0
      %5287 = vmatprep.mubr.bf16.mxu0 0
      %5288 = vmatmul.mubr.bf16.gmra.mrb[0].mxu0 %v5155
      %v5289 = vpop.f32.mrb[0].mxu0
      %v5290 = vadd.f32 %v5095, %v5289
      %v5291 = vpop.f32.mrb[0].mxu0
      %v5292 = vpop.f32.mrb[0].mxu0
      %v5293 = vadd.f32 %v5095, %v5292
      %v5294 = vpop.f32.mrb[0].mxu0
      %5295 = vmatprep.mubr.bf16.mxu0 0
      %5296 = vmatmul.mubr.bf16.gmra.mrb[0].mxu0 %v5158
      %v5297 = vpop.f32.mrb[0].mxu0
      %v5298 = vadd.f32 %v5095, %v5297
      %v5299 = vpop.f32.mrb[0].mxu0
      %v5300 = vpop.f32.mrb[0].mxu0
      %v5301 = vadd.f32 %v5095, %v5300
      %v5302 = vpop.f32.mrb[0].mxu0
      %5303 = vmatprep.mubr.bf16.mxu0 0
      %5304 = vmatmul.mubr.bf16.gmra.mrb[0].mxu0 %v5161
      %v5305 = vpop.f32.mrb[0].mxu0
      %v5306 = vadd.f32 %v5095, %v5305
      %v5307 = vpop.f32.mrb[0].mxu0
      %v5308 = vpop.f32.mrb[0].mxu0
      %v5309 = vadd.f32 %v5095, %v5308
      %v5310 = vpop.f32.mrb[0].mxu0
      %5311 = vmatprep.mubr.bf16.mxu0 0
      %5312 = vmatmul.mubr.bf16.gmra.mrb[0].mxu0 %v5164
      %v5313 = vpop.f32.mrb[0].mxu0
      %v5314 = vadd.f32 %v5095, %v5313
      %v5315 = vpop.f32.mrb[0].mxu0
      %v5316 = vpop.f32.mrb[0].mxu0
      %v5317 = vadd.f32 %v5095, %v5316
      %v5318 = vpop.f32.mrb[0].mxu0
      %5319 = vmatprep.mubr.bf16.mxu0 0
      %5320 = vmatmul.mubr.bf16.gmra.mrb[0].mxu0 %v5167
      %v5321 = vpop.f32.mrb[0].mxu0
      %v5322 = vadd.f32 %v5095, %v5321
      %v5323 = vpop.f32.mrb[0].mxu0
      %v5324 = vpop.f32.mrb[0].mxu0
      %v5325 = vadd.f32 %v5095, %v5324
      %v5326 = vpop.f32.mrb[0].mxu0
      %5327 = vmatprep.mubr.bf16.mxu0 0
      %5328 = vmatmul.mubr.bf16.gmra.mrb[0].mxu0 %v5170
      %v5329 = vpop.f32.mrb[0].mxu0
      %v5330 = vadd.f32 %v5095, %v5329
      %v5331 = vpop.f32.mrb[0].mxu0
      %v5332 = vpop.f32.mrb[0].mxu0
      %v5333 = vadd.f32 %v5095, %v5332
      %v5334 = vpop.f32.mrb[0].mxu0
      %5335 = vdwg.mxu0
      %v5336 = vmax.f32 %v5210, 0.0
      %v5337 = vmax.f32 %v5213, 0.0
      %v5338 = vmax.f32 %v5218, 0.0
      %v5339 = vmax.f32 %v5221, 0.0
      %v5340 = vmax.f32 %v5226, 0.0
      %v5341 = vmax.f32 %v5229, 0.0
      %v5342 = vmax.f32 %v5234, 0.0
      %v5343 = vmax.f32 %v5237, 0.0
      %v5344 = vmax.f32 %v5242, 0.0
      %v5345 = vmax.f32 %v5245, 0.0
      %v5346 = vmax.f32 %v5250, 0.0
      %v5347 = vmax.f32 %v5253, 0.0
      %v5348 = vmax.f32 %v5258, 0.0
      %v5349 = vmax.f32 %v5261, 0.0
      %v5350 = vmax.f32 %v5266, 0.0
      %v5351 = vmax.f32 %v5269, 0.0
      %v5352 = vmax.f32 %v5274, 0.0
      %v5353 = vmax.f32 %v5277, 0.0
      %v5354 = vmax.f32 %v5282, 0.0
      %v5355 = vmax.f32 %v5285, 0.0
      %v5356 = vmax.f32 %v5290, 0.0
      %v5357 = vmax.f32 %v5293, 0.0
      %v5358 = vmax.f32 %v5298, 0.0
      %v5359 = vmax.f32 %v5301, 0.0
      %v5360 = vmax.f32 %v5306, 0.0
      %v5361 = vmax.f32 %v5309, 0.0
      %v5362 = vmax.f32 %v5314, 0.0
      %v5363 = vmax.f32 %v5317, 0.0
      %v5364 = vmax.f32 %v5322, 0.0
      %v5365 = vmax.f32 %v5325, 0.0
      %v5366 = vmax.f32 %v5330, 0.0
      %v5367 = vmax.f32 %v5333, 0.0
      %5368 = vxpose.xlu0.b32.start [1/16] %v1974, 128
      %5369 = vxpose.xlu0.b32.cont [2/16] %v1975, 128
      %5370 = vxpose.xlu0.b32.cont [3/16] %v1976, 128
      %5371 = vxpose.xlu0.b32.cont [4/16] %v1977, 128
      %5372 = vxpose.xlu0.b32.cont [5/16] %v1978, 128
      %5373 = vxpose.xlu0.b32.cont [6/16] %v1979, 128
      %5374 = vxpose.xlu0.b32.cont [7/16] %v1980, 128
      %5375 = vxpose.xlu0.b32.cont [8/16] %v1981, 128
      %5376 = vxpose.xlu0.b32.cont [9/16] %v1982, 128
      %5377 = vxpose.xlu0.b32.cont [10/16] %v1983, 128
      %5378 = vxpose.xlu0.b32.cont [11/16] %v1984, 128
      %5379 = vxpose.xlu0.b32.cont [12/16] %v1985, 128
      %5380 = vxpose.xlu0.b32.cont [13/16] %v1986, 128
      %5381 = vxpose.xlu0.b32.cont [14/16] %v1987, 128
      %5382 = vxpose.xlu0.b32.cont [15/16] %v1988, 128
      %5383 = vxpose.xlu0.b32.end [16/16] %v1989, 128
      %v5384 = vpop.trf.xlu0
      %v5385 = vpop.trf.xlu0
      %v5386 = vpop.trf.xlu0
      %v5387 = vpop.trf.xlu0
      %v5388 = vpop.trf.xlu0
      %v5389 = vpop.trf.xlu0
      %v5390 = vpop.trf.xlu0
      %v5391 = vpop.trf.xlu0
      %v5392 = vpop.trf.xlu0
      %v5393 = vpop.trf.xlu0
      %v5394 = vpop.trf.xlu0
      %v5395 = vpop.trf.xlu0
      %v5396 = vpop.trf.xlu0
      %v5397 = vpop.trf.xlu0
      %v5398 = vpop.trf.xlu0
      %v5399 = vpop.trf.xlu0
      %5400 = vxpose.xlu0.b32.start [1/16] %v1990, 128
      %5401 = vxpose.xlu0.b32.cont [2/16] %v1991, 128
      %5402 = vxpose.xlu0.b32.cont [3/16] %v1992, 128
      %5403 = vxpose.xlu0.b32.cont [4/16] %v1993, 128
      %5404 = vxpose.xlu0.b32.cont [5/16] %v1994, 128
      %5405 = vxpose.xlu0.b32.cont [6/16] %v1995, 128
      %5406 = vxpose.xlu0.b32.cont [7/16] %v1996, 128
      %5407 = vxpose.xlu0.b32.cont [8/16] %v1997, 128
      %5408 = vxpose.xlu0.b32.cont [9/16] %v1998, 128
      %5409 = vxpose.xlu0.b32.cont [10/16] %v1999, 128
      %5410 = vxpose.xlu0.b32.cont [11/16] %v2000, 128
      %5411 = vxpose.xlu0.b32.cont [12/16] %v2001, 128
      %5412 = vxpose.xlu0.b32.cont [13/16] %v2002, 128
      %5413 = vxpose.xlu0.b32.cont [14/16] %v2003, 128
      %5414 = vxpose.xlu0.b32.cont [15/16] %v2004, 128
      %5415 = vxpose.xlu0.b32.end [16/16] %v2005, 128
      %v5416 = vpop.trf.xlu0
      %v5417 = vpop.trf.xlu0
      %v5418 = vpop.trf.xlu0
      %v5419 = vpop.trf.xlu0
      %v5420 = vpop.trf.xlu0
      %v5421 = vpop.trf.xlu0
      %v5422 = vpop.trf.xlu0
      %v5423 = vpop.trf.xlu0
      %v5424 = vpop.trf.xlu0
      %v5425 = vpop.trf.xlu0
      %v5426 = vpop.trf.xlu0
      %v5427 = vpop.trf.xlu0
      %v5428 = vpop.trf.xlu0
      %v5429 = vpop.trf.xlu0
      %v5430 = vpop.trf.xlu0
      %v5431 = vpop.trf.xlu0
      %5432 = vst [vmem:[%s278] sm:$0xff] %v5384
      %5433 = vst [vmem:[%s278 + $0x8] sm:$0xff] %v5416
      %5434 = vst [vmem:[%s278 + $0x10] sm:$0xff] %v5385
      %5435 = vst [vmem:[%s278 + $0x18] sm:$0xff] %v5417
      %5436 = vxpose.xlu0.b32.start [1/16] %v3689, 128
      %5437 = vxpose.xlu0.b32.cont [2/16] %v3690, 128
      %5438 = vxpose.xlu0.b32.cont [3/16] %v3691, 128
      %5439 = vxpose.xlu0.b32.cont [4/16] %v3692, 128
      %5440 = vxpose.xlu0.b32.cont [5/16] %v3693, 128
      %5441 = vxpose.xlu0.b32.cont [6/16] %v3694, 128
      %5442 = vxpose.xlu0.b32.cont [7/16] %v3695, 128
      %5443 = vxpose.xlu0.b32.cont [8/16] %v3696, 128
      %5444 = vxpose.xlu0.b32.cont [9/16] %v3697, 128
      %5445 = vxpose.xlu0.b32.cont [10/16] %v3698, 128
      %5446 = vxpose.xlu0.b32.cont [11/16] %v3699, 128
      %5447 = vxpose.xlu0.b32.cont [12/16] %v3700, 128
      %5448 = vxpose.xlu0.b32.cont [13/16] %v3701, 128
      %5449 = vxpose.xlu0.b32.cont [14/16] %v3702, 128
      %5450 = vxpose.xlu0.b32.cont [15/16] %v3703, 128
      %5451 = vxpose.xlu0.b32.end [16/16] %v3704, 128
      %v5452 = vpop.trf.xlu0
      %v5453 = vpop.trf.xlu0
      %v5454 = vpop.trf.xlu0
      %v5455 = vpop.trf.xlu0
      %v5456 = vpop.trf.xlu0
      %v5457 = vpop.trf.xlu0
      %v5458 = vpop.trf.xlu0
      %v5459 = vpop.trf.xlu0
      %v5460 = vpop.trf.xlu0
      %v5461 = vpop.trf.xlu0
      %v5462 = vpop.trf.xlu0
      %v5463 = vpop.trf.xlu0
      %v5464 = vpop.trf.xlu0
      %v5465 = vpop.trf.xlu0
      %v5466 = vpop.trf.xlu0
      %v5467 = vpop.trf.xlu0
      %5468 = vxpose.xlu0.b32.start [1/16] %v3705, 128
      %5469 = vxpose.xlu0.b32.cont [2/16] %v3706, 128
      %5470 = vxpose.xlu0.b32.cont [3/16] %v3707, 128
      %5471 = vxpose.xlu0.b32.cont [4/16] %v3708, 128
      %5472 = vxpose.xlu0.b32.cont [5/16] %v3709, 128
      %5473 = vxpose.xlu0.b32.cont [6/16] %v3710, 128
      %5474 = vxpose.xlu0.b32.cont [7/16] %v3711, 128
      %5475 = vxpose.xlu0.b32.cont [8/16] %v3712, 128
      %5476 = vxpose.xlu0.b32.cont [9/16] %v3713, 128
      %5477 = vxpose.xlu0.b32.cont [10/16] %v3714, 128
      %5478 = vxpose.xlu0.b32.cont [11/16] %v3715, 128
      %5479 = vxpose.xlu0.b32.cont [12/16] %v3716, 128
      %5480 = vxpose.xlu0.b32.cont [13/16] %v3717, 128
      %5481 = vxpose.xlu0.b32.cont [14/16] %v3718, 128
      %5482 = vxpose.xlu0.b32.cont [15/16] %v3719, 128
      %5483 = vxpose.xlu0.b32.end [16/16] %v3720, 128
      %v5484 = vpop.trf.xlu0
      %v5485 = vpop.trf.xlu0
      %v5486 = vpop.trf.xlu0
      %v5487 = vpop.trf.xlu0
      %v5488 = vpop.trf.xlu0
      %v5489 = vpop.trf.xlu0
      %v5490 = vpop.trf.xlu0
      %v5491 = vpop.trf.xlu0
      %v5492 = vpop.trf.xlu0
      %v5493 = vpop.trf.xlu0
      %v5494 = vpop.trf.xlu0
      %v5495 = vpop.trf.xlu0
      %v5496 = vpop.trf.xlu0
      %v5497 = vpop.trf.xlu0
      %v5498 = vpop.trf.xlu0
      %v5499 = vpop.trf.xlu0
      %5500 = vst [vmem:[%s278 + $0x20] sm:$0xff] %v5452
      %5501 = vst [vmem:[%s278 + $0x28] sm:$0xff] %v5484
      %5502 = vxpose.xlu0.b32.start [1/16] %v5336, 128
      %5503 = vxpose.xlu0.b32.cont [2/16] %v5337, 128
      %5504 = vxpose.xlu0.b32.cont [3/16] %v5338, 128
      %5505 = vxpose.xlu0.b32.cont [4/16] %v5339, 128
      %5506 = vxpose.xlu0.b32.cont [5/16] %v5340, 128
      %5507 = vxpose.xlu0.b32.cont [6/16] %v5341, 128
      %5508 = vxpose.xlu0.b32.cont [7/16] %v5342, 128
      %5509 = vxpose.xlu0.b32.cont [8/16] %v5343, 128
      %5510 = vxpose.xlu0.b32.cont [9/16] %v5344, 128
      %5511 = vxpose.xlu0.b32.cont [10/16] %v5345, 128
      %5512 = vxpose.xlu0.b32.cont [11/16] %v5346, 128
      %5513 = vxpose.xlu0.b32.cont [12/16] %v5347, 128
      %5514 = vxpose.xlu0.b32.cont [13/16] %v5348, 128
      %5515 = vxpose.xlu0.b32.cont [14/16] %v5349, 128
      %5516 = vxpose.xlu0.b32.cont [15/16] %v5350, 128
      %5517 = vxpose.xlu0.b32.end [16/16] %v5351, 128
      %v5518 = vpop.trf.xlu0
      %v5519 = vpop.trf.xlu0
      %v5520 = vpop.trf.xlu0
      %v5521 = vpop.trf.xlu0
      %v5522 = vpop.trf.xlu0
      %v5523 = vpop.trf.xlu0
      %v5524 = vpop.trf.xlu0
      %v5525 = vpop.trf.xlu0
      %v5526 = vpop.trf.xlu0
      %v5527 = vpop.trf.xlu0
      %v5528 = vpop.trf.xlu0
      %v5529 = vpop.trf.xlu0
      %v5530 = vpop.trf.xlu0
      %v5531 = vpop.trf.xlu0
      %v5532 = vpop.trf.xlu0
      %v5533 = vpop.trf.xlu0
      %5534 = vxpose.xlu0.b32.start [1/16] %v5352, 128
      %5535 = vxpose.xlu0.b32.cont [2/16] %v5353, 128
      %5536 = vxpose.xlu0.b32.cont [3/16] %v5354, 128
      %5537 = vxpose.xlu0.b32.cont [4/16] %v5355, 128
      %5538 = vxpose.xlu0.b32.cont [5/16] %v5356, 128
      %5539 = vxpose.xlu0.b32.cont [6/16] %v5357, 128
      %5540 = vxpose.xlu0.b32.cont [7/16] %v5358, 128
      %5541 = vxpose.xlu0.b32.cont [8/16] %v5359, 128
      %5542 = vxpose.xlu0.b32.cont [9/16] %v5360, 128
      %5543 = vxpose.xlu0.b32.cont [10/16] %v5361, 128
      %5544 = vxpose.xlu0.b32.cont [11/16] %v5362, 128
      %5545 = vxpose.xlu0.b32.cont [12/16] %v5363, 128
      %5546 = vxpose.xlu0.b32.cont [13/16] %v5364, 128
      %5547 = vxpose.xlu0.b32.cont [14/16] %v5365, 128
      %5548 = vxpose.xlu0.b32.cont [15/16] %v5366, 128
      %5549 = vxpose.xlu0.b32.end [16/16] %v5367, 128
      %v5550 = vpop.trf.xlu0
      %v5551 = vpop.trf.xlu0
      %v5552 = vpop.trf.xlu0
      %v5553 = vpop.trf.xlu0
      %v5554 = vpop.trf.xlu0
      %v5555 = vpop.trf.xlu0
      %v5556 = vpop.trf.xlu0
      %v5557 = vpop.trf.xlu0
      %v5558 = vpop.trf.xlu0
      %v5559 = vpop.trf.xlu0
      %v5560 = vpop.trf.xlu0
      %v5561 = vpop.trf.xlu0
      %v5562 = vpop.trf.xlu0
      %v5563 = vpop.trf.xlu0
      %v5564 = vpop.trf.xlu0
      %v5565 = vpop.trf.xlu0
      %5566 = vst [vmem:[%s278 + $0x30] sm:$0xff] %v5518
      %5567 = vst [vmem:[%s278 + $0x38] sm:$0xff] %v5550
      %p5568 = scmp.lt.s32.totalorder %s18, 1
      %s5569 = scalar_select %p5568, %s18, 1
      %s5570 = smul.addr %s5569, 8
      %s5571 = smul.addr %s5570, 8
      %s5572 = scalar_lea.vmem %s7, %s5571
      // Predicated region
      $region49: #{ssh_forward.1} parent=47 // pred_check
        %p5573 = pneg %p188
      $region50: #{ssh_forward.1} parent=47 // pred_check_branch
        %5575 = sbr.rel (%p5573) target = $region52
      $region51: #{ssh_forward.1} parent=47 // pred_region
        _
      $region52: #{ssh_forward.1} parent=47 // pred_fallthru
        _
    $region48: #{ssh_forward.1} parent=5 // pred_fallthru
      _
    %p5576 = scmp.le.s32.totalorder 2, %s13
    // Predicated region
    $region53: #{ssh_forward.1} parent=5 // pred_check
      %p5577 = pneg %p5576
    $region54: #{ssh_forward.1} parent=5 // pred_check_branch
      %5579 = sbr.rel (%p5577) target = $region56
    $region55: #{ssh_forward.1} parent=5 // pred_region
      %s5580 = ssub.s32 %s13, 2
      // Predicated region
      $region57: #{ssh_forward.1} parent=55 // pred_check
        %p5581 = pneg %p194
      $region58: #{ssh_forward.1} parent=55 // pred_check_branch
        %5583 = sbr.rel (%p5581) target = $region60
      $region59: #{ssh_forward.1} parent=55 // pred_region
        %p5584 = scmp.lt.s32.totalorder %s19, 1
        %s5585 = scalar_select %p5584, %s19, 1
        %s5586 = smul.addr %s5585, 8
        %s5587 = smul.addr %s5586, 8
        %s5588 = scalar_lea.vmem %s7, %s5587
      $region60: #{ssh_forward.1} parent=55 // pred_fallthru
        _
    $region56: #{ssh_forward.1} parent=5 // pred_fallthru
      _
  $region6: #{ssh_forward.1} parent=0 // loop_footer
    %s17 = sadd.s32 1, %s13
  $region7: #{ssh_forward.1} parent=0 // loop_footer_branch
    %12 = sbr.rel target = $region3
  $region8: #{ssh_forward.1} parent=0 // loop_exit
    _

</llo_original>
